<compile_context>
chip_gen: v7x
topology: tpu7x:2x2x1
jax: 0.10.0
libtpu: 0.0.40
codegen_flags: <defaults>
</compile_context>

<pallas_src>
import functools
import math

import jax
import jax.numpy as jnp
import numpy as np
from jax import lax
from jax.experimental import pallas as pl
from jax.experimental.pallas import tpu as pltpu


def _round_up(x, m):
    return ((x + m - 1) // m) * m


def _cdiv(a, b):
    return (a + b - 1) // b


def _k1_vmem_budget():
    """(working-set budget, scoped VMEM limit) for Kernel 1, generation-aware."""
    cap = 128 * 1024 * 1024
    try:
        cap = int(pltpu.get_tpu_info().vmem_capacity_bytes)
    except Exception:
        pass  # fall back to a conservative assumption
    budget = min(24 * 1024 * 1024, (2 * cap) // 5)   # keeps v7x (64 MiB) comfortable
    limit = min(32 * 1024 * 1024, (3 * cap) // 5)
    return budget, limit


# ----------------------- Kernel 1: input_fc + input_bn -----------------------
# out = (x @ W) * scale + shift   (Linear bias and BN (eval) folded into scale/shift)

def _input_fc_bn_kernel(x_ref, w_ref, aff_ref, out_ref, acc_ref, *, k_rem):
    k = pl.program_id(1)
    nk = pl.num_programs(1)

    @pl.when(k == 0)
    def _():
        acc_ref[...] = jnp.zeros_like(acc_ref)

    if k_rem == 0:
        acc_ref[...] += jnp.dot(x_ref[...], w_ref[...],
                                preferred_element_type=jnp.float32)
    else:
        # All K tiles except the last are full; only the last tile pays for masking,
        # so the wrapper never materializes a padded copy of the huge x matrix.
        @pl.when(k < nk - 1)
        def _():
            acc_ref[...] += jnp.dot(x_ref[...], w_ref[...],
                                    preferred_element_type=jnp.float32)

        @pl.when(k == nk - 1)
        def _():
            x = x_ref[...]
            w = w_ref[...]
            col = lax.broadcasted_iota(jnp.int32, x.shape, 1)
            row = lax.broadcasted_iota(jnp.int32, w.shape, 0)
            x = jnp.where(col < k_rem, x, jnp.zeros_like(x))
            w = jnp.where(row < k_rem, w, jnp.zeros_like(w))
            acc_ref[...] += jnp.dot(x, w, preferred_element_type=jnp.float32)

    @pl.when(k == nk - 1)
    def _():
        aff = aff_ref[...]                       # (2, Dmp): row0 = scale, row1 = shift
        out_ref[...] = (acc_ref[...] * aff[0:1, :] + aff[1:2, :]).astype(out_ref.dtype)


def _pick_tiles_k1(M, K, Dmp, itemsize, budget):
    tm = min(512, _round_up(M, 8))
    # Keep both TensorCores busy on v7x: expose at least 2 M tiles when possible.
    if M > 8 and _cdiv(M, tm) < 2:
        tm = _round_up(_cdiv(M, 2), 8)
    tk = min(4096, max(128, (K // 128) * 128))

    def footprint(tk_):
        return (2 * tm * tk_ * itemsize          # x tiles (double buffered)
                + 2 * tk_ * Dmp * itemsize       # W tiles (double buffered)
                + tm * Dmp * 4                   # f32 accumulator
                + 2 * tm * Dmp * 4)              # f32 output tiles (double buffered)

    while tk > 128 and footprint(tk) > budget:
        tk = max(128, ((tk // 2) // 128) * 128)
    return tm, tk


def _input_fc_bn(x2d, w, scale, shift, *, input_dtype=jnp.bfloat16):
    M, K = x2d.shape
    Dm = w.shape[1]
    Dmp = _round_up(Dm, 128)                     # lane-dense W / output columns
    itemsize = jnp.dtype(input_dtype).itemsize

    budget, vmem_limit = _k1_vmem_budget()
    tm, tk = _pick_tiles_k1(M, K, Dmp, itemsize, budget)
    nm, nk = _cdiv(M, tm), _cdiv(K, tk)
    k_rem = K % tk                               # ragged K tail handled in-kernel

    w_p = w.astype(input_dtype)
    if Dmp != Dm:
        w_p = jnp.pad(w_p, ((0, 0), (0, Dmp - Dm)))
    aff = (jnp.zeros((2, Dmp), jnp.float32)
           .at[0, :Dm].set(scale.astype(jnp.float32))
           .at[1, :Dm].set(shift.astype(jnp.float32)))

    out = pl.pallas_call(
        functools.partial(_input_fc_bn_kernel, k_rem=k_rem),
        out_shape=jax.ShapeDtypeStruct((M, Dmp), jnp.float32),
        grid_spec=pltpu.PrefetchScalarGridSpec(
            num_scalar_prefetch=0,
            grid=(nm, nk),
            in_specs=[
                pl.BlockSpec((tm, tk), lambda m, k: (m, k)),
                pl.BlockSpec((tk, Dmp), lambda m, k: (k, 0)),
                pl.BlockSpec((2, Dmp), lambda m, k: (0, 0)),
            ],
            out_specs=pl.BlockSpec((tm, Dmp), lambda m, k: (m, 0)),
            scratch_shapes=[pltpu.VMEM((tm, Dmp), jnp.float32)],
        ),
        compiler_params=pltpu.CompilerParams(
            dimension_semantics=("parallel", "arbitrary"),
            vmem_limit_bytes=vmem_limit,
        ),
    )(x2d.astype(input_dtype), w_p, aff)
    return out[:, :Dm]


# ---- Kernel 2: encoder layer + seq-mean + output_bn + output_fc (batch-blocked) ----

def _encoder_pool_head_kernel(h_ref, wqkv_ref, bqkv_ref, wo_ref, vec_ref,
                              wff1_ref, bff1_ref, wff2_ref, wout_ref, bout_ref,
                              out_ref, *, num_heads):
    H = h_ref[...]                               # (bb, S, Dm) f32
    bb, S, Dm = H.shape
    hd = Dm // num_heads
    inv_sqrt_hd = 1.0 / math.sqrt(hd)
    eps = 1e-5

    vec = vec_ref[...]                           # packed per-channel vectors (8, Dm)
    b_o, ln1_w, ln1_b = vec[0], vec[1], vec[2]
    b_ff2, ln2_w, ln2_b = vec[3], vec[4], vec[5]

    def layer_norm(x, w, b):
        mu = jnp.mean(x, axis=-1, keepdims=True)
        xc = x - mu
        var = jnp.mean(xc * xc, axis=-1, keepdims=True)
        return xc * lax.rsqrt(var + eps) * w + b

    Hf = H.reshape(bb * S, Dm)                   # all rows of the batch block at once

    # Fused, lane-dense QKV projection: one (bb*S, Dm) x (Dm, 3*Dm) MXU pass.
    qkv = jnp.dot(Hf, wqkv_ref[...], preferred_element_type=jnp.float32) + bqkv_ref[...]

    attn = jnp.zeros((bb * S, Dm), jnp.float32)
    for hx in range(num_heads):                  # static loop; batched over the block
        q = qkv[:, hx * hd:(hx + 1) * hd].reshape(bb, S, hd)
        k = qkv[:, Dm + hx * hd:Dm + (hx + 1) * hd].reshape(bb, S, hd)
        v = qkv[:, 2 * Dm + hx * hd:2 * Dm + (hx + 1) * hd].reshape(bb, S, hd)
        s = jnp.einsum("bqh,bkh->bqk", q, k,
                       preferred_element_type=jnp.float32) * inv_sqrt_hd
        s = s - jnp.max(s, axis=-1, keepdims=True)
        p = jnp.exp(s)
        p = p / jnp.sum(p, axis=-1, keepdims=True)
        ho = jnp.einsum("bqk,bkh->bqh", p, v, preferred_element_type=jnp.float32)
        # per-head out-projection summed over heads == concat(heads) @ W_o
        attn = attn + jnp.dot(ho.reshape(bb * S, hd), wo_ref[hx],
                              preferred_element_type=jnp.float32)
    attn = attn + b_o

    # ---- post-LN residual blocks (dropout is identity at inference) ----
    x1 = layer_norm(Hf + attn, ln1_w, ln1_b)

    ff = jnp.dot(x1, wff1_ref[...], preferred_element_type=jnp.float32) + bff1_ref[...]
    ff = jnp.maximum(ff, 0.0)
    ff = jnp.dot(ff, wff2_ref[...], preferred_element_type=jnp.float32) + b_ff2
    x2 = layer_norm(x1 + ff, ln2_w, ln2_b)

    # ---- mean over sequence, then output BN + Linear (folded into W_out/b_out) ----
    pooled = jnp.mean(x2.reshape(bb, S, Dm), axis=1)                  # (bb, Dm)
    out = jnp.dot(pooled, wout_ref[...],
                  preferred_element_type=jnp.float32) + bout_ref[...]
    out_ref[...] = out.astype(out_ref.dtype)


def _encoder_pool_head(h, p, bn2_scale, bn2_shift, *, num_heads, block_b=8):
    B, S, Dm = h.shape
    hd = Dm // num_heads
    Dff = p["w_ff1"].shape[1]
    F = p["w_out"].shape[1]
    Fp = _round_up(F, 128)                       # lane-dense output store
    f32 = jnp.float32

    # Several batch elements per grid step (amortizes per-step overhead and gives the
    # matmuls M = bb*S rows); pad the (tiny) h with zero batch rows so every block is
    # in bounds.  bb == B for small B keeps the block legal (equals the full extent).
    bb = B if B <= block_b else block_b
    nb = _cdiv(B, bb)
    Bp = nb * bb
    h_p = h.astype(f32)
    if Bp != B:
        h_p = jnp.pad(h_p, ((0, Bp - B), (0, 0), (0, 0)))

    # Fused QKV weights / bias; per-head rows of W_o.
    wqkv = jnp.concatenate([p["w_q"], p["w_k"], p["w_v"]], axis=1).astype(f32)
    bqkv = jnp.concatenate([p["b_q"], p["b_k"], p["b_v"]]).reshape(1, 3 * Dm).astype(f32)
    wo = p["w_o"].reshape(num_heads, hd, Dm).astype(f32)

    # Pack the small per-channel vectors into one array (fewer constant inputs).
    vec = (jnp.zeros((8, Dm), f32)
           .at[0].set(p["b_o"]).at[1].set(p["ln1_w"]).at[2].set(p["ln1_b"])
           .at[3].set(p["b_ff2"]).at[4].set(p["ln2_w"]).at[5].set(p["ln2_b"]))

    # Fold output BatchNorm (eval affine) into the output Linear; pad F to 128 lanes.
    w_out_eff = (bn2_scale[:, None] * p["w_out"]).astype(f32)          # (Dm, F)
    b_out_eff = (bn2_shift @ p["w_out"] + p["b_out"]).astype(f32)      # (F,)
    w_out_p = jnp.zeros((Dm, Fp), f32).at[:, :F].set(w_out_eff)
    b_out_p = jnp.zeros((1, Fp), f32).at[0, :F].set(b_out_eff)

    def full(shape):
        n = len(shape)
        return pl.BlockSpec(shape, lambda i, _n=n: (0,) * _n)

    kernel = functools.partial(_encoder_pool_head_kernel, num_heads=num_heads)

    out = pl.pallas_call(
        kernel,
        out_shape=jax.ShapeDtypeStruct((Bp, Fp), f32),
        grid_spec=pltpu.PrefetchScalarGridSpec(
            num_scalar_prefetch=0,
            grid=(nb,),
            in_specs=[
                pl.BlockSpec((bb, S, Dm), lambda i: (i, 0, 0)),       # h batch block
                full((Dm, 3 * Dm)), full((1, 3 * Dm)),                # fused QKV
                full((num_heads, hd, Dm)),                            # W_o per head
                full((8, Dm)),                                        # packed vectors
                full((Dm, Dff)), full((1, Dff)), full((Dff, Dm)),     # FFN
                full((Dm, Fp)), full((1, Fp)),                        # output fc (+BN)
            ],
            out_specs=pl.BlockSpec((bb, Fp), lambda i: (i, 0)),
        ),
        compiler_params=pltpu.CompilerParams(
            dimension_semantics=("parallel",),
            vmem_limit_bytes=32 * 1024 * 1024,
        ),
    )(h_p, wqkv, bqkv, wo, vec,
      p["w_ff1"].astype(f32), p["b_ff1"].reshape(1, Dff).astype(f32),
      p["w_ff2"].astype(f32), w_out_p, b_out_p)
    return out[:B, :F]


# --------------------------------- full forward ---------------------------------

@functools.partial(jax.jit, static_argnames=("num_heads", "input_dtype"))
def simple_transformer_forward(x, params, *, num_heads, input_dtype=jnp.bfloat16):
    x = x.astype(jnp.float32)
    B, S, Din = x.shape
    Dm = params["w_in"].shape[1]
    eps = 1e-5

    # input BatchNorm1d (eval) + Linear bias folded into a post-matmul affine
    scale1 = params["bn1_w"] / jnp.sqrt(params["bn1_var"] + eps)
    shift1 = (params["b_in"] - params["bn1_mean"]) * scale1 + params["bn1_b"]

    h = _input_fc_bn(x.reshape(B * S, Din), params["w_in"], scale1, shift1,
                     input_dtype=input_dtype)
    h = h.reshape(B, S, Dm)

    # output BatchNorm1d (eval) folded into the output Linear inside Kernel 2
    scale2 = params["bn2_w"] / jnp.sqrt(params["bn2_var"] + eps)
    shift2 = params["bn2_b"] - params["bn2_mean"] * scale2

    return _encoder_pool_head(h, params, scale2, shift2, num_heads=num_heads)


# ----------------------------- pure-JAX reference -------------------------------

def reference_forward(x, p, *, num_heads):
    eps = 1e-5
    hp = lax.Precision.HIGHEST
    B, S, Din = x.shape
    Dm = p["w_in"].shape[1]
    hd = Dm // num_heads

    h = jnp.einsum("bsk,kd->bsd", x, p["w_in"], precision=hp) + p["b_in"]
    h = (h - p["bn1_mean"]) / jnp.sqrt(p["bn1_var"] + eps) * p["bn1_w"] + p["bn1_b"]

    q = jnp.einsum("bsd,de->bse", h, p["w_q"], precision=hp) + p["b_q"]
    k = jnp.einsum("bsd,de->bse", h, p["w_k"], precision=hp) + p["b_k"]
    v = jnp.einsum("bsd,de->bse", h, p["w_v"], precision=hp) + p["b_v"]
    q = q.reshape(B, S, num_heads, hd)
    k = k.reshape(B, S, num_heads, hd)
    v = v.reshape(B, S, num_heads, hd)
    scores = jnp.einsum("bsnh,btnh->bnst", q, k, precision=hp) / math.sqrt(hd)
    pattn = jax.nn.softmax(scores, axis=-1)
    attn = jnp.einsum("bnst,btnh->bsnh", pattn, v, precision=hp).reshape(B, S, Dm)
    attn = jnp.einsum("bsd,de->bse", attn, p["w_o"], precision=hp) + p["b_o"]

    def layer_norm(t, w, b):
        mu = t.mean(-1, keepdims=True)
        var = ((t - mu) ** 2).mean(-1, keepdims=True)
        return (t - mu) / jnp.sqrt(var + eps) * w + b

    x1 = layer_norm(h + attn, p["ln1_w"], p["ln1_b"])
    ff = jnp.einsum("bsd,df->bsf", x1, p["w_ff1"], precision=hp) + p["b_ff1"]
    ff = jnp.maximum(ff, 0.0)
    ff = jnp.einsum("bsf,fd->bsd", ff, p["w_ff2"], precision=hp) + p["b_ff2"]
    x2 = layer_norm(x1 + ff, p["ln2_w"], p["ln2_b"])

    pooled = x2.mean(axis=1)
    pooled = (pooled - p["bn2_mean"]) / jnp.sqrt(p["bn2_var"] + eps) * p["bn2_w"] + p["bn2_b"]
    return jnp.einsum("bd,df->bf", pooled, p["w_out"], precision=hp) + p["b_out"]


if __name__ == "__main__":
    # Small shapes consistent with the module (model_dim=128, 2 heads, feature_dim=2).
    # Din=400 exercises the ragged-K mask (tk=384), B=10 exercises batch blocking.
    B, S, Din, Dm, NH, Dff, F = 10, 8, 400, 128, 2, 256, 2

    key = jax.random.PRNGKey(0)
    kit = iter(jax.random.split(key, 48))

    def u(shape, bound):
        return jax.random.uniform(next(kit), shape, jnp.float32, -bound, bound)

    def n(shape, s=1.0):
        return s * jax.random.normal(next(kit), shape, jnp.float32)

    bd_in, bd_d, bd_ff = 1.0 / math.sqrt(Din), 1.0 / math.sqrt(Dm), 1.0 / math.sqrt(Dff)

    x = n((B, S, Din))

    params = dict(
        w_in=u((Din, Dm), bd_in), b_in=u((Dm,), bd_in),
        bn1_w=1.0 + n((Dm,), 0.1), bn1_b=n((Dm,), 0.1),
        bn1_mean=n((Dm,), 0.1),
        bn1_var=jax.random.uniform(next(kit), (Dm,), jnp.float32, 0.5, 1.5),
        w_q=u((Dm, Dm), bd_d), b_q=u((Dm,), bd_d),
        w_k=u((Dm, Dm), bd_d), b_k=u((Dm,), bd_d),
        w_v=u((Dm, Dm), bd_d), b_v=u((Dm,), bd_d),
        w_o=u((Dm, Dm), bd_d), b_o=u((Dm,), bd_d),
        ln1_w=1.0 + n((Dm,), 0.05), ln1_b=n((Dm,), 0.05),
        w_ff1=u((Dm, Dff), bd_d), b_ff1=u((Dff,), bd_d),
        w_ff2=u((Dff, Dm), bd_ff), b_ff2=u((Dm,), bd_ff),
        ln2_w=1.0 + n((Dm,), 0.05), ln2_b=n((Dm,), 0.05),
        bn2_w=1.0 + n((Dm,), 0.1), bn2_b=n((Dm,), 0.1),
        bn2_mean=n((Dm,), 0.1),
        bn2_var=jax.random.uniform(next(kit), (Dm,), jnp.float32, 0.5, 1.5),
        w_out=u((Dm, F), bd_d), b_out=u((F,), bd_d),
    )

    ref = np.asarray(reference_forward(x, params, num_heads=NH))

    # Exact path: f32 streaming through Kernel 1 (tight agreement with the module).
    out_f32 = simple_transformer_forward(x, params, num_heads=NH,
                                         input_dtype=jnp.float32)
    out_f32 = jax.block_until_ready(out_f32)
    np.testing.assert_allclose(np.asarray(out_f32), ref, rtol=2e-3, atol=2e-3)

    # Default path: bf16 streaming of x/W into the MXU (f32 accumulator), as
    # recommended for the memory-bound input projection; looser tolerance.
    out_bf16 = simple_transformer_forward(x, params, num_heads=NH)
    out_bf16 = jax.block_until_ready(out_bf16)
    np.testing.assert_allclose(np.asarray(out_bf16), ref, rtol=5e-2, atol=5e-2)

    print("KERNEL_OK")
</pallas_src>

<mosaic_0001>
module attributes {stable_mosaic.version = 11 : i64} {
  func.func @_input_fc_bn_kernel(%arg0: i32, %arg1: i32, %arg2: memref<40x384xf32, #tpu.memory_space<vmem>>, %arg3: memref<384x128xf32, #tpu.memory_space<vmem>>, %arg4: memref<2x128xf32, #tpu.memory_space<vmem>>, %arg5: memref<40x128xf32, #tpu.memory_space<vmem>>, %arg6: memref<40x128xf32, #tpu.memory_space<vmem>>) attributes {dimension_semantics = [#tpu.dimension_semantics<parallel>, #tpu.dimension_semantics<arbitrary>], iteration_bounds = array<i64: 2, 2>, scalar_prefetch = 0 : i64, scratch_operands = 1 : i64, tpu.core_type = #tpu.core_type<tc>, window_params = [{transform_indices = @transform_0, window_bounds = array<i64: 40, 384>}, {transform_indices = @transform_1, window_bounds = array<i64: 384, 128>}, {pipeline_mode = #tpu.pipeline_mode<synchronous>, transform_indices = @transform_2, window_bounds = array<i64: 2, 128>}, {transform_indices = @transform_3, window_bounds = array<i64: 40, 128>}]} {
    %c0_i32 = arith.constant 0 : i32
    %0 = arith.cmpi eq, %arg1, %c0_i32 : i32
    %1 = arith.extui %0 : i1 to i32
    %c0_i32_0 = arith.constant 0 : i32
    %2 = arith.cmpi ne, %1, %c0_i32_0 : i32
    scf.if %2 {
      %cst = arith.constant 0.000000e+00 : f32
      %12 = vector.broadcast %cst : f32 to vector<40x128xf32>
      %c0 = arith.constant 0 : index
      %c0_6 = arith.constant 0 : index
      %13 = vector.load %arg6[%c0, %c0_6] : memref<40x128xf32, #tpu.memory_space<vmem>>, vector<40x128xf32>
      tpu.vector_store %arg6[%c0, %c0_6], %12 {strides = array<i32>} : memref<40x128xf32, #tpu.memory_space<vmem>>, vector<40x128xf32>,
    } else {
    }
    %c1_i32 = arith.constant 1 : i32
    %3 = arith.cmpi slt, %arg1, %c1_i32 : i32
    %4 = arith.extui %3 : i1 to i32
    %c0_i32_1 = arith.constant 0 : i32
    %5 = arith.cmpi ne, %4, %c0_i32_1 : i32
    scf.if %5 {
      %c0 = arith.constant 0 : index
      %c0_6 = arith.constant 0 : index
      %12 = vector.load %arg6[%c0, %c0_6] : memref<40x128xf32, #tpu.memory_space<vmem>>, vector<40x128xf32>
      %c0_7 = arith.constant 0 : index
      %c0_8 = arith.constant 0 : index
      %13 = vector.load %arg2[%c0_7, %c0_8] : memref<40x384xf32, #tpu.memory_space<vmem>>, vector<40x384xf32>
      %c0_9 = arith.constant 0 : index
      %c0_10 = arith.constant 0 : index
      %14 = vector.load %arg3[%c0_9, %c0_10] : memref<384x128xf32, #tpu.memory_space<vmem>>, vector<384x128xf32>
      %cst = arith.constant dense<0.000000e+00> : vector<40x128xf32>
      %15 = tpu.matmul %13, %14, %cst {dimension_numbers = #tpu.dot_dimension_numbers<[1], [0], [0], [1], [0, 0, 1, 1], [], []>} : vector<40x384xf32>, vector<384x128xf32>, vector<40x128xf32> -> vector<40x128xf32>
      %16 = arith.addf %12, %15 : vector<40x128xf32>
      %c0_11 = arith.constant 0 : index
      %c0_12 = arith.constant 0 : index
      %17 = vector.load %arg6[%c0_11, %c0_12] : memref<40x128xf32, #tpu.memory_space<vmem>>, vector<40x128xf32>
      tpu.vector_store %arg6[%c0_11, %c0_12], %16 {strides = array<i32>} : memref<40x128xf32, #tpu.memory_space<vmem>>, vector<40x128xf32>,
    } else {
    }
    %c1_i32_2 = arith.constant 1 : i32
    %6 = arith.cmpi eq, %arg1, %c1_i32_2 : i32
    %7 = arith.extui %6 : i1 to i32
    %c0_i32_3 = arith.constant 0 : i32
    %8 = arith.cmpi ne, %7, %c0_i32_3 : i32
    scf.if %8 {
      %c0 = arith.constant 0 : index
      %c0_6 = arith.constant 0 : index
      %12 = vector.load %arg2[%c0, %c0_6] : memref<40x384xf32, #tpu.memory_space<vmem>>, vector<40x384xf32>
      %c0_7 = arith.constant 0 : index
      %c0_8 = arith.constant 0 : index
      %13 = vector.load %arg3[%c0_7, %c0_8] : memref<384x128xf32, #tpu.memory_space<vmem>>, vector<384x128xf32>
      %14 = tpu.iota {dimensions = array<i32: 1>} : vector<40x384xi32>
      %15 = tpu.iota {dimensions = array<i32: 0>} : vector<384x128xi32>
      %c16_i32 = arith.constant 16 : i32
      %16 = vector.broadcast %c16_i32 : i32 to vector<40x384xi32>
      %17 = arith.cmpi slt, %14, %16 : vector<40x384xi32>
      %cst = arith.constant 0.000000e+00 : f32
      %18 = vector.broadcast %cst : f32 to vector<40x384xf32>
      %19 = arith.select %17, %12, %18 : vector<40x384xi1>, vector<40x384xf32>
      %c16_i32_9 = arith.constant 16 : i32
      %20 = vector.broadcast %c16_i32_9 : i32 to vector<384x128xi32>
      %21 = arith.cmpi slt, %15, %20 : vector<384x128xi32>
      %cst_10 = arith.constant 0.000000e+00 : f32
      %22 = vector.broadcast %cst_10 : f32 to vector<384x128xf32>
      %23 = arith.select %21, %13, %22 : vector<384x128xi1>, vector<384x128xf32>
      %c0_11 = arith.constant 0 : index
      %c0_12 = arith.constant 0 : index
      %24 = vector.load %arg6[%c0_11, %c0_12] : memref<40x128xf32, #tpu.memory_space<vmem>>, vector<40x128xf32>
      %cst_13 = arith.constant dense<0.000000e+00> : vector<40x128xf32>
      %25 = tpu.matmul %19, %23, %cst_13 {dimension_numbers = #tpu.dot_dimension_numbers<[1], [0], [0], [1], [0, 0, 1, 1], [], []>} : vector<40x384xf32>, vector<384x128xf32>, vector<40x128xf32> -> vector<40x128xf32>
      %26 = arith.addf %24, %25 : vector<40x128xf32>
      %c0_14 = arith.constant 0 : index
      %c0_15 = arith.constant 0 : index
      %27 = vector.load %arg6[%c0_14, %c0_15] : memref<40x128xf32, #tpu.memory_space<vmem>>, vector<40x128xf32>
      tpu.vector_store %arg6[%c0_14, %c0_15], %26 {strides = array<i32>} : memref<40x128xf32, #tpu.memory_space<vmem>>, vector<40x128xf32>,
    } else {
    }
    %c1_i32_4 = arith.constant 1 : i32
    %9 = arith.cmpi eq, %arg1, %c1_i32_4 : i32
    %10 = arith.extui %9 : i1 to i32
    %c0_i32_5 = arith.constant 0 : i32
    %11 = arith.cmpi ne, %10, %c0_i32_5 : i32
    scf.if %11 {
      %c0 = arith.constant 0 : index
      %c0_6 = arith.constant 0 : index
      %12 = vector.load %arg4[%c0, %c0_6] : memref<2x128xf32, #tpu.memory_space<vmem>>, vector<2x128xf32>
      %c0_7 = arith.constant 0 : index
      %c0_8 = arith.constant 0 : index
      %13 = vector.load %arg6[%c0_7, %c0_8] : memref<40x128xf32, #tpu.memory_space<vmem>>, vector<40x128xf32>
      %14 = vector.extract_strided_slice %12 {offsets = [0, 0], sizes = [1, 128], strides = [1, 1]} : vector<2x128xf32> to vector<1x128xf32>
      %15 = vector.broadcast %14 : vector<1x128xf32> to vector<40x128xf32>
      %16 = arith.mulf %13, %15 : vector<40x128xf32>
      %17 = vector.extract_strided_slice %12 {offsets = [1, 0], sizes = [1, 128], strides = [1, 1]} : vector<2x128xf32> to vector<1x128xf32>
      %18 = vector.broadcast %17 : vector<1x128xf32> to vector<40x128xf32>
      %19 = arith.addf %16, %18 : vector<40x128xf32>
      %c0_9 = arith.constant 0 : index
      %c0_10 = arith.constant 0 : index
      %20 = vector.load %arg5[%c0_9, %c0_10] : memref<40x128xf32, #tpu.memory_space<vmem>>, vector<40x128xf32>
      tpu.vector_store %arg5[%c0_9, %c0_10], %19 {strides = array<i32>} : memref<40x128xf32, #tpu.memory_space<vmem>>, vector<40x128xf32>,
    } else {
    }
    return
  }
  func.func @transform_0(%arg0: i32, %arg1: i32) -> (i32, i32) {
    %c0_i32 = arith.constant 0 : i32
    return %arg0, %arg1 : i32, i32
  }
  func.func @transform_1(%arg0: i32, %arg1: i32) -> (i32, i32) {
    %c0_i32 = arith.constant 0 : i32
    %c0_i32_0 = arith.constant 0 : i32
    return %arg1, %c0_i32 : i32, i32
  }
  func.func @transform_2(%arg0: i32, %arg1: i32) -> (i32, i32) {
    %c0_i32 = arith.constant 0 : i32
    %c0_i32_0 = arith.constant 0 : i32
    %c0_i32_1 = arith.constant 0 : i32
    return %c0_i32, %c0_i32_0 : i32, i32
  }
  func.func @transform_3(%arg0: i32, %arg1: i32) -> (i32, i32) {
    %c0_i32 = arith.constant 0 : i32
    %c0_i32_0 = arith.constant 0 : i32
    return %arg0, %c0_i32 : i32, i32
  }
}

module attributes {stable_mosaic.version = 11 : i64} {
  func.func @_encoder_pool_head_kernel(%arg0: i32, %arg1: memref<8x8x128xf32, #tpu.memory_space<vmem>>, %arg2: memref<128x384xf32, #tpu.memory_space<vmem>>, %arg3: memref<1x384xf32, #tpu.memory_space<vmem>>, %arg4: memref<2x64x128xf32, #tpu.memory_space<vmem>>, %arg5: memref<8x128xf32, #tpu.memory_space<vmem>>, %arg6: memref<128x256xf32, #tpu.memory_space<vmem>>, %arg7: memref<1x256xf32, #tpu.memory_space<vmem>>, %arg8: memref<256x128xf32, #tpu.memory_space<vmem>>, %arg9: memref<128x128xf32, #tpu.memory_space<vmem>>, %arg10: memref<1x128xf32, #tpu.memory_space<vmem>>, %arg11: memref<8x128xf32, #tpu.memory_space<vmem>>) attributes {dimension_semantics = [#tpu.dimension_semantics<parallel>], iteration_bounds = array<i64: 2>, scalar_prefetch = 0 : i64, scratch_operands = 0 : i64, tpu.core_type = #tpu.core_type<tc>, window_params = [{transform_indices = @transform_0, window_bounds = array<i64: 8, 8, 128>}, {pipeline_mode = #tpu.pipeline_mode<synchronous>, transform_indices = @transform_1, window_bounds = array<i64: 128, 384>}, {pipeline_mode = #tpu.pipeline_mode<synchronous>, transform_indices = @transform_2, window_bounds = array<i64: 1, 384>}, {pipeline_mode = #tpu.pipeline_mode<synchronous>, transform_indices = @transform_3, window_bounds = array<i64: 2, 64, 128>}, {pipeline_mode = #tpu.pipeline_mode<synchronous>, transform_indices = @transform_4, window_bounds = array<i64: 8, 128>}, {pipeline_mode = #tpu.pipeline_mode<synchronous>, transform_indices = @transform_5, window_bounds = array<i64: 128, 256>}, {pipeline_mode = #tpu.pipeline_mode<synchronous>, transform_indices = @transform_6, window_bounds = array<i64: 1, 256>}, {pipeline_mode = #tpu.pipeline_mode<synchronous>, transform_indices = @transform_7, window_bounds = array<i64: 256, 128>}, {pipeline_mode = #tpu.pipeline_mode<synchronous>, transform_indices = @transform_8, window_bounds = array<i64: 128, 128>}, {pipeline_mode = #tpu.pipeline_mode<synchronous>, transform_indices = @transform_9, window_bounds = array<i64: 1, 128>}, {transform_indices = @transform_10, window_bounds = array<i64: 8, 128>}]} {
    %c0 = arith.constant 0 : index
    %c0_0 = arith.constant 0 : index
    %c0_1 = arith.constant 0 : index
    %0 = vector.load %arg1[%c0, %c0_0, %c0_1] : memref<8x8x128xf32, #tpu.memory_space<vmem>>, vector<8x8x128xf32>
    %c0_2 = arith.constant 0 : index
    %c0_3 = arith.constant 0 : index
    %1 = vector.load %arg5[%c0_2, %c0_3] : memref<8x128xf32, #tpu.memory_space<vmem>>, vector<8x128xf32>
    %2 = vector.extract_strided_slice %1 {offsets = [0, 0], sizes = [1, 128], strides = [1, 1]} : vector<8x128xf32> to vector<1x128xf32>
    %3 = vector.shape_cast %2 : vector<1x128xf32> to vector<128xf32>
    %4 = vector.extract_strided_slice %1 {offsets = [1, 0], sizes = [1, 128], strides = [1, 1]} : vector<8x128xf32> to vector<1x128xf32>
    %5 = vector.shape_cast %4 : vector<1x128xf32> to vector<128xf32>
    %6 = vector.extract_strided_slice %1 {offsets = [2, 0], sizes = [1, 128], strides = [1, 1]} : vector<8x128xf32> to vector<1x128xf32>
    %7 = vector.shape_cast %6 : vector<1x128xf32> to vector<128xf32>
    %8 = vector.extract_strided_slice %1 {offsets = [3, 0], sizes = [1, 128], strides = [1, 1]} : vector<8x128xf32> to vector<1x128xf32>
    %9 = vector.shape_cast %8 : vector<1x128xf32> to vector<128xf32>
    %10 = vector.extract_strided_slice %1 {offsets = [4, 0], sizes = [1, 128], strides = [1, 1]} : vector<8x128xf32> to vector<1x128xf32>
    %11 = vector.shape_cast %10 : vector<1x128xf32> to vector<128xf32>
    %12 = vector.extract_strided_slice %1 {offsets = [5, 0], sizes = [1, 128], strides = [1, 1]} : vector<8x128xf32> to vector<1x128xf32>
    %13 = vector.shape_cast %12 : vector<1x128xf32> to vector<128xf32>
    %14 = vector.shape_cast %0 : vector<8x8x128xf32> to vector<64x128xf32>
    %c0_4 = arith.constant 0 : index
    %c0_5 = arith.constant 0 : index
    %15 = vector.load %arg2[%c0_4, %c0_5] : memref<128x384xf32, #tpu.memory_space<vmem>>, vector<128x384xf32>
    %cst = arith.constant dense<0.000000e+00> : vector<64x384xf32>
    %16 = tpu.matmul %14, %15, %cst {dimension_numbers = #tpu.dot_dimension_numbers<[1], [0], [0], [1], [0, 0, 1, 1], [], []>} : vector<64x128xf32>, vector<128x384xf32>, vector<64x384xf32> -> vector<64x384xf32>
    %c0_6 = arith.constant 0 : index
    %c0_7 = arith.constant 0 : index
    %17 = vector.load %arg3[%c0_6, %c0_7] : memref<1x384xf32, #tpu.memory_space<vmem>>, vector<1x384xf32>
    %18 = vector.broadcast %17 : vector<1x384xf32> to vector<64x384xf32>
    %19 = arith.addf %16, %18 : vector<64x384xf32>
    %cst_8 = arith.constant 0.000000e+00 : f32
    %20 = vector.broadcast %cst_8 : f32 to vector<64x128xf32>
    %21 = vector.extract_strided_slice %19 {offsets = [0, 0], sizes = [64, 64], strides = [1, 1]} : vector<64x384xf32> to vector<64x64xf32>
    %22 = vector.shape_cast %21 : vector<64x64xf32> to vector<8x8x64xf32>
    %23 = vector.extract_strided_slice %19 {offsets = [0, 128], sizes = [64, 64], strides = [1, 1]} : vector<64x384xf32> to vector<64x64xf32>
    %24 = vector.shape_cast %23 : vector<64x64xf32> to vector<8x8x64xf32>
    %25 = vector.extract_strided_slice %19 {offsets = [0, 256], sizes = [64, 64], strides = [1, 1]} : vector<64x384xf32> to vector<64x64xf32>
    %26 = vector.shape_cast %25 : vector<64x64xf32> to vector<8x8x64xf32>
    "tpu.trace_start"() <{level = 10 : i32, message = "bqh,bkh->bqk"}> : () -> ()
    %cst_9 = arith.constant dense<0.000000e+00> : vector<8x8x8xf32>
    %27 = tpu.matmul %22, %24, %cst_9 {dimension_numbers = #tpu.dot_dimension_numbers<[2], [2], [1], [1], [0, 0, 0, 1, 1, 1], [0], [0]>} : vector<8x8x64xf32>, vector<8x8x64xf32>, vector<8x8x8xf32> -> vector<8x8x8xf32>
    "tpu.trace_stop"() : () -> ()
    %cst_10 = arith.constant 1.250000e-01 : f32
    %28 = vector.broadcast %cst_10 : f32 to vector<8x8x8xf32>
    %29 = arith.mulf %27, %28 : vector<8x8x8xf32>
    %cst_11 = arith.constant dense<0xFF800000> : vector<8x8xf32>
    %30 = vector.multi_reduction <maximumf>, %29, %cst_11 [2] : vector<8x8x8xf32> to vector<8x8xf32>
    %31 = vector.shape_cast %30 : vector<8x8xf32> to vector<8x8x1xf32>
    %32 = vector.broadcast %31 : vector<8x8x1xf32> to vector<8x8x8xf32>
    %33 = arith.subf %29, %32 : vector<8x8x8xf32>
    %34 = math.exp %33 : vector<8x8x8xf32>
    %cst_12 = arith.constant dense<0.000000e+00> : vector<8x8xf32>
    %35 = vector.multi_reduction <add>, %34, %cst_12 [2] : vector<8x8x8xf32> to vector<8x8xf32>
    %36 = vector.shape_cast %35 : vector<8x8xf32> to vector<8x8x1xf32>
    %37 = vector.broadcast %36 : vector<8x8x1xf32> to vector<8x8x8xf32>
    %38 = arith.divf %34, %37 : vector<8x8x8xf32>
    "tpu.trace_start"() <{level = 10 : i32, message = "bqk,bkh->bqh"}> : () -> ()
    %cst_13 = arith.constant dense<0.000000e+00> : vector<8x8x64xf32>
    %39 = tpu.matmul %38, %26, %cst_13 {dimension_numbers = #tpu.dot_dimension_numbers<[2], [1], [1], [2], [0, 0, 0, 1, 1, 2], [0], [0]>} : vector<8x8x8xf32>, vector<8x8x64xf32>, vector<8x8x64xf32> -> vector<8x8x64xf32>
    "tpu.trace_stop"() : () -> ()
    %40 = vector.shape_cast %39 : vector<8x8x64xf32> to vector<64x64xf32>
    %c0_14 = arith.constant 0 : index
    %c0_15 = arith.constant 0 : index
    %c0_16 = arith.constant 0 : index
    %41 = vector.load %arg4[%c0_14, %c0_15, %c0_16] : memref<2x64x128xf32, #tpu.memory_space<vmem>>, vector<1x64x128xf32>
    %42 = vector.shape_cast %41 : vector<1x64x128xf32> to vector<64x128xf32>
    %cst_17 = arith.constant dense<0.000000e+00> : vector<64x128xf32>
    %43 = tpu.matmul %40, %42, %cst_17 {dimension_numbers = #tpu.dot_dimension_numbers<[1], [0], [0], [1], [0, 0, 1, 1], [], []>} : vector<64x64xf32>, vector<64x128xf32>, vector<64x128xf32> -> vector<64x128xf32>
    %44 = arith.addf %20, %43 : vector<64x128xf32>
    %45 = vector.extract_strided_slice %19 {offsets = [0, 64], sizes = [64, 64], strides = [1, 1]} : vector<64x384xf32> to vector<64x64xf32>
    %46 = vector.shape_cast %45 : vector<64x64xf32> to vector<8x8x64xf32>
    %47 = vector.extract_strided_slice %19 {offsets = [0, 192], sizes = [64, 64], strides = [1, 1]} : vector<64x384xf32> to vector<64x64xf32>
    %48 = vector.shape_cast %47 : vector<64x64xf32> to vector<8x8x64xf32>
    %49 = vector.extract_strided_slice %19 {offsets = [0, 320], sizes = [64, 64], strides = [1, 1]} : vector<64x384xf32> to vector<64x64xf32>
    %50 = vector.shape_cast %49 : vector<64x64xf32> to vector<8x8x64xf32>
    "tpu.trace_start"() <{level = 10 : i32, message = "bqh,bkh->bqk"}> : () -> ()
    %cst_18 = arith.constant dense<0.000000e+00> : vector<8x8x8xf32>
    %51 = tpu.matmul %46, %48, %cst_18 {dimension_numbers = #tpu.dot_dimension_numbers<[2], [2], [1], [1], [0, 0, 0, 1, 1, 1], [0], [0]>} : vector<8x8x64xf32>, vector<8x8x64xf32>, vector<8x8x8xf32> -> vector<8x8x8xf32>
    "tpu.trace_stop"() : () -> ()
    %cst_19 = arith.constant 1.250000e-01 : f32
    %52 = vector.broadcast %cst_19 : f32 to vector<8x8x8xf32>
    %53 = arith.mulf %51, %52 : vector<8x8x8xf32>
    %cst_20 = arith.constant dense<0xFF800000> : vector<8x8xf32>
    %54 = vector.multi_reduction <maximumf>, %53, %cst_20 [2] : vector<8x8x8xf32> to vector<8x8xf32>
    %55 = vector.shape_cast %54 : vector<8x8xf32> to vector<8x8x1xf32>
    %56 = vector.broadcast %55 : vector<8x8x1xf32> to vector<8x8x8xf32>
    %57 = arith.subf %53, %56 : vector<8x8x8xf32>
    %58 = math.exp %57 : vector<8x8x8xf32>
    %cst_21 = arith.constant dense<0.000000e+00> : vector<8x8xf32>
    %59 = vector.multi_reduction <add>, %58, %cst_21 [2] : vector<8x8x8xf32> to vector<8x8xf32>
    %60 = vector.shape_cast %59 : vector<8x8xf32> to vector<8x8x1xf32>
    %61 = vector.broadcast %60 : vector<8x8x1xf32> to vector<8x8x8xf32>
    %62 = arith.divf %58, %61 : vector<8x8x8xf32>
    "tpu.trace_start"() <{level = 10 : i32, message = "bqk,bkh->bqh"}> : () -> ()
    %cst_22 = arith.constant dense<0.000000e+00> : vector<8x8x64xf32>
    %63 = tpu.matmul %62, %50, %cst_22 {dimension_numbers = #tpu.dot_dimension_numbers<[2], [1], [1], [2], [0, 0, 0, 1, 1, 2], [0], [0]>} : vector<8x8x8xf32>, vector<8x8x64xf32>, vector<8x8x64xf32> -> vector<8x8x64xf32>
    "tpu.trace_stop"() : () -> ()
    %64 = vector.shape_cast %63 : vector<8x8x64xf32> to vector<64x64xf32>
    %c1 = arith.constant 1 : index
    %c0_23 = arith.constant 0 : index
    %c0_24 = arith.constant 0 : index
    %65 = vector.load %arg4[%c1, %c0_23, %c0_24] : memref<2x64x128xf32, #tpu.memory_space<vmem>>, vector<1x64x128xf32>
    %66 = vector.shape_cast %65 : vector<1x64x128xf32> to vector<64x128xf32>
    %cst_25 = arith.constant dense<0.000000e+00> : vector<64x128xf32>
    %67 = tpu.matmul %64, %66, %cst_25 {dimension_numbers = #tpu.dot_dimension_numbers<[1], [0], [0], [1], [0, 0, 1, 1], [], []>} : vector<64x64xf32>, vector<64x128xf32>, vector<64x128xf32> -> vector<64x128xf32>
    %68 = arith.addf %44, %67 : vector<64x128xf32>
    %69 = vector.shape_cast %3 : vector<128xf32> to vector<1x128xf32>
    %70 = vector.broadcast %69 : vector<1x128xf32> to vector<64x128xf32>
    %71 = arith.addf %68, %70 : vector<64x128xf32>
    %72 = arith.addf %14, %71 : vector<64x128xf32>
    %cst_26 = arith.constant dense<0.000000e+00> : vector<64xf32>
    %73 = vector.multi_reduction <add>, %72, %cst_26 [1] : vector<64x128xf32> to vector<64xf32>
    %74 = vector.shape_cast %73 : vector<64xf32> to vector<64x1xf32>
    %cst_27 = arith.constant 1.280000e+02 : f32
    %75 = vector.broadcast %cst_27 : f32 to vector<64x1xf32>
    %76 = arith.divf %74, %75 : vector<64x1xf32>
    %77 = vector.broadcast %76 : vector<64x1xf32> to vector<64x128xf32>
    %78 = arith.subf %72, %77 : vector<64x128xf32>
    %79 = arith.mulf %78, %78 : vector<64x128xf32>
    %cst_28 = arith.constant dense<0.000000e+00> : vector<64xf32>
    %80 = vector.multi_reduction <add>, %79, %cst_28 [1] : vector<64x128xf32> to vector<64xf32>
    %81 = vector.shape_cast %80 : vector<64xf32> to vector<64x1xf32>
    %cst_29 = arith.constant 1.280000e+02 : f32
    %82 = vector.broadcast %cst_29 : f32 to vector<64x1xf32>
    %83 = arith.divf %81, %82 : vector<64x1xf32>
    %cst_30 = arith.constant 9.99999974E-6 : f32
    %84 = vector.broadcast %cst_30 : f32 to vector<64x1xf32>
    %85 = arith.addf %83, %84 : vector<64x1xf32>
    %86 = math.rsqrt %85 : vector<64x1xf32>
    %87 = vector.broadcast %86 : vector<64x1xf32> to vector<64x128xf32>
    %88 = arith.mulf %78, %87 : vector<64x128xf32>
    %89 = vector.shape_cast %5 : vector<128xf32> to vector<1x128xf32>
    %90 = vector.broadcast %89 : vector<1x128xf32> to vector<64x128xf32>
    %91 = arith.mulf %88, %90 : vector<64x128xf32>
    %92 = vector.shape_cast %7 : vector<128xf32> to vector<1x128xf32>
    %93 = vector.broadcast %92 : vector<1x128xf32> to vector<64x128xf32>
    %94 = arith.addf %91, %93 : vector<64x128xf32>
    %c0_31 = arith.constant 0 : index
    %c0_32 = arith.constant 0 : index
    %95 = vector.load %arg6[%c0_31, %c0_32] : memref<128x256xf32, #tpu.memory_space<vmem>>, vector<128x256xf32>
    %cst_33 = arith.constant dense<0.000000e+00> : vector<64x256xf32>
    %96 = tpu.matmul %94, %95, %cst_33 {dimension_numbers = #tpu.dot_dimension_numbers<[1], [0], [0], [1], [0, 0, 1, 1], [], []>} : vector<64x128xf32>, vector<128x256xf32>, vector<64x256xf32> -> vector<64x256xf32>
    %c0_34 = arith.constant 0 : index
    %c0_35 = arith.constant 0 : index
    %97 = vector.load %arg7[%c0_34, %c0_35] : memref<1x256xf32, #tpu.memory_space<vmem>>, vector<1x256xf32>
    %98 = vector.broadcast %97 : vector<1x256xf32> to vector<64x256xf32>
    %99 = arith.addf %96, %98 : vector<64x256xf32>
    %cst_36 = arith.constant 0.000000e+00 : f32
    %100 = vector.broadcast %cst_36 : f32 to vector<64x256xf32>
    %101 = arith.maximumf %99, %100 : vector<64x256xf32>
    %c0_37 = arith.constant 0 : index
    %c0_38 = arith.constant 0 : index
    %102 = vector.load %arg8[%c0_37, %c0_38] : memref<256x128xf32, #tpu.memory_space<vmem>>, vector<256x128xf32>
    %cst_39 = arith.constant dense<0.000000e+00> : vector<64x128xf32>
    %103 = tpu.matmul %101, %102, %cst_39 {dimension_numbers = #tpu.dot_dimension_numbers<[1], [0], [0], [1], [0, 0, 1, 1], [], []>} : vector<64x256xf32>, vector<256x128xf32>, vector<64x128xf32> -> vector<64x128xf32>
    %104 = vector.shape_cast %9 : vector<128xf32> to vector<1x128xf32>
    %105 = vector.broadcast %104 : vector<1x128xf32> to vector<64x128xf32>
    %106 = arith.addf %103, %105 : vector<64x128xf32>
    %107 = arith.addf %94, %106 : vector<64x128xf32>
    %cst_40 = arith.constant dense<0.000000e+00> : vector<64xf32>
    %108 = vector.multi_reduction <add>, %107, %cst_40 [1] : vector<64x128xf32> to vector<64xf32>
    %109 = vector.shape_cast %108 : vector<64xf32> to vector<64x1xf32>
    %cst_41 = arith.constant 1.280000e+02 : f32
    %110 = vector.broadcast %cst_41 : f32 to vector<64x1xf32>
    %111 = arith.divf %109, %110 : vector<64x1xf32>
    %112 = vector.broadcast %111 : vector<64x1xf32> to vector<64x128xf32>
    %113 = arith.subf %107, %112 : vector<64x128xf32>
    %114 = arith.mulf %113, %113 : vector<64x128xf32>
    %cst_42 = arith.constant dense<0.000000e+00> : vector<64xf32>
    %115 = vector.multi_reduction <add>, %114, %cst_42 [1] : vector<64x128xf32> to vector<64xf32>
    %116 = vector.shape_cast %115 : vector<64xf32> to vector<64x1xf32>
    %cst_43 = arith.constant 1.280000e+02 : f32
    %117 = vector.broadcast %cst_43 : f32 to vector<64x1xf32>
    %118 = arith.divf %116, %117 : vector<64x1xf32>
    %cst_44 = arith.constant 9.99999974E-6 : f32
    %119 = vector.broadcast %cst_44 : f32 to vector<64x1xf32>
    %120 = arith.addf %118, %119 : vector<64x1xf32>
    %121 = math.rsqrt %120 : vector<64x1xf32>
    %122 = vector.broadcast %121 : vector<64x1xf32> to vector<64x128xf32>
    %123 = arith.mulf %113, %122 : vector<64x128xf32>
    %124 = vector.shape_cast %11 : vector<128xf32> to vector<1x128xf32>
    %125 = vector.broadcast %124 : vector<1x128xf32> to vector<64x128xf32>
    %126 = arith.mulf %123, %125 : vector<64x128xf32>
    %127 = vector.shape_cast %13 : vector<128xf32> to vector<1x128xf32>
    %128 = vector.broadcast %127 : vector<1x128xf32> to vector<64x128xf32>
    %129 = arith.addf %126, %128 : vector<64x128xf32>
    %130 = vector.shape_cast %129 : vector<64x128xf32> to vector<8x8x128xf32>
    %cst_45 = arith.constant dense<0.000000e+00> : vector<8x128xf32>
    %131 = vector.multi_reduction <add>, %130, %cst_45 [1] : vector<8x8x128xf32> to vector<8x128xf32>
    %cst_46 = arith.constant 8.000000e+00 : f32
    %132 = vector.broadcast %cst_46 : f32 to vector<8x128xf32>
    %133 = arith.divf %131, %132 : vector<8x128xf32>
    %c0_47 = arith.constant 0 : index
    %c0_48 = arith.constant 0 : index
    %134 = vector.load %arg9[%c0_47, %c0_48] : memref<128x128xf32, #tpu.memory_space<vmem>>, vector<128x128xf32>
    %cst_49 = arith.constant dense<0.000000e+00> : vector<8x128xf32>
    %135 = tpu.matmul %133, %134, %cst_49 {dimension_numbers = #tpu.dot_dimension_numbers<[1], [0], [0], [1], [0, 0, 1, 1], [], []>} : vector<8x128xf32>, vector<128x128xf32>, vector<8x128xf32> -> vector<8x128xf32>
    %c0_50 = arith.constant 0 : index
    %c0_51 = arith.constant 0 : index
    %136 = vector.load %arg10[%c0_50, %c0_51] : memref<1x128xf32, #tpu.memory_space<vmem>>, vector<1x128xf32>
    %137 = vector.broadcast %136 : vector<1x128xf32> to vector<8x128xf32>
    %138 = arith.addf %135, %137 : vector<8x128xf32>
    %c0_52 = arith.constant 0 : index
    %c0_53 = arith.constant 0 : index
    %139 = vector.load %arg11[%c0_52, %c0_53] : memref<8x128xf32, #tpu.memory_space<vmem>>, vector<8x128xf32>
    tpu.vector_store %arg11[%c0_52, %c0_53], %138 {strides = array<i32>} : memref<8x128xf32, #tpu.memory_space<vmem>>, vector<8x128xf32>,
    return
  }
  func.func @transform_0(%arg0: i32) -> (i32, i32, i32) {
    %c0_i32 = arith.constant 0 : i32
    %c0_i32_0 = arith.constant 0 : i32
    %c0_i32_1 = arith.constant 0 : i32
    return %arg0, %c0_i32, %c0_i32_0 : i32, i32, i32
  }
  func.func @transform_1(%arg0: i32) -> (i32, i32) {
    %c0_i32 = arith.constant 0 : i32
    %c0_i32_0 = arith.constant 0 : i32
    %c0_i32_1 = arith.constant 0 : i32
    return %c0_i32, %c0_i32_0 : i32, i32
  }
  func.func @transform_2(%arg0: i32) -> (i32, i32) {
    %c0_i32 = arith.constant 0 : i32
    %c0_i32_0 = arith.constant 0 : i32
    %c0_i32_1 = arith.constant 0 : i32
    return %c0_i32, %c0_i32_0 : i32, i32
  }
  func.func @transform_3(%arg0: i32) -> (i32, i32, i32) {
    %c0_i32 = arith.constant 0 : i32
    %c0_i32_0 = arith.constant 0 : i32
    %c0_i32_1 = arith.constant 0 : i32
    %c0_i32_2 = arith.constant 0 : i32
    return %c0_i32, %c0_i32_0, %c0_i32_1 : i32, i32, i32
  }
  func.func @transform_4(%arg0: i32) -> (i32, i32) {
    %c0_i32 = arith.constant 0 : i32
    %c0_i32_0 = arith.constant 0 : i32
    %c0_i32_1 = arith.constant 0 : i32
    return %c0_i32, %c0_i32_0 : i32, i32
  }
  func.func @transform_5(%arg0: i32) -> (i32, i32) {
    %c0_i32 = arith.constant 0 : i32
    %c0_i32_0 = arith.constant 0 : i32
    %c0_i32_1 = arith.constant 0 : i32
    return %c0_i32, %c0_i32_0 : i32, i32
  }
  func.func @transform_6(%arg0: i32) -> (i32, i32) {
    %c0_i32 = arith.constant 0 : i32
    %c0_i32_0 = arith.constant 0 : i32
    %c0_i32_1 = arith.constant 0 : i32
    return %c0_i32, %c0_i32_0 : i32, i32
  }
  func.func @transform_7(%arg0: i32) -> (i32, i32) {
    %c0_i32 = arith.constant 0 : i32
    %c0_i32_0 = arith.constant 0 : i32
    %c0_i32_1 = arith.constant 0 : i32
    return %c0_i32, %c0_i32_0 : i32, i32
  }
  func.func @transform_8(%arg0: i32) -> (i32, i32) {
    %c0_i32 = arith.constant 0 : i32
    %c0_i32_0 = arith.constant 0 : i32
    %c0_i32_1 = arith.constant 0 : i32
    return %c0_i32, %c0_i32_0 : i32, i32
  }
  func.func @transform_9(%arg0: i32) -> (i32, i32) {
    %c0_i32 = arith.constant 0 : i32
    %c0_i32_0 = arith.constant 0 : i32
    %c0_i32_1 = arith.constant 0 : i32
    return %c0_i32, %c0_i32_0 : i32, i32
  }
  func.func @transform_10(%arg0: i32) -> (i32, i32) {
    %c0_i32 = arith.constant 0 : i32
    %c0_i32_0 = arith.constant 0 : i32
    return %arg0, %c0_i32 : i32, i32
  }
}

</mosaic_0001>

<llo_original>
// kernel: simple_transformer_forward.2
$region0: #{simple_transformer_forward.2}
  #allocation0 [shape = 'u32[]', space=smem, size = 0x4, offset = 0x4, fixed_abs, tag = 'smem constant byte address 0x4 - core index']
  #allocation1 [shape = 'u32[144,128]{1,0:T(1,128)}', space=vmem, size = 0x12000, scoped, tag = 'internal scratch']
  #allocation2 [shape = 'f32[40,128]{1,0:T(8,128)}', space=vmem, size = 0x5000, scoped, tag = 'scratch operand']
  %s0 = inlined_call_operand.hbm [shape: f32[80,400], index: 0, kind: input, shape index: {}]
  %s1 = inlined_call_operand.hbm [shape: f32[400,128], index: 1, kind: input, shape index: {}]
  %s2 = inlined_call_operand.vmem [shape: f32[2,128], index: 2, kind: input, shape index: {}]
  %s3 = inlined_call_operand.vmem [shape: f32[80,128], index: 3, kind: output, shape index: {}]
  %s4 = sld [smem:[#allocation0]]
  $region65: #{simple_transformer_forward.2} parent=0
    _
  %s6 = ssub.s32 1, %s4
  %s7 = scalar_select 0, %s6, %s4
  $region1: #{simple_transformer_forward.2} parent=0
    #allocation3 [shape = 'u8[122880]{0}', space=vmem, size = 0x1e000, scoped, tag = 'input window, operand 0']
    #allocation4 [shape = 's32[2]{0}', space=sflag, size = 0x8, scoped, tag = 'scoped memory for simple_transformer_forward.2']
    #allocation5 [shape = 'u8[393216]{0}', space=vmem, size = 0x60000, scoped, tag = 'input window, operand 1']
    #allocation6 [shape = 's32[2]{0}', space=sflag, size = 0x8, scoped, tag = 'scoped memory for simple_transformer_forward.2']
    %8 = vsyncpa [#allocation4], 0
    %s9 = scalar_lea.sflag [#allocation4], 1
    %10 = vsyncpa %s9, 0
    %11 = vsyncpa [#allocation6], 0
    %s12 = scalar_lea.sflag [#allocation6], 1
    %13 = vsyncpa %s12, 0
    loop: start=0, step=1, limit=6
    $region2: #{simple_transformer_forward.2} parent=1 // loop_pre_header
      _
    $region3: #{simple_transformer_forward.2} parent=1 // loop_header
      %s15 = sphi 0, %s19
      %p16 = scmp.ge.s32.totalorder %s15, 6
      %s22 = sphi 0, %s34
      %s23 = sphi 0, %s30
      %s24 = sphi 0, %s22
      %s25 = sphi 0, %s23
      %s26 = sphi 0, %s24
      %s27 = sphi 0, %s25
      %s39 = sphi 0, %s41
      %s42 = sphi 0, %s39
      %s43 = sphi 0, %s42
      %s59 = sphi 0, %s43
      %s65 = sphi 0, %s67
      %s68 = sphi 0, %s65
      %s69 = sphi 0, %s68
      %s85 = sphi 0, %s69
      %s89 = sphi 0, %s89
      %s91 = sphi 0, %s89
      %s92 = sphi 0, %s91
      %s106 = sphi 0, %s92
      %s112 = sphi 0, %s114
      %s115 = sphi 0, %s112
      %s116 = sphi 0, %s115
      %s132 = sphi 0, %s116
    $region4: #{simple_transformer_forward.2} parent=1 // loop_header_branch
      %18 = sbr.rel (%p16) target = $region8
    $region5: #{simple_transformer_forward.2} parent=1 // loop_body
      %s20 = ssub.s32 %s15, 1
      %s21 = ssub.s32 %s15, 2
      %s28 = sadd.s32 1, %s23
      %p29 = scmp.ge.s32.totalorder %s28, 2
      %s30 = scalar_select %p29, 0, %s28
      %s31 = sadd.s32 1, %s22
      %s32 = scalar_select %p29, %s31, %s22
      %p33 = scmp.ge.s32.totalorder %s32, 2
      %s34 = scalar_select %p33, 0, %s32
      %s35 = ssub.s32 %s22, %s34
      %s36 = ssub.s32 %s23, %s30
      %s37 = sor.u32 %s35, %s36
      %p38 = scmp.eq.s32.totalorder %s37, 0
      %s40 = sadd.s32 %s39, 1
      %s41 = scalar_select %p38, %s39, %s40
      %p44 = pneg %p38
      %p45 = scmp.eq.s32.totalorder %s15, 3
      %p46 = por %p44, %p45
      %p47 = scmp.ne.s32.totalorder %s39, %s42
      %p48 = scmp.eq.s32.totalorder %s15, 0
      %p49 = por %p47, %p48
      %p50 = scmp.ne.s32.totalorder %s39, %s42
      %p51 = scmp.eq.s32.totalorder %s20, 3
      %p52 = por %p50, %p51
      %p53 = scmp.ne.s32.totalorder %s42, %s43
      %p54 = scmp.eq.s32.totalorder %s20, 0
      %p55 = por %p53, %p54
      %p56 = scmp.ne.s32.totalorder %s42, %s43
      %p57 = scmp.eq.s32.totalorder %s21, 3
      %p58 = por %p56, %p57
      %p60 = scmp.ne.s32.totalorder %s43, %s59
      %p61 = scmp.eq.s32.totalorder %s21, 0
      %p62 = por %p60, %p61
      %s63 = ssub.s32 %s23, %s30
      %p64 = scmp.eq.s32.totalorder %s63, 0
      %s66 = sadd.s32 %s65, 1
      %s67 = scalar_select %p64, %s65, %s66
      %p70 = pneg %p64
      %p71 = scmp.eq.s32.totalorder %s15, 3
      %p72 = por %p70, %p71
      %p73 = scmp.ne.s32.totalorder %s65, %s68
      %p74 = scmp.eq.s32.totalorder %s15, 0
      %p75 = por %p73, %p74
      %p76 = scmp.ne.s32.totalorder %s65, %s68
      %p77 = scmp.eq.s32.totalorder %s20, 3
      %p78 = por %p76, %p77
      %p79 = scmp.ne.s32.totalorder %s68, %s69
      %p80 = scmp.eq.s32.totalorder %s20, 0
      %p81 = por %p79, %p80
      %p82 = scmp.ne.s32.totalorder %s68, %s69
      %p83 = scmp.eq.s32.totalorder %s21, 3
      %p84 = por %p82, %p83
      %p86 = scmp.ne.s32.totalorder %s69, %s85
      %p87 = scmp.eq.s32.totalorder %s21, 0
      %p88 = por %p86, %p87
      %s90 = sadd.s32 %s89, 1
      %p93 = scmp.eq.s32.totalorder %s15, 3
      %p94 = scmp.ne.s32.totalorder %s89, %s91
      %p95 = scmp.eq.s32.totalorder %s15, 0
      %p96 = por %p94, %p95
      %p97 = scmp.ne.s32.totalorder %s89, %s91
      %p98 = scmp.eq.s32.totalorder %s20, 3
      %p99 = por %p97, %p98
      %p100 = scmp.ne.s32.totalorder %s91, %s92
      %p101 = scmp.eq.s32.totalorder %s20, 0
      %p102 = por %p100, %p101
      %p103 = scmp.ne.s32.totalorder %s91, %s92
      %p104 = scmp.eq.s32.totalorder %s21, 3
      %p105 = por %p103, %p104
      %p107 = scmp.ne.s32.totalorder %s92, %s106
      %p108 = scmp.eq.s32.totalorder %s21, 0
      %p109 = por %p107, %p108
      %s110 = ssub.s32 %s22, %s34
      %p111 = scmp.eq.s32.totalorder %s110, 0
      %s113 = sadd.s32 %s112, 1
      %s114 = scalar_select %p111, %s112, %s113
      %p117 = pneg %p111
      %p118 = scmp.eq.s32.totalorder %s15, 3
      %p119 = por %p117, %p118
      %p120 = scmp.ne.s32.totalorder %s112, %s115
      %p121 = scmp.eq.s32.totalorder %s15, 0
      %p122 = por %p120, %p121
      %p123 = scmp.ne.s32.totalorder %s112, %s115
      %p124 = scmp.eq.s32.totalorder %s20, 3
      %p125 = por %p123, %p124
      %p126 = scmp.ne.s32.totalorder %s115, %s116
      %p127 = scmp.eq.s32.totalorder %s20, 0
      %p128 = por %p126, %p127
      %p129 = scmp.ne.s32.totalorder %s115, %s116
      %p130 = scmp.eq.s32.totalorder %s21, 3
      %p131 = por %p129, %p130
      %p133 = scmp.ne.s32.totalorder %s116, %s132
      %p134 = scmp.eq.s32.totalorder %s21, 0
      %p135 = por %p133, %p134
      %p136 = scmp.le.s32.totalorder 1, %s15
      %p137 = scmp.lt.s32.totalorder %s15, 5
      %p138 = pnand %p136, %p137
      %p139 = pneg %p138
      // Predicated region
      $region9: #{simple_transformer_forward.2} parent=5 // pred_check
        _
      $region10: #{simple_transformer_forward.2} parent=5 // pred_check_branch
        %141 = sbr.rel (%p138) target = $region12
      $region11: #{simple_transformer_forward.2} parent=5 // pred_region
        %s142 = ssub.s32 %s15, 1
        // Predicated region
        $region13: #{simple_transformer_forward.2} parent=11 // pred_check
          %p143 = pneg %p102
        $region14: #{simple_transformer_forward.2} parent=11 // pred_check_branch
          %145 = sbr.rel (%p143) target = $region16
        $region15: #{simple_transformer_forward.2} parent=11 // pred_region
          _
        $region16: #{simple_transformer_forward.2} parent=11 // pred_fallthru
          _
      $region12: #{simple_transformer_forward.2} parent=5 // pred_fallthru
        _
      %p146 = scmp.lt.s32.totalorder %s15, 4
      // Predicated region
      $region17: #{simple_transformer_forward.2} parent=5 // pred_check
        %p147 = pneg %p146
      $region18: #{simple_transformer_forward.2} parent=5 // pred_check_branch
        %149 = sbr.rel (%p147) target = $region20
      $region19: #{simple_transformer_forward.2} parent=5 // pred_region
        // Predicated region
        $region21: #{simple_transformer_forward.2} parent=19 // pred_check
          %p150 = pneg %p49
        $region22: #{simple_transformer_forward.2} parent=19 // pred_check_branch
          %152 = sbr.rel (%p150) target = $region24
        $region23: #{simple_transformer_forward.2} parent=19 // pred_region
          %s153 = sand.u32 %s39, 1
          %s154 = scalar_lea.sflag [#allocation4], %s153
          %s155 = sand.u32 %s39, 1
          %s156 = smul.addr %s155, 120
          %s157 = scalar_lea.vmem [#allocation3], %s156
          %s158 = smul.u32 5, %s22
          %s159 = smul.u32 3, %s23
          %s160 = ssub.s32 4, %s159
          %p161 = scmp.lt.s32.totalorder %s160, 3
          %s162 = scalar_select %p161, %s160, 3
          %s163 = smul.u32 640, %s162
          %s165 = ssub.s32 1920, %s163
          %166 = vsyncadd %s154, %s165
          %p167 = scmp.ne.s32.totalorder 0, %s163
          %s168 = smul.addr %s158, 4
          %s169 = sadd.s32 %s159, %s168
          %s170 = smul.addr %s169, 128
          %s171 = scalar_lea.hbm %s0, %s170
          %s172 = smul.u32 %s162, 8
          %s173 = smul.u32 %s172, 5
          %s174 = sshll.u32 %s157, 4
          %s175 = int_to_ptr.vmem [resolvable:$true] %s174
          %s176 = sshll.u32 %s173, 4
          %180 = dma.hbm_to_vmem [thread:$0]  (%p167), %s171, %s176, %s175, %s154, 512, 384, %s172
        $region24: #{simple_transformer_forward.2} parent=19 // pred_fallthru
          _
        // Predicated region
        $region25: #{simple_transformer_forward.2} parent=19 // pred_check
          %p181 = pneg %p75
        $region26: #{simple_transformer_forward.2} parent=19 // pred_check_branch
          %183 = sbr.rel (%p181) target = $region28
        $region27: #{simple_transformer_forward.2} parent=19 // pred_region
          %s184 = sand.u32 %s65, 1
          %s185 = scalar_lea.sflag [#allocation6], %s184
          %s186 = sand.u32 %s65, 1
          %s187 = smul.addr %s186, 384
          %s188 = scalar_lea.vmem [#allocation5], %s187
          %s189 = smul.u32 48, %s23
          %s190 = ssub.s32 50, %s189
          %p191 = scmp.lt.s32.totalorder %s190, 48
          %s192 = scalar_select %p191, %s190, 48
          %s193 = smul.u32 128, %s192
          %s195 = ssub.s32 6144, %s193
          %196 = vsyncadd %s185, %s195
          %p197 = scmp.ne.s32.totalorder 0, %s193
          %s198 = smul.addr %s189, 128
          %s199 = scalar_lea.hbm %s1, %s198
          %s200 = smul.u32 8, %s192
          %s201 = sshll.u32 %s188, 4
          %s202 = int_to_ptr.vmem [resolvable:$true] %s201
          %s203 = sshll.u32 %s200, 4
          %207 = dma.hbm_to_vmem [thread:$0]  (%p197), %s199, %s203, %s202, %s185, 128, 128, 8
        $region28: #{simple_transformer_forward.2} parent=19 // pred_fallthru
          _
      $region20: #{simple_transformer_forward.2} parent=5 // pred_fallthru
        _
      %p208 = scmp.le.s32.totalorder 1, %s15
      %p209 = scmp.lt.s32.totalorder %s15, 5
      %p210 = pnand %p208, %p209
      %p211 = pneg %p210
      // Predicated region
      $region29: #{simple_transformer_forward.2} parent=5 // pred_check
        _
      $region30: #{simple_transformer_forward.2} parent=5 // pred_check_branch
        %213 = sbr.rel (%p210) target = $region32
      $region31: #{simple_transformer_forward.2} parent=5 // pred_region
        %s214 = ssub.s32 %s15, 1
        %s215 = sand.u32 %s42, 1
        %s216 = scalar_lea.sflag [#allocation4], %s215
        %s217 = sand.u32 %s42, 1
        %s218 = smul.addr %s217, 120
        %s219 = scalar_lea.vmem [#allocation3], %s218
        // Predicated region
        $region33: #{simple_transformer_forward.2} parent=31 // pred_check
          %p220 = pneg %p55
        $region34: #{simple_transformer_forward.2} parent=31 // pred_check_branch
          %222 = sbr.rel (%p220) target = $region36
        $region35: #{simple_transformer_forward.2} parent=31 // pred_region
          %223 = dma.done %s216, 1920
        $region36: #{simple_transformer_forward.2} parent=31 // pred_fallthru
          _
        %s224 = sand.u32 %s68, 1
        %s225 = scalar_lea.sflag [#allocation6], %s224
        %s226 = sand.u32 %s68, 1
        %s227 = smul.addr %s226, 384
        %s228 = scalar_lea.vmem [#allocation5], %s227
        // Predicated region
        $region37: #{simple_transformer_forward.2} parent=31 // pred_check
          %p229 = pneg %p81
        $region38: #{simple_transformer_forward.2} parent=31 // pred_check_branch
          %231 = sbr.rel (%p229) target = $region40
        $region39: #{simple_transformer_forward.2} parent=31 // pred_region
          %232 = dma.done %s225, 6144
        $region40: #{simple_transformer_forward.2} parent=31 // pred_fallthru
          _
        %s233 = sand.u32 %s42, 1
        %s234 = scalar_lea.sflag [#allocation4], %s233
        %s235 = sand.u32 %s42, 1
        %s236 = smul.addr %s235, 120
        %s237 = scalar_lea.vmem [#allocation3], %s236
        %p238 = pneg %p55
        %p239 = pneg %p52
        %s240 = sand.u32 %s68, 1
        %s241 = scalar_lea.sflag [#allocation6], %s240
        %s242 = sand.u32 %s68, 1
        %s243 = smul.addr %s242, 384
        %s244 = scalar_lea.vmem [#allocation5], %s243
        %p245 = pneg %p81
        %p246 = pneg %p78
        %p247 = pneg %p102
        %p248 = pneg %p99
        %p249 = pneg %p128
        %p250 = pneg %p125
        %s251 = smul.u32 5, %s24
        %p252 = scmp.lt.s32.totalorder %s251, 9
        %s253 = scalar_select %p252, %s251, 9
        %s254 = smul.addr %s253, 8
        %s255 = scalar_lea.vmem %s3, %s254
        %s256 = smul.u32 5, %s24
        %s257 = smul.u32 3, %s25
        %s258 = ssub.s32 4, %s257
        %p259 = scmp.lt.s32.totalorder %s258, 3
        %s260 = scalar_select %p259, %s258, 3
        %s261 = smul.u32 640, %s260
        %s262 = smul.u32 48, %s25
        %s263 = ssub.s32 50, %s262
        %p264 = scmp.lt.s32.totalorder %s263, 48
        %s265 = scalar_select %p264, %s263, 48
        %s266 = smul.u32 128, %s265
        %s267 = smul.u32 5, %s24
        %p268 = scmp.lt.s32.totalorder %s267, 9
        %s269 = scalar_select %p268, %s267, 9
        %s270 = smul.addr %s269, 8
        %s271 = scalar_lea.vmem %s3, %s270
        %s272 = smul.u32 5, %s24
        %p273 = scmp.eq.s32.totalorder %s25, 0
        // Predicated region
        $region41: #{simple_transformer_forward.2} parent=31 // pred_check
          %p274 = pneg %p273
        $region42: #{simple_transformer_forward.2} parent=31 // pred_check_branch
          %276 = sbr.rel (%p274) target = $region44
        $region43: #{simple_transformer_forward.2} parent=31 // pred_region
          %277 = vst [vmem:[#allocation2] sm:$0xff] 0.0
          %278 = vst [vmem:[#allocation2 + $0x8] sm:$0xff] 0.0
          %279 = vst [vmem:[#allocation2 + $0x10] sm:$0xff] 0.0
          %280 = vst [vmem:[#allocation2 + $0x18] sm:$0xff] 0.0
          %281 = vst [vmem:[#allocation2 + $0x20] sm:$0xff] 0.0
        $region44: #{simple_transformer_forward.2} parent=31 // pred_fallthru
          _
        %p282 = scmp.lt.s32.totalorder %s25, 1
        // Predicated region
        $region45: #{simple_transformer_forward.2} parent=31 // pred_check
          %p283 = pneg %p282
        $region46: #{simple_transformer_forward.2} parent=31 // pred_check_branch
          %285 = sbr.rel (%p283) target = $region48
        $region47: #{simple_transformer_forward.2} parent=31 // pred_region
          %v286 = vld [vmem:[#allocation2] sm:$0xff]
          %v287 = vld [vmem:[#allocation2 + $0x8] sm:$0xff]
          %v288 = vld [vmem:[#allocation2 + $0x10] sm:$0xff]
          %v289 = vld [vmem:[#allocation2 + $0x18] sm:$0xff]
          %v290 = vld [vmem:[#allocation2 + $0x20] sm:$0xff]
          %v291 = vld [vmem:[%s219] sm:$0xff]
          %v292 = vld [vmem:[%s219 + $0x8] sm:$0xff]
          %v293 = vld [vmem:[%s219 + $0x10] sm:$0xff]
          %v294 = vld [vmem:[%s219 + $0x18] sm:$0xff]
          %v295 = vld [vmem:[%s219 + $0x20] sm:$0xff]
          %v296 = vld [vmem:[%s219 + $0x28] sm:$0xff]
          %v297 = vld [vmem:[%s219 + $0x30] sm:$0xff]
          %v298 = vld [vmem:[%s219 + $0x38] sm:$0xff]
          %v299 = vld [vmem:[%s219 + $0x40] sm:$0xff]
          %v300 = vld [vmem:[%s219 + $0x48] sm:$0xff]
          %v301 = vld [vmem:[%s219 + $0x50] sm:$0xff]
          %v302 = vld [vmem:[%s219 + $0x58] sm:$0xff]
          %v303 = vld [vmem:[%s219 + $0x60] sm:$0xff]
          %v304 = vld [vmem:[%s219 + $0x68] sm:$0xff]
          %v305 = vld [vmem:[%s219 + $0x70] sm:$0xff]
          %v306 = vld [vmem:[%s228] sm:$0xff]
          %v307 = vld [vmem:[%s228 + $0x8] sm:$0xff]
          %v308 = vld [vmem:[%s228 + $0x10] sm:$0xff]
          %v309 = vld [vmem:[%s228 + $0x18] sm:$0xff]
          %v310 = vld [vmem:[%s228 + $0x20] sm:$0xff]
          %v311 = vld [vmem:[%s228 + $0x28] sm:$0xff]
          %v312 = vld [vmem:[%s228 + $0x30] sm:$0xff]
          %v313 = vld [vmem:[%s228 + $0x38] sm:$0xff]
          %v314 = vld [vmem:[%s228 + $0x40] sm:$0xff]
          %v315 = vld [vmem:[%s228 + $0x48] sm:$0xff]
          %v316 = vld [vmem:[%s228 + $0x50] sm:$0xff]
          %v317 = vld [vmem:[%s228 + $0x58] sm:$0xff]
          %v318 = vld [vmem:[%s228 + $0x60] sm:$0xff]
          %v319 = vld [vmem:[%s228 + $0x68] sm:$0xff]
          %v320 = vld [vmem:[%s228 + $0x70] sm:$0xff]
          %v321 = vld [vmem:[%s228 + $0x78] sm:$0xff]
          %v322 = vld [vmem:[%s228 + $0x80] sm:$0xff]
          %v323 = vld [vmem:[%s228 + $0x88] sm:$0xff]
          %v324 = vld [vmem:[%s228 + $0x90] sm:$0xff]
          %v325 = vld [vmem:[%s228 + $0x98] sm:$0xff]
          %v326 = vld [vmem:[%s228 + $0xa0] sm:$0xff]
          %v327 = vld [vmem:[%s228 + $0xa8] sm:$0xff]
          %v328 = vld [vmem:[%s228 + $0xb0] sm:$0xff]
          %v329 = vld [vmem:[%s228 + $0xb8] sm:$0xff]
          %v330 = vld [vmem:[%s228 + $0xc0] sm:$0xff]
          %v331 = vld [vmem:[%s228 + $0xc8] sm:$0xff]
          %v332 = vld [vmem:[%s228 + $0xd0] sm:$0xff]
          %v333 = vld [vmem:[%s228 + $0xd8] sm:$0xff]
          %v334 = vld [vmem:[%s228 + $0xe0] sm:$0xff]
          %v335 = vld [vmem:[%s228 + $0xe8] sm:$0xff]
          %v336 = vld [vmem:[%s228 + $0xf0] sm:$0xff]
          %v337 = vld [vmem:[%s228 + $0xf8] sm:$0xff]
          %v338 = vld [vmem:[%s228 + $0x100] sm:$0xff]
          %v339 = vld [vmem:[%s228 + $0x108] sm:$0xff]
          %v340 = vld [vmem:[%s228 + $0x110] sm:$0xff]
          %v341 = vld [vmem:[%s228 + $0x118] sm:$0xff]
          %v342 = vld [vmem:[%s228 + $0x120] sm:$0xff]
          %v343 = vld [vmem:[%s228 + $0x128] sm:$0xff]
          %v344 = vld [vmem:[%s228 + $0x130] sm:$0xff]
          %v345 = vld [vmem:[%s228 + $0x138] sm:$0xff]
          %v346 = vld [vmem:[%s228 + $0x140] sm:$0xff]
          %v347 = vld [vmem:[%s228 + $0x148] sm:$0xff]
          %v348 = vld [vmem:[%s228 + $0x150] sm:$0xff]
          %v349 = vld [vmem:[%s228 + $0x158] sm:$0xff]
          %v350 = vld [vmem:[%s228 + $0x160] sm:$0xff]
          %v351 = vld [vmem:[%s228 + $0x168] sm:$0xff]
          %v352 = vld [vmem:[%s228 + $0x170] sm:$0xff]
          %v353 = vld [vmem:[%s228 + $0x178] sm:$0xff]
          %354 = vmatprep.subr.mxu0 0.0
          %355 = vmatpush1.msra.mxu0 %v306
          %356 = vmatprep.subr.mxu0 0.0
          %357 = vmatpush1.msra.mxu0 %v307
          %358 = vmatprep.subr.mxu0 0.0
          %359 = vmatpush1.msra.mxu0 %v308
          %360 = vmatprep.subr.mxu0 0.0
          %361 = vmatpush1.msra.mxu0 %v309
          %362 = vmatprep.subr.mxu0 0.0
          %363 = vmatpush1.msra.mxu0 %v310
          %364 = vmatprep.subr.mxu0 0.0
          %365 = vmatpush1.msra.mxu0 %v311
          %366 = vmatprep.subr.mxu0 0.0
          %367 = vmatpush1.msra.mxu0 %v312
          %368 = vmatprep.subr.mxu0 0.0
          %369 = vmatpush1.msra.mxu0 %v313
          %370 = vmatprep.subr.mxu0 0.0
          %371 = vmatpush1.msra.mxu0 %v314
          %372 = vmatprep.subr.mxu0 0.0
          %373 = vmatpush1.msra.mxu0 %v315
          %374 = vmatprep.subr.mxu0 0.0
          %375 = vmatpush1.msra.mxu0 %v316
          %376 = vmatprep.subr.mxu0 0.0
          %377 = vmatpush1.msra.mxu0 %v317
          %378 = vmatprep.subr.mxu0 0.0
          %379 = vmatpush1.msra.mxu0 %v318
          %380 = vmatprep.subr.mxu0 0.0
          %381 = vmatpush1.msra.mxu0 %v319
          %382 = vmatprep.subr.mxu0 0.0
          %383 = vmatpush1.msra.mxu0 %v320
          %384 = vmatprep.subr.mxu0 0.0
          %385 = vmatpush1.msra.mxu0 %v321
          %386 = vmatprep.subr.mxu0 0.0
          %387 = vmatpush1.msra.mxu0 %v322
          %388 = vmatprep.subr.mxu0 0.0
          %389 = vmatpush1.msra.mxu0 %v323
          %390 = vmatprep.subr.mxu0 0.0
          %391 = vmatpush1.msra.mxu0 %v324
          %392 = vmatprep.subr.mxu0 0.0
          %393 = vmatpush1.msra.mxu0 %v325
          %394 = vmatprep.subr.mxu0 0.0
          %395 = vmatpush1.msra.mxu0 %v326
          %396 = vmatprep.subr.mxu0 0.0
          %397 = vmatpush1.msra.mxu0 %v327
          %398 = vmatprep.subr.mxu0 0.0
          %399 = vmatpush1.msra.mxu0 %v328
          %400 = vmatprep.subr.mxu0 0.0
          %401 = vmatpush1.msra.mxu0 %v329
          %402 = vmatprep.subr.mxu0 0.0
          %403 = vmatpush1.msra.mxu0 %v330
          %404 = vmatprep.subr.mxu0 0.0
          %405 = vmatpush1.msra.mxu0 %v331
          %406 = vmatprep.subr.mxu0 0.0
          %407 = vmatpush1.msra.mxu0 %v332
          %408 = vmatprep.subr.mxu0 0.0
          %409 = vmatpush1.msra.mxu0 %v333
          %410 = vmatprep.subr.mxu0 0.0
          %411 = vmatpush1.msra.mxu0 %v334
          %412 = vmatprep.subr.mxu0 0.0
          %413 = vmatpush1.msra.mxu0 %v335
          %414 = vmatprep.subr.mxu0 0.0
          %415 = vmatpush1.msra.mxu0 %v336
          %416 = vmatprep.subr.mxu0 0.0
          %417 = vmatpush1.msra.mxu0 %v337
          %418 = vmatprep.mubr.f32.mxu0 %v292
          %419 = vmatmul.mubr.f32.gmra.mrb[0].mxu0 %v291
          %v420 = vpop.f32.mrb[0].mxu0
          %v421 = vadd.f32 0.0, %v420
          %v422 = vpop.f32.mrb[0].mxu0
          %423 = vmatprep.mubr.f32.mxu0 %v295
          %424 = vmatmul.mubr.f32.gmra.mrb[0].mxu0 %v294
          %v425 = vpop.f32.mrb[0].mxu0
          %v426 = vadd.f32 0.0, %v425
          %v427 = vpop.f32.mrb[0].mxu0
          %428 = vmatprep.mubr.f32.mxu0 %v298
          %429 = vmatmul.mubr.f32.gmra.mrb[0].mxu0 %v297
          %v430 = vpop.f32.mrb[0].mxu0
          %v431 = vadd.f32 0.0, %v430
          %v432 = vpop.f32.mrb[0].mxu0
          %433 = vmatprep.mubr.f32.mxu0 %v301
          %434 = vmatmul.mubr.f32.gmra.mrb[0].mxu0 %v300
          %v435 = vpop.f32.mrb[0].mxu0
          %v436 = vadd.f32 0.0, %v435
          %v437 = vpop.f32.mrb[0].mxu0
          %438 = vmatprep.mubr.f32.mxu0 %v304
          %439 = vmatmul.mubr.f32.gmra.mrb[0].mxu0 %v303
          %v440 = vpop.f32.mrb[0].mxu0
          %v441 = vadd.f32 0.0, %v440
          %v442 = vpop.f32.mrb[0].mxu0
          %443 = vdwg.mxu0
          %444 = vmatprep.subr.mxu0 0.0
          %445 = vmatpush1.msra.mxu0 %v338
          %446 = vmatprep.subr.mxu0 0.0
          %447 = vmatpush1.msra.mxu0 %v339
          %448 = vmatprep.subr.mxu0 0.0
          %449 = vmatpush1.msra.mxu0 %v340
          %450 = vmatprep.subr.mxu0 0.0
          %451 = vmatpush1.msra.mxu0 %v341
          %452 = vmatprep.subr.mxu0 0.0
          %453 = vmatpush1.msra.mxu0 %v342
          %454 = vmatprep.subr.mxu0 0.0
          %455 = vmatpush1.msra.mxu0 %v343
          %456 = vmatprep.subr.mxu0 0.0
          %457 = vmatpush1.msra.mxu0 %v344
          %458 = vmatprep.subr.mxu0 0.0
          %459 = vmatpush1.msra.mxu0 %v345
          %460 = vmatprep.subr.mxu0 0.0
          %461 = vmatpush1.msra.mxu0 %v346
          %462 = vmatprep.subr.mxu0 0.0
          %463 = vmatpush1.msra.mxu0 %v347
          %464 = vmatprep.subr.mxu0 0.0
          %465 = vmatpush1.msra.mxu0 %v348
          %466 = vmatprep.subr.mxu0 0.0
          %467 = vmatpush1.msra.mxu0 %v349
          %468 = vmatprep.subr.mxu0 0.0
          %469 = vmatpush1.msra.mxu0 %v350
          %470 = vmatprep.subr.mxu0 0.0
          %471 = vmatpush1.msra.mxu0 %v351
          %472 = vmatprep.subr.mxu0 0.0
          %473 = vmatpush1.msra.mxu0 %v352
          %474 = vmatprep.subr.mxu0 0.0
          %475 = vmatpush1.msra.mxu0 %v353
          %476 = vmatprep.subr.mxu0 0.0
          %477 = vmatpush1.msra.mxu0 0.0
          %478 = vmatprep.subr.mxu0 0.0
          %479 = vmatpush1.msra.mxu0 0.0
          %480 = vmatprep.subr.mxu0 0.0
          %481 = vmatpush1.msra.mxu0 0.0
          %482 = vmatprep.subr.mxu0 0.0
          %483 = vmatpush1.msra.mxu0 0.0
          %484 = vmatprep.subr.mxu0 0.0
          %485 = vmatpush1.msra.mxu0 0.0
          %486 = vmatprep.subr.mxu0 0.0
          %487 = vmatpush1.msra.mxu0 0.0
          %488 = vmatprep.subr.mxu0 0.0
          %489 = vmatpush1.msra.mxu0 0.0
          %490 = vmatprep.subr.mxu0 0.0
          %491 = vmatpush1.msra.mxu0 0.0
          %492 = vmatprep.subr.mxu0 0.0
          %493 = vmatpush1.msra.mxu0 0.0
          %494 = vmatprep.subr.mxu0 0.0
          %495 = vmatpush1.msra.mxu0 0.0
          %496 = vmatprep.subr.mxu0 0.0
          %497 = vmatpush1.msra.mxu0 0.0
          %498 = vmatprep.subr.mxu0 0.0
          %499 = vmatpush1.msra.mxu0 0.0
          %500 = vmatprep.subr.mxu0 0.0
          %501 = vmatpush1.msra.mxu0 0.0
          %502 = vmatprep.subr.mxu0 0.0
          %503 = vmatpush1.msra.mxu0 0.0
          %504 = vmatprep.subr.mxu0 0.0
          %505 = vmatpush1.msra.mxu0 0.0
          %506 = vmatprep.subr.mxu0 0.0
          %507 = vmatpush1.msra.mxu0 0.0
          %508 = vmatprep.mubr.f32.mxu0 0.0
          %509 = vmatmul.mubr.f32.gmra.mrb[0].mxu0 %v293
          %v510 = vpop.f32.mrb[0].mxu0
          %v511 = vadd.f32 %v421, %v510
          %v512 = vpop.f32.mrb[0].mxu0
          %513 = vmatprep.mubr.f32.mxu0 0.0
          %514 = vmatmul.mubr.f32.gmra.mrb[0].mxu0 %v296
          %v515 = vpop.f32.mrb[0].mxu0
          %v516 = vadd.f32 %v426, %v515
          %v517 = vpop.f32.mrb[0].mxu0
          %518 = vmatprep.mubr.f32.mxu0 0.0
          %519 = vmatmul.mubr.f32.gmra.mrb[0].mxu0 %v299
          %v520 = vpop.f32.mrb[0].mxu0
          %v521 = vadd.f32 %v431, %v520
          %v522 = vpop.f32.mrb[0].mxu0
          %523 = vmatprep.mubr.f32.mxu0 0.0
          %524 = vmatmul.mubr.f32.gmra.mrb[0].mxu0 %v302
          %v525 = vpop.f32.mrb[0].mxu0
          %v526 = vadd.f32 %v436, %v525
          %v527 = vpop.f32.mrb[0].mxu0
          %528 = vmatprep.mubr.f32.mxu0 0.0
          %529 = vmatmul.mubr.f32.gmra.mrb[0].mxu0 %v305
          %v530 = vpop.f32.mrb[0].mxu0
          %v531 = vadd.f32 %v441, %v530
          %v532 = vpop.f32.mrb[0].mxu0
          %533 = vdwg.mxu0
          %v534 = vadd.f32 %v286, %v511
          %v535 = vadd.f32 %v287, %v516
          %v536 = vadd.f32 %v288, %v521
          %v537 = vadd.f32 %v289, %v526
          %v538 = vadd.f32 %v290, %v531
          %539 = vst [vmem:[#allocation2] sm:$0xff] %v534
          %540 = vst [vmem:[#allocation2 + $0x8] sm:$0xff] %v535
          %541 = vst [vmem:[#allocation2 + $0x10] sm:$0xff] %v536
          %542 = vst [vmem:[#allocation2 + $0x18] sm:$0xff] %v537
          %543 = vst [vmem:[#allocation2 + $0x20] sm:$0xff] %v538
        $region48: #{simple_transformer_forward.2} parent=31 // pred_fallthru
          _
        %p544 = scmp.eq.s32.totalorder %s25, 1
        // Predicated region
        $region49: #{simple_transformer_forward.2} parent=31 // pred_check
          %p545 = pneg %p544
        $region50: #{simple_transformer_forward.2} parent=31 // pred_check_branch
          %547 = sbr.rel (%p545) target = $region52
        $region51: #{simple_transformer_forward.2} parent=31 // pred_region
          %v548 = vld [vmem:[%s219] sm:$0xff]
          %v549 = vld [vmem:[%s219 + $0x8] sm:$0xff]
          %v550 = vld [vmem:[%s219 + $0x10] sm:$0xff]
          %v551 = vld [vmem:[%s219 + $0x18] sm:$0xff]
          %v552 = vld [vmem:[%s219 + $0x20] sm:$0xff]
          %v553 = vld [vmem:[%s219 + $0x28] sm:$0xff]
          %v554 = vld [vmem:[%s219 + $0x30] sm:$0xff]
          %v555 = vld [vmem:[%s219 + $0x38] sm:$0xff]
          %v556 = vld [vmem:[%s219 + $0x40] sm:$0xff]
          %v557 = vld [vmem:[%s219 + $0x48] sm:$0xff]
          %v558 = vld [vmem:[%s219 + $0x50] sm:$0xff]
          %v559 = vld [vmem:[%s219 + $0x58] sm:$0xff]
          %v560 = vld [vmem:[%s219 + $0x60] sm:$0xff]
          %v561 = vld [vmem:[%s219 + $0x68] sm:$0xff]
          %v562 = vld [vmem:[%s219 + $0x70] sm:$0xff]
          %v563 = vld [vmem:[%s228] sm:$0xff]
          %v564 = vld [vmem:[%s228 + $0x8] sm:$0xff]
          %v565 = vld [vmem:[%s228 + $0x10] sm:$0xff]
          %v566 = vld [vmem:[%s228 + $0x18] sm:$0xff]
          %v567 = vld [vmem:[%s228 + $0x20] sm:$0xff]
          %v568 = vld [vmem:[%s228 + $0x28] sm:$0xff]
          %v569 = vld [vmem:[%s228 + $0x30] sm:$0xff]
          %v570 = vld [vmem:[%s228 + $0x38] sm:$0xff]
          %v571 = vld [vmem:[%s228 + $0x40] sm:$0xff]
          %v572 = vld [vmem:[%s228 + $0x48] sm:$0xff]
          %v573 = vld [vmem:[%s228 + $0x50] sm:$0xff]
          %v574 = vld [vmem:[%s228 + $0x58] sm:$0xff]
          %v575 = vld [vmem:[%s228 + $0x60] sm:$0xff]
          %v576 = vld [vmem:[%s228 + $0x68] sm:$0xff]
          %v577 = vld [vmem:[%s228 + $0x70] sm:$0xff]
          %v578 = vld [vmem:[%s228 + $0x78] sm:$0xff]
          %v579 = vld [vmem:[%s228 + $0x80] sm:$0xff]
          %v580 = vld [vmem:[%s228 + $0x88] sm:$0xff]
          %v581 = vld [vmem:[%s228 + $0x90] sm:$0xff]
          %v582 = vld [vmem:[%s228 + $0x98] sm:$0xff]
          %v583 = vld [vmem:[%s228 + $0xa0] sm:$0xff]
          %v584 = vld [vmem:[%s228 + $0xa8] sm:$0xff]
          %v585 = vld [vmem:[%s228 + $0xb0] sm:$0xff]
          %v586 = vld [vmem:[%s228 + $0xb8] sm:$0xff]
          %v587 = vld [vmem:[%s228 + $0xc0] sm:$0xff]
          %v588 = vld [vmem:[%s228 + $0xc8] sm:$0xff]
          %v589 = vld [vmem:[%s228 + $0xd0] sm:$0xff]
          %v590 = vld [vmem:[%s228 + $0xd8] sm:$0xff]
          %v591 = vld [vmem:[%s228 + $0xe0] sm:$0xff]
          %v592 = vld [vmem:[%s228 + $0xe8] sm:$0xff]
          %v593 = vld [vmem:[%s228 + $0xf0] sm:$0xff]
          %v594 = vld [vmem:[%s228 + $0xf8] sm:$0xff]
          %v595 = vld [vmem:[%s228 + $0x100] sm:$0xff]
          %v596 = vld [vmem:[%s228 + $0x108] sm:$0xff]
          %v597 = vld [vmem:[%s228 + $0x110] sm:$0xff]
          %v598 = vld [vmem:[%s228 + $0x118] sm:$0xff]
          %v599 = vld [vmem:[%s228 + $0x120] sm:$0xff]
          %v600 = vld [vmem:[%s228 + $0x128] sm:$0xff]
          %v601 = vld [vmem:[%s228 + $0x130] sm:$0xff]
          %v602 = vld [vmem:[%s228 + $0x138] sm:$0xff]
          %v603 = vld [vmem:[%s228 + $0x140] sm:$0xff]
          %v604 = vld [vmem:[%s228 + $0x148] sm:$0xff]
          %v605 = vld [vmem:[%s228 + $0x150] sm:$0xff]
          %v606 = vld [vmem:[%s228 + $0x158] sm:$0xff]
          %v607 = vld [vmem:[%s228 + $0x160] sm:$0xff]
          %v608 = vld [vmem:[%s228 + $0x168] sm:$0xff]
          %v609 = vld [vmem:[%s228 + $0x170] sm:$0xff]
          %v610 = vld [vmem:[%s228 + $0x178] sm:$0xff]
          %v611 = vlaneseq
          %v612 = vand.u32 %v611, 127
          %v613 = vadd.s32 %v612, 128
          %v614 = vadd.s32 %v612, 256
          %v615 = vlaneseq
          %v616 = vshrl.u32 %v615, 7
          %v617 = vadd.s32 %v616, 8
          %v618 = vadd.s32 %v616, 16
          %v619 = vadd.s32 %v616, 24
          %v620 = vadd.s32 %v616, 32
          %v621 = vadd.s32 %v616, 40
          %v622 = vadd.s32 %v616, 48
          %v623 = vadd.s32 %v616, 56
          %v624 = vadd.s32 %v616, 64
          %v625 = vadd.s32 %v616, 72
          %v626 = vadd.s32 %v616, 80
          %v627 = vadd.s32 %v616, 88
          %v628 = vadd.s32 %v616, 96
          %v629 = vadd.s32 %v616, 104
          %v630 = vadd.s32 %v616, 112
          %v631 = vadd.s32 %v616, 120
          %v632 = vadd.s32 %v616, 128
          %v633 = vadd.s32 %v616, 136
          %v634 = vadd.s32 %v616, 144
          %v635 = vadd.s32 %v616, 152
          %v636 = vadd.s32 %v616, 160
          %v637 = vadd.s32 %v616, 168
          %v638 = vadd.s32 %v616, 176
          %v639 = vadd.s32 %v616, 184
          %v640 = vadd.s32 %v616, 192
          %v641 = vadd.s32 %v616, 200
          %v642 = vadd.s32 %v616, 208
          %v643 = vadd.s32 %v616, 216
          %v644 = vadd.s32 %v616, 224
          %v645 = vadd.s32 %v616, 232
          %v646 = vadd.s32 %v616, 240
          %v647 = vadd.s32 %v616, 248
          %v648 = vadd.s32 %v616, 256
          %v649 = vadd.s32 %v616, 264
          %v650 = vadd.s32 %v616, 272
          %v651 = vadd.s32 %v616, 280
          %v652 = vadd.s32 %v616, 288
          %v653 = vadd.s32 %v616, 296
          %v654 = vadd.s32 %v616, 304
          %v655 = vadd.s32 %v616, 312
          %v656 = vadd.s32 %v616, 320
          %v657 = vadd.s32 %v616, 328
          %v658 = vadd.s32 %v616, 336
          %v659 = vadd.s32 %v616, 344
          %v660 = vadd.s32 %v616, 352
          %v661 = vadd.s32 %v616, 360
          %v662 = vadd.s32 %v616, 368
          %v663 = vadd.s32 %v616, 376
          %vm664 = vcmp.lt.s32.totalorder %v612, 16
          %vm665 = vcmp.lt.s32.totalorder %v613, 16
          %vm666 = vcmp.lt.s32.totalorder %v614, 16
          %v667 = vsel %vm664, %v548, 0.0
          %v668 = vsel %vm665, %v549, 0.0
          %v669 = vsel %vm666, %v550, 0.0
          %v670 = vsel %vm664, %v551, 0.0
          %v671 = vsel %vm665, %v552, 0.0
          %v672 = vsel %vm666, %v553, 0.0
          %v673 = vsel %vm664, %v554, 0.0
          %v674 = vsel %vm665, %v555, 0.0
          %v675 = vsel %vm666, %v556, 0.0
          %v676 = vsel %vm664, %v557, 0.0
          %v677 = vsel %vm665, %v558, 0.0
          %v678 = vsel %vm666, %v559, 0.0
          %v679 = vsel %vm664, %v560, 0.0
          %v680 = vsel %vm665, %v561, 0.0
          %v681 = vsel %vm666, %v562, 0.0
          %vm682 = vcmp.lt.s32.totalorder %v616, 16
          %vm683 = vcmp.lt.s32.totalorder %v617, 16
          %vm684 = vcmp.lt.s32.totalorder %v618, 16
          %vm685 = vcmp.lt.s32.totalorder %v619, 16
          %vm686 = vcmp.lt.s32.totalorder %v620, 16
          %vm687 = vcmp.lt.s32.totalorder %v621, 16
          %vm688 = vcmp.lt.s32.totalorder %v622, 16
          %vm689 = vcmp.lt.s32.totalorder %v623, 16
          %vm690 = vcmp.lt.s32.totalorder %v624, 16
          %vm691 = vcmp.lt.s32.totalorder %v625, 16
          %vm692 = vcmp.lt.s32.totalorder %v626, 16
          %vm693 = vcmp.lt.s32.totalorder %v627, 16
          %vm694 = vcmp.lt.s32.totalorder %v628, 16
          %vm695 = vcmp.lt.s32.totalorder %v629, 16
          %vm696 = vcmp.lt.s32.totalorder %v630, 16
          %vm697 = vcmp.lt.s32.totalorder %v631, 16
          %vm698 = vcmp.lt.s32.totalorder %v632, 16
          %vm699 = vcmp.lt.s32.totalorder %v633, 16
          %vm700 = vcmp.lt.s32.totalorder %v634, 16
          %vm701 = vcmp.lt.s32.totalorder %v635, 16
          %vm702 = vcmp.lt.s32.totalorder %v636, 16
          %vm703 = vcmp.lt.s32.totalorder %v637, 16
          %vm704 = vcmp.lt.s32.totalorder %v638, 16
          %vm705 = vcmp.lt.s32.totalorder %v639, 16
          %vm706 = vcmp.lt.s32.totalorder %v640, 16
          %vm707 = vcmp.lt.s32.totalorder %v641, 16
          %vm708 = vcmp.lt.s32.totalorder %v642, 16
          %vm709 = vcmp.lt.s32.totalorder %v643, 16
          %vm710 = vcmp.lt.s32.totalorder %v644, 16
          %vm711 = vcmp.lt.s32.totalorder %v645, 16
          %vm712 = vcmp.lt.s32.totalorder %v646, 16
          %vm713 = vcmp.lt.s32.totalorder %v647, 16
          %vm714 = vcmp.lt.s32.totalorder %v648, 16
          %vm715 = vcmp.lt.s32.totalorder %v649, 16
          %vm716 = vcmp.lt.s32.totalorder %v650, 16
          %vm717 = vcmp.lt.s32.totalorder %v651, 16
          %vm718 = vcmp.lt.s32.totalorder %v652, 16
          %vm719 = vcmp.lt.s32.totalorder %v653, 16
          %vm720 = vcmp.lt.s32.totalorder %v654, 16
          %vm721 = vcmp.lt.s32.totalorder %v655, 16
          %vm722 = vcmp.lt.s32.totalorder %v656, 16
          %vm723 = vcmp.lt.s32.totalorder %v657, 16
          %vm724 = vcmp.lt.s32.totalorder %v658, 16
          %vm725 = vcmp.lt.s32.totalorder %v659, 16
          %vm726 = vcmp.lt.s32.totalorder %v660, 16
          %vm727 = vcmp.lt.s32.totalorder %v661, 16
          %vm728 = vcmp.lt.s32.totalorder %v662, 16
          %vm729 = vcmp.lt.s32.totalorder %v663, 16
          %v730 = vsel %vm682, %v563, 0.0
          %v731 = vsel %vm683, %v564, 0.0
          %v732 = vsel %vm684, %v565, 0.0
          %v733 = vsel %vm685, %v566, 0.0
          %v734 = vsel %vm686, %v567, 0.0
          %v735 = vsel %vm687, %v568, 0.0
          %v736 = vsel %vm688, %v569, 0.0
          %v737 = vsel %vm689, %v570, 0.0
          %v738 = vsel %vm690, %v571, 0.0
          %v739 = vsel %vm691, %v572, 0.0
          %v740 = vsel %vm692, %v573, 0.0
          %v741 = vsel %vm693, %v574, 0.0
          %v742 = vsel %vm694, %v575, 0.0
          %v743 = vsel %vm695, %v576, 0.0
          %v744 = vsel %vm696, %v577, 0.0
          %v745 = vsel %vm697, %v578, 0.0
          %v746 = vsel %vm698, %v579, 0.0
          %v747 = vsel %vm699, %v580, 0.0
          %v748 = vsel %vm700, %v581, 0.0
          %v749 = vsel %vm701, %v582, 0.0
          %v750 = vsel %vm702, %v583, 0.0
          %v751 = vsel %vm703, %v584, 0.0
          %v752 = vsel %vm704, %v585, 0.0
          %v753 = vsel %vm705, %v586, 0.0
          %v754 = vsel %vm706, %v587, 0.0
          %v755 = vsel %vm707, %v588, 0.0
          %v756 = vsel %vm708, %v589, 0.0
          %v757 = vsel %vm709, %v590, 0.0
          %v758 = vsel %vm710, %v591, 0.0
          %v759 = vsel %vm711, %v592, 0.0
          %v760 = vsel %vm712, %v593, 0.0
          %v761 = vsel %vm713, %v594, 0.0
          %v762 = vsel %vm714, %v595, 0.0
          %v763 = vsel %vm715, %v596, 0.0
          %v764 = vsel %vm716, %v597, 0.0
          %v765 = vsel %vm717, %v598, 0.0
          %v766 = vsel %vm718, %v599, 0.0
          %v767 = vsel %vm719, %v600, 0.0
          %v768 = vsel %vm720, %v601, 0.0
          %v769 = vsel %vm721, %v602, 0.0
          %v770 = vsel %vm722, %v603, 0.0
          %v771 = vsel %vm723, %v604, 0.0
          %v772 = vsel %vm724, %v605, 0.0
          %v773 = vsel %vm725, %v606, 0.0
          %v774 = vsel %vm726, %v607, 0.0
          %v775 = vsel %vm727, %v608, 0.0
          %v776 = vsel %vm728, %v609, 0.0
          %v777 = vsel %vm729, %v610, 0.0
          %v778 = vld [vmem:[#allocation2] sm:$0xff]
          %v779 = vld [vmem:[#allocation2 + $0x8] sm:$0xff]
          %v780 = vld [vmem:[#allocation2 + $0x10] sm:$0xff]
          %v781 = vld [vmem:[#allocation2 + $0x18] sm:$0xff]
          %v782 = vld [vmem:[#allocation2 + $0x20] sm:$0xff]
          %783 = vmatprep.subr.mxu0 0.0
          %784 = vmatpush1.msra.mxu0 %v730
          %785 = vmatprep.subr.mxu0 0.0
          %786 = vmatpush1.msra.mxu0 %v731
          %787 = vmatprep.subr.mxu0 0.0
          %788 = vmatpush1.msra.mxu0 %v732
          %789 = vmatprep.subr.mxu0 0.0
          %790 = vmatpush1.msra.mxu0 %v733
          %791 = vmatprep.subr.mxu0 0.0
          %792 = vmatpush1.msra.mxu0 %v734
          %793 = vmatprep.subr.mxu0 0.0
          %794 = vmatpush1.msra.mxu0 %v735
          %795 = vmatprep.subr.mxu0 0.0
          %796 = vmatpush1.msra.mxu0 %v736
          %797 = vmatprep.subr.mxu0 0.0
          %798 = vmatpush1.msra.mxu0 %v737
          %799 = vmatprep.subr.mxu0 0.0
          %800 = vmatpush1.msra.mxu0 %v738
          %801 = vmatprep.subr.mxu0 0.0
          %802 = vmatpush1.msra.mxu0 %v739
          %803 = vmatprep.subr.mxu0 0.0
          %804 = vmatpush1.msra.mxu0 %v740
          %805 = vmatprep.subr.mxu0 0.0
          %806 = vmatpush1.msra.mxu0 %v741
          %807 = vmatprep.subr.mxu0 0.0
          %808 = vmatpush1.msra.mxu0 %v742
          %809 = vmatprep.subr.mxu0 0.0
          %810 = vmatpush1.msra.mxu0 %v743
          %811 = vmatprep.subr.mxu0 0.0
          %812 = vmatpush1.msra.mxu0 %v744
          %813 = vmatprep.subr.mxu0 0.0
          %814 = vmatpush1.msra.mxu0 %v745
          %815 = vmatprep.subr.mxu0 0.0
          %816 = vmatpush1.msra.mxu0 %v746
          %817 = vmatprep.subr.mxu0 0.0
          %818 = vmatpush1.msra.mxu0 %v747
          %819 = vmatprep.subr.mxu0 0.0
          %820 = vmatpush1.msra.mxu0 %v748
          %821 = vmatprep.subr.mxu0 0.0
          %822 = vmatpush1.msra.mxu0 %v749
          %823 = vmatprep.subr.mxu0 0.0
          %824 = vmatpush1.msra.mxu0 %v750
          %825 = vmatprep.subr.mxu0 0.0
          %826 = vmatpush1.msra.mxu0 %v751
          %827 = vmatprep.subr.mxu0 0.0
          %828 = vmatpush1.msra.mxu0 %v752
          %829 = vmatprep.subr.mxu0 0.0
          %830 = vmatpush1.msra.mxu0 %v753
          %831 = vmatprep.subr.mxu0 0.0
          %832 = vmatpush1.msra.mxu0 %v754
          %833 = vmatprep.subr.mxu0 0.0
          %834 = vmatpush1.msra.mxu0 %v755
          %835 = vmatprep.subr.mxu0 0.0
          %836 = vmatpush1.msra.mxu0 %v756
          %837 = vmatprep.subr.mxu0 0.0
          %838 = vmatpush1.msra.mxu0 %v757
          %839 = vmatprep.subr.mxu0 0.0
          %840 = vmatpush1.msra.mxu0 %v758
          %841 = vmatprep.subr.mxu0 0.0
          %842 = vmatpush1.msra.mxu0 %v759
          %843 = vmatprep.subr.mxu0 0.0
          %844 = vmatpush1.msra.mxu0 %v760
          %845 = vmatprep.subr.mxu0 0.0
          %846 = vmatpush1.msra.mxu0 %v761
          %847 = vmatprep.mubr.f32.mxu0 %v668
          %848 = vmatmul.mubr.f32.gmra.mrb[0].mxu0 %v667
          %v849 = vpop.f32.mrb[0].mxu0
          %v850 = vadd.f32 0.0, %v849
          %v851 = vpop.f32.mrb[0].mxu0
          %852 = vmatprep.mubr.f32.mxu0 %v671
          %853 = vmatmul.mubr.f32.gmra.mrb[0].mxu0 %v670
          %v854 = vpop.f32.mrb[0].mxu0
          %v855 = vadd.f32 0.0, %v854
          %v856 = vpop.f32.mrb[0].mxu0
          %857 = vmatprep.mubr.f32.mxu0 %v674
          %858 = vmatmul.mubr.f32.gmra.mrb[0].mxu0 %v673
          %v859 = vpop.f32.mrb[0].mxu0
          %v860 = vadd.f32 0.0, %v859
          %v861 = vpop.f32.mrb[0].mxu0
          %862 = vmatprep.mubr.f32.mxu0 %v677
          %863 = vmatmul.mubr.f32.gmra.mrb[0].mxu0 %v676
          %v864 = vpop.f32.mrb[0].mxu0
          %v865 = vadd.f32 0.0, %v864
          %v866 = vpop.f32.mrb[0].mxu0
          %867 = vmatprep.mubr.f32.mxu0 %v680
          %868 = vmatmul.mubr.f32.gmra.mrb[0].mxu0 %v679
          %v869 = vpop.f32.mrb[0].mxu0
          %v870 = vadd.f32 0.0, %v869
          %v871 = vpop.f32.mrb[0].mxu0
          %872 = vdwg.mxu0
          %873 = vmatprep.subr.mxu0 0.0
          %874 = vmatpush1.msra.mxu0 %v762
          %875 = vmatprep.subr.mxu0 0.0
          %876 = vmatpush1.msra.mxu0 %v763
          %877 = vmatprep.subr.mxu0 0.0
          %878 = vmatpush1.msra.mxu0 %v764
          %879 = vmatprep.subr.mxu0 0.0
          %880 = vmatpush1.msra.mxu0 %v765
          %881 = vmatprep.subr.mxu0 0.0
          %882 = vmatpush1.msra.mxu0 %v766
          %883 = vmatprep.subr.mxu0 0.0
          %884 = vmatpush1.msra.mxu0 %v767
          %885 = vmatprep.subr.mxu0 0.0
          %886 = vmatpush1.msra.mxu0 %v768
          %887 = vmatprep.subr.mxu0 0.0
          %888 = vmatpush1.msra.mxu0 %v769
          %889 = vmatprep.subr.mxu0 0.0
          %890 = vmatpush1.msra.mxu0 %v770
          %891 = vmatprep.subr.mxu0 0.0
          %892 = vmatpush1.msra.mxu0 %v771
          %893 = vmatprep.subr.mxu0 0.0
          %894 = vmatpush1.msra.mxu0 %v772
          %895 = vmatprep.subr.mxu0 0.0
          %896 = vmatpush1.msra.mxu0 %v773
          %897 = vmatprep.subr.mxu0 0.0
          %898 = vmatpush1.msra.mxu0 %v774
          %899 = vmatprep.subr.mxu0 0.0
          %900 = vmatpush1.msra.mxu0 %v775
          %901 = vmatprep.subr.mxu0 0.0
          %902 = vmatpush1.msra.mxu0 %v776
          %903 = vmatprep.subr.mxu0 0.0
          %904 = vmatpush1.msra.mxu0 %v777
          %905 = vmatprep.subr.mxu0 0.0
          %906 = vmatpush1.msra.mxu0 0.0
          %907 = vmatprep.subr.mxu0 0.0
          %908 = vmatpush1.msra.mxu0 0.0
          %909 = vmatprep.subr.mxu0 0.0
          %910 = vmatpush1.msra.mxu0 0.0
          %911 = vmatprep.subr.mxu0 0.0
          %912 = vmatpush1.msra.mxu0 0.0
          %913 = vmatprep.subr.mxu0 0.0
          %914 = vmatpush1.msra.mxu0 0.0
          %915 = vmatprep.subr.mxu0 0.0
          %916 = vmatpush1.msra.mxu0 0.0
          %917 = vmatprep.subr.mxu0 0.0
          %918 = vmatpush1.msra.mxu0 0.0
          %919 = vmatprep.subr.mxu0 0.0
          %920 = vmatpush1.msra.mxu0 0.0
          %921 = vmatprep.subr.mxu0 0.0
          %922 = vmatpush1.msra.mxu0 0.0
          %923 = vmatprep.subr.mxu0 0.0
          %924 = vmatpush1.msra.mxu0 0.0
          %925 = vmatprep.subr.mxu0 0.0
          %926 = vmatpush1.msra.mxu0 0.0
          %927 = vmatprep.subr.mxu0 0.0
          %928 = vmatpush1.msra.mxu0 0.0
          %929 = vmatprep.subr.mxu0 0.0
          %930 = vmatpush1.msra.mxu0 0.0
          %931 = vmatprep.subr.mxu0 0.0
          %932 = vmatpush1.msra.mxu0 0.0
          %933 = vmatprep.subr.mxu0 0.0
          %934 = vmatpush1.msra.mxu0 0.0
          %935 = vmatprep.subr.mxu0 0.0
          %936 = vmatpush1.msra.mxu0 0.0
          %937 = vmatprep.mubr.f32.mxu0 0.0
          %938 = vmatmul.mubr.f32.gmra.mrb[0].mxu0 %v669
          %v939 = vpop.f32.mrb[0].mxu0
          %v940 = vadd.f32 %v850, %v939
          %v941 = vpop.f32.mrb[0].mxu0
          %942 = vmatprep.mubr.f32.mxu0 0.0
          %943 = vmatmul.mubr.f32.gmra.mrb[0].mxu0 %v672
          %v944 = vpop.f32.mrb[0].mxu0
          %v945 = vadd.f32 %v855, %v944
          %v946 = vpop.f32.mrb[0].mxu0
          %947 = vmatprep.mubr.f32.mxu0 0.0
          %948 = vmatmul.mubr.f32.gmra.mrb[0].mxu0 %v675
          %v949 = vpop.f32.mrb[0].mxu0
          %v950 = vadd.f32 %v860, %v949
          %v951 = vpop.f32.mrb[0].mxu0
          %952 = vmatprep.mubr.f32.mxu0 0.0
          %953 = vmatmul.mubr.f32.gmra.mrb[0].mxu0 %v678
          %v954 = vpop.f32.mrb[0].mxu0
          %v955 = vadd.f32 %v865, %v954
          %v956 = vpop.f32.mrb[0].mxu0
          %957 = vmatprep.mubr.f32.mxu0 0.0
          %958 = vmatmul.mubr.f32.gmra.mrb[0].mxu0 %v681
          %v959 = vpop.f32.mrb[0].mxu0
          %v960 = vadd.f32 %v870, %v959
          %v961 = vpop.f32.mrb[0].mxu0
          %962 = vdwg.mxu0
          %v963 = vadd.f32 %v778, %v940
          %v964 = vadd.f32 %v779, %v945
          %v965 = vadd.f32 %v780, %v950
          %v966 = vadd.f32 %v781, %v955
          %v967 = vadd.f32 %v782, %v960
          %968 = vst [vmem:[#allocation2] sm:$0xff] %v963
          %969 = vst [vmem:[#allocation2 + $0x8] sm:$0xff] %v964
          %970 = vst [vmem:[#allocation2 + $0x10] sm:$0xff] %v965
          %971 = vst [vmem:[#allocation2 + $0x18] sm:$0xff] %v966
          %972 = vst [vmem:[#allocation2 + $0x20] sm:$0xff] %v967
          %v973 = vld [vmem:[%s2] sm:$0x3]
          %v974 = vld [vmem:[#allocation2] sm:$0xff]
          %v975 = vld [vmem:[#allocation2 + $0x8] sm:$0xff]
          %v976 = vld [vmem:[#allocation2 + $0x10] sm:$0xff]
          %v977 = vld [vmem:[#allocation2 + $0x18] sm:$0xff]
          %v978 = vld [vmem:[#allocation2 + $0x20] sm:$0xff]
          %v979 = vlaneseq
          %v980 = vshrl.u32 %v979, 7
          %v981 = vsub.s32 0, %v980
          %v982 = vrot.slane %v973, %v981
          %v983 = vmul.f32 %v974, %v982
          %v984 = vmul.f32 %v975, %v982
          %v985 = vmul.f32 %v976, %v982
          %v986 = vmul.f32 %v977, %v982
          %v987 = vmul.f32 %v978, %v982
          %v988 = vlaneseq
          %v989 = vshrl.u32 %v988, 7
          %v990 = vsub.s32 1, %v989
          %v991 = vrot.slane %v973, %v990
          %v992 = vadd.f32 %v983, %v991
          %v993 = vadd.f32 %v984, %v991
          %v994 = vadd.f32 %v985, %v991
          %v995 = vadd.f32 %v986, %v991
          %v996 = vadd.f32 %v987, %v991
          %997 = vst [vmem:[%s271] sm:$0xff] %v992
          %998 = vst [vmem:[%s271 + $0x8] sm:$0xff] %v993
          %999 = vst [vmem:[%s271 + $0x10] sm:$0xff] %v994
          %1000 = vst [vmem:[%s271 + $0x18] sm:$0xff] %v995
          %1001 = vst [vmem:[%s271 + $0x20] sm:$0xff] %v996
        $region52: #{simple_transformer_forward.2} parent=31 // pred_fallthru
          _
        %s1002 = smul.u32 5, %s24
        %p1003 = scmp.lt.s32.totalorder %s1002, 9
        %s1004 = scalar_select %p1003, %s1002, 9
        %s1005 = smul.addr %s1004, 8
        %s1006 = scalar_lea.vmem %s3, %s1005
        // Predicated region
        $region53: #{simple_transformer_forward.2} parent=31 // pred_check
          %p1007 = pneg %p125
        $region54: #{simple_transformer_forward.2} parent=31 // pred_check_branch
          %1009 = sbr.rel (%p1007) target = $region56
        $region55: #{simple_transformer_forward.2} parent=31 // pred_region
          %s1010 = smul.u32 5, %s24
        $region56: #{simple_transformer_forward.2} parent=31 // pred_fallthru
          _
      $region32: #{simple_transformer_forward.2} parent=5 // pred_fallthru
        _
      %p1011 = scmp.le.s32.totalorder 2, %s15
      // Predicated region
      $region57: #{simple_transformer_forward.2} parent=5 // pred_check
        %p1012 = pneg %p1011
      $region58: #{simple_transformer_forward.2} parent=5 // pred_check_branch
        %1014 = sbr.rel (%p1012) target = $region60
      $region59: #{simple_transformer_forward.2} parent=5 // pred_region
        %s1015 = ssub.s32 %s15, 2
        // Predicated region
        $region61: #{simple_transformer_forward.2} parent=59 // pred_check
          %p1016 = pneg %p131
        $region62: #{simple_transformer_forward.2} parent=59 // pred_check_branch
          %1018 = sbr.rel (%p1016) target = $region64
        $region63: #{simple_transformer_forward.2} parent=59 // pred_region
          %s1019 = smul.u32 5, %s26
          %p1020 = scmp.lt.s32.totalorder %s1019, 9
          %s1021 = scalar_select %p1020, %s1019, 9
          %s1022 = smul.addr %s1021, 8
          %s1023 = scalar_lea.vmem %s3, %s1022
        $region64: #{simple_transformer_forward.2} parent=59 // pred_fallthru
          _
      $region60: #{simple_transformer_forward.2} parent=5 // pred_fallthru
        _
    $region6: #{simple_transformer_forward.2} parent=1 // loop_footer
      %s19 = sadd.s32 1, %s15
    $region7: #{simple_transformer_forward.2} parent=1 // loop_footer_branch
      %14 = sbr.rel target = $region3
    $region8: #{simple_transformer_forward.2} parent=1 // loop_exit
      _
    %1024 = vsyncpa [#allocation4], 1
    %s1025 = scalar_lea.sflag [#allocation4], 1
    %1026 = vsyncpa %s1025, 1
    %1027 = vsyncpa [#allocation6], 1
    %s1028 = scalar_lea.sflag [#allocation6], 1
    %1029 = vsyncpa %s1028, 1

// kernel: simple_transformer_forward.3
$region0: #{simple_transformer_forward.3}
  #allocation0 [shape = 'u32[]', space=smem, size = 0x4, offset = 0x4, fixed_abs, tag = 'smem constant byte address 0x4 - core index']
  #allocation1 [shape = 'u32[144,128]{1,0:T(1,128)}', space=vmem, size = 0x12000, scoped, tag = 'internal scratch']
  %s0 = inlined_call_operand.vmem [shape: f32[16,8,128], index: 0, kind: input, shape index: {}]
  %s1 = inlined_call_operand.vmem [shape: f32[128,384], index: 1, kind: input, shape index: {}]
  %s2 = inlined_call_operand.vmem [shape: f32[1,384], index: 2, kind: input, shape index: {}]
  %s3 = inlined_call_operand.vmem [shape: f32[2,64,128], index: 3, kind: input, shape index: {}]
  %s4 = inlined_call_operand.vmem [shape: f32[8,128], index: 4, kind: input, shape index: {}]
  %s5 = inlined_call_operand.vmem [shape: f32[128,256], index: 5, kind: input, shape index: {}]
  %s6 = inlined_call_operand.vmem [shape: f32[1,256], index: 6, kind: input, shape index: {}]
  %s7 = inlined_call_operand.vmem [shape: f32[256,128], index: 7, kind: input, shape index: {}]
  %s8 = inlined_call_operand.vmem [shape: f32[128,128], index: 8, kind: input, shape index: {}]
  %s9 = inlined_call_operand.vmem [shape: f32[1,128], index: 9, kind: input, shape index: {}]
  %s10 = inlined_call_operand.vmem [shape: f32[16,128], index: 10, kind: output, shape index: {}]
  %s11 = sld [smem:[#allocation0]]
  $region73: #{simple_transformer_forward.3} parent=0
    _
  %s13 = ssub.s32 1, %s11
  %s14 = scalar_select 0, %s13, %s11
  loop: start=0, step=1, limit=4
  $region2: #{simple_transformer_forward.3} parent=0 // loop_pre_header
    _
  $region3: #{simple_transformer_forward.3} parent=0 // loop_header
    %s16 = sphi 0, %s20
    %p17 = scmp.ge.s32.totalorder %s16, 4
    %s26 = sphi 0, %s28
    %s29 = sphi 0, %s26
    %s30 = sphi 0, %s29
    %s46 = sphi 0, %s30
    %s50 = sphi 0, %s50
    %s52 = sphi 0, %s50
    %s53 = sphi 0, %s52
    %s67 = sphi 0, %s53
    %s71 = sphi 0, %s71
    %s73 = sphi 0, %s71
    %s74 = sphi 0, %s73
    %s88 = sphi 0, %s74
    %s92 = sphi 0, %s92
    %s94 = sphi 0, %s92
    %s95 = sphi 0, %s94
    %s109 = sphi 0, %s95
    %s113 = sphi 0, %s113
    %s115 = sphi 0, %s113
    %s116 = sphi 0, %s115
    %s130 = sphi 0, %s116
    %s134 = sphi 0, %s134
    %s136 = sphi 0, %s134
    %s137 = sphi 0, %s136
    %s151 = sphi 0, %s137
    %s155 = sphi 0, %s155
    %s157 = sphi 0, %s155
    %s158 = sphi 0, %s157
    %s172 = sphi 0, %s158
    %s176 = sphi 0, %s176
    %s178 = sphi 0, %s176
    %s179 = sphi 0, %s178
    %s193 = sphi 0, %s179
    %s197 = sphi 0, %s197
    %s199 = sphi 0, %s197
    %s200 = sphi 0, %s199
    %s214 = sphi 0, %s200
    %s218 = sphi 0, %s218
    %s220 = sphi 0, %s218
    %s221 = sphi 0, %s220
    %s235 = sphi 0, %s221
    %s241 = sphi 0, %s243
    %s244 = sphi 0, %s241
    %s245 = sphi 0, %s244
    %s261 = sphi 0, %s245
  $region4: #{simple_transformer_forward.3} parent=0 // loop_header_branch
    %19 = sbr.rel (%p17) target = $region8
  $region5: #{simple_transformer_forward.3} parent=0 // loop_body
    %s21 = ssub.s32 %s16, 1
    %s22 = ssub.s32 %s16, 2
    %s23 = sadd.s32 %s16, 1
    %s24 = ssub.s32 %s16, %s23
    %p25 = scmp.eq.s32.totalorder %s24, 0
    %s27 = sadd.s32 %s26, 1
    %s28 = scalar_select %p25, %s26, %s27
    %p31 = pneg %p25
    %p32 = scmp.eq.s32.totalorder %s16, 1
    %p33 = por %p31, %p32
    %p34 = scmp.ne.s32.totalorder %s26, %s29
    %p35 = scmp.eq.s32.totalorder %s16, 0
    %p36 = por %p34, %p35
    %p37 = scmp.ne.s32.totalorder %s26, %s29
    %p38 = scmp.eq.s32.totalorder %s21, 1
    %p39 = por %p37, %p38
    %p40 = scmp.ne.s32.totalorder %s29, %s30
    %p41 = scmp.eq.s32.totalorder %s21, 0
    %p42 = por %p40, %p41
    %p43 = scmp.ne.s32.totalorder %s29, %s30
    %p44 = scmp.eq.s32.totalorder %s22, 1
    %p45 = por %p43, %p44
    %p47 = scmp.ne.s32.totalorder %s30, %s46
    %p48 = scmp.eq.s32.totalorder %s22, 0
    %p49 = por %p47, %p48
    %s51 = sadd.s32 %s50, 1
    %p54 = scmp.eq.s32.totalorder %s16, 1
    %p55 = scmp.ne.s32.totalorder %s50, %s52
    %p56 = scmp.eq.s32.totalorder %s16, 0
    %p57 = por %p55, %p56
    %p58 = scmp.ne.s32.totalorder %s50, %s52
    %p59 = scmp.eq.s32.totalorder %s21, 1
    %p60 = por %p58, %p59
    %p61 = scmp.ne.s32.totalorder %s52, %s53
    %p62 = scmp.eq.s32.totalorder %s21, 0
    %p63 = por %p61, %p62
    %p64 = scmp.ne.s32.totalorder %s52, %s53
    %p65 = scmp.eq.s32.totalorder %s22, 1
    %p66 = por %p64, %p65
    %p68 = scmp.ne.s32.totalorder %s53, %s67
    %p69 = scmp.eq.s32.totalorder %s22, 0
    %p70 = por %p68, %p69
    %s72 = sadd.s32 %s71, 1
    %p75 = scmp.eq.s32.totalorder %s16, 1
    %p76 = scmp.ne.s32.totalorder %s71, %s73
    %p77 = scmp.eq.s32.totalorder %s16, 0
    %p78 = por %p76, %p77
    %p79 = scmp.ne.s32.totalorder %s71, %s73
    %p80 = scmp.eq.s32.totalorder %s21, 1
    %p81 = por %p79, %p80
    %p82 = scmp.ne.s32.totalorder %s73, %s74
    %p83 = scmp.eq.s32.totalorder %s21, 0
    %p84 = por %p82, %p83
    %p85 = scmp.ne.s32.totalorder %s73, %s74
    %p86 = scmp.eq.s32.totalorder %s22, 1
    %p87 = por %p85, %p86
    %p89 = scmp.ne.s32.totalorder %s74, %s88
    %p90 = scmp.eq.s32.totalorder %s22, 0
    %p91 = por %p89, %p90
    %s93 = sadd.s32 %s92, 1
    %p96 = scmp.eq.s32.totalorder %s16, 1
    %p97 = scmp.ne.s32.totalorder %s92, %s94
    %p98 = scmp.eq.s32.totalorder %s16, 0
    %p99 = por %p97, %p98
    %p100 = scmp.ne.s32.totalorder %s92, %s94
    %p101 = scmp.eq.s32.totalorder %s21, 1
    %p102 = por %p100, %p101
    %p103 = scmp.ne.s32.totalorder %s94, %s95
    %p104 = scmp.eq.s32.totalorder %s21, 0
    %p105 = por %p103, %p104
    %p106 = scmp.ne.s32.totalorder %s94, %s95
    %p107 = scmp.eq.s32.totalorder %s22, 1
    %p108 = por %p106, %p107
    %p110 = scmp.ne.s32.totalorder %s95, %s109
    %p111 = scmp.eq.s32.totalorder %s22, 0
    %p112 = por %p110, %p111
    %s114 = sadd.s32 %s113, 1
    %p117 = scmp.eq.s32.totalorder %s16, 1
    %p118 = scmp.ne.s32.totalorder %s113, %s115
    %p119 = scmp.eq.s32.totalorder %s16, 0
    %p120 = por %p118, %p119
    %p121 = scmp.ne.s32.totalorder %s113, %s115
    %p122 = scmp.eq.s32.totalorder %s21, 1
    %p123 = por %p121, %p122
    %p124 = scmp.ne.s32.totalorder %s115, %s116
    %p125 = scmp.eq.s32.totalorder %s21, 0
    %p126 = por %p124, %p125
    %p127 = scmp.ne.s32.totalorder %s115, %s116
    %p128 = scmp.eq.s32.totalorder %s22, 1
    %p129 = por %p127, %p128
    %p131 = scmp.ne.s32.totalorder %s116, %s130
    %p132 = scmp.eq.s32.totalorder %s22, 0
    %p133 = por %p131, %p132
    %s135 = sadd.s32 %s134, 1
    %p138 = scmp.eq.s32.totalorder %s16, 1
    %p139 = scmp.ne.s32.totalorder %s134, %s136
    %p140 = scmp.eq.s32.totalorder %s16, 0
    %p141 = por %p139, %p140
    %p142 = scmp.ne.s32.totalorder %s134, %s136
    %p143 = scmp.eq.s32.totalorder %s21, 1
    %p144 = por %p142, %p143
    %p145 = scmp.ne.s32.totalorder %s136, %s137
    %p146 = scmp.eq.s32.totalorder %s21, 0
    %p147 = por %p145, %p146
    %p148 = scmp.ne.s32.totalorder %s136, %s137
    %p149 = scmp.eq.s32.totalorder %s22, 1
    %p150 = por %p148, %p149
    %p152 = scmp.ne.s32.totalorder %s137, %s151
    %p153 = scmp.eq.s32.totalorder %s22, 0
    %p154 = por %p152, %p153
    %s156 = sadd.s32 %s155, 1
    %p159 = scmp.eq.s32.totalorder %s16, 1
    %p160 = scmp.ne.s32.totalorder %s155, %s157
    %p161 = scmp.eq.s32.totalorder %s16, 0
    %p162 = por %p160, %p161
    %p163 = scmp.ne.s32.totalorder %s155, %s157
    %p164 = scmp.eq.s32.totalorder %s21, 1
    %p165 = por %p163, %p164
    %p166 = scmp.ne.s32.totalorder %s157, %s158
    %p167 = scmp.eq.s32.totalorder %s21, 0
    %p168 = por %p166, %p167
    %p169 = scmp.ne.s32.totalorder %s157, %s158
    %p170 = scmp.eq.s32.totalorder %s22, 1
    %p171 = por %p169, %p170
    %p173 = scmp.ne.s32.totalorder %s158, %s172
    %p174 = scmp.eq.s32.totalorder %s22, 0
    %p175 = por %p173, %p174
    %s177 = sadd.s32 %s176, 1
    %p180 = scmp.eq.s32.totalorder %s16, 1
    %p181 = scmp.ne.s32.totalorder %s176, %s178
    %p182 = scmp.eq.s32.totalorder %s16, 0
    %p183 = por %p181, %p182
    %p184 = scmp.ne.s32.totalorder %s176, %s178
    %p185 = scmp.eq.s32.totalorder %s21, 1
    %p186 = por %p184, %p185
    %p187 = scmp.ne.s32.totalorder %s178, %s179
    %p188 = scmp.eq.s32.totalorder %s21, 0
    %p189 = por %p187, %p188
    %p190 = scmp.ne.s32.totalorder %s178, %s179
    %p191 = scmp.eq.s32.totalorder %s22, 1
    %p192 = por %p190, %p191
    %p194 = scmp.ne.s32.totalorder %s179, %s193
    %p195 = scmp.eq.s32.totalorder %s22, 0
    %p196 = por %p194, %p195
    %s198 = sadd.s32 %s197, 1
    %p201 = scmp.eq.s32.totalorder %s16, 1
    %p202 = scmp.ne.s32.totalorder %s197, %s199
    %p203 = scmp.eq.s32.totalorder %s16, 0
    %p204 = por %p202, %p203
    %p205 = scmp.ne.s32.totalorder %s197, %s199
    %p206 = scmp.eq.s32.totalorder %s21, 1
    %p207 = por %p205, %p206
    %p208 = scmp.ne.s32.totalorder %s199, %s200
    %p209 = scmp.eq.s32.totalorder %s21, 0
    %p210 = por %p208, %p209
    %p211 = scmp.ne.s32.totalorder %s199, %s200
    %p212 = scmp.eq.s32.totalorder %s22, 1
    %p213 = por %p211, %p212
    %p215 = scmp.ne.s32.totalorder %s200, %s214
    %p216 = scmp.eq.s32.totalorder %s22, 0
    %p217 = por %p215, %p216
    %s219 = sadd.s32 %s218, 1
    %p222 = scmp.eq.s32.totalorder %s16, 1
    %p223 = scmp.ne.s32.totalorder %s218, %s220
    %p224 = scmp.eq.s32.totalorder %s16, 0
    %p225 = por %p223, %p224
    %p226 = scmp.ne.s32.totalorder %s218, %s220
    %p227 = scmp.eq.s32.totalorder %s21, 1
    %p228 = por %p226, %p227
    %p229 = scmp.ne.s32.totalorder %s220, %s221
    %p230 = scmp.eq.s32.totalorder %s21, 0
    %p231 = por %p229, %p230
    %p232 = scmp.ne.s32.totalorder %s220, %s221
    %p233 = scmp.eq.s32.totalorder %s22, 1
    %p234 = por %p232, %p233
    %p236 = scmp.ne.s32.totalorder %s221, %s235
    %p237 = scmp.eq.s32.totalorder %s22, 0
    %p238 = por %p236, %p237
    %s239 = ssub.s32 %s16, %s23
    %p240 = scmp.eq.s32.totalorder %s239, 0
    %s242 = sadd.s32 %s241, 1
    %s243 = scalar_select %p240, %s241, %s242
    %p246 = pneg %p240
    %p247 = scmp.eq.s32.totalorder %s16, 1
    %p248 = por %p246, %p247
    %p249 = scmp.ne.s32.totalorder %s241, %s244
    %p250 = scmp.eq.s32.totalorder %s16, 0
    %p251 = por %p249, %p250
    %p252 = scmp.ne.s32.totalorder %s241, %s244
    %p253 = scmp.eq.s32.totalorder %s21, 1
    %p254 = por %p252, %p253
    %p255 = scmp.ne.s32.totalorder %s244, %s245
    %p256 = scmp.eq.s32.totalorder %s21, 0
    %p257 = por %p255, %p256
    %p258 = scmp.ne.s32.totalorder %s244, %s245
    %p259 = scmp.eq.s32.totalorder %s22, 1
    %p260 = por %p258, %p259
    %p262 = scmp.ne.s32.totalorder %s245, %s261
    %p263 = scmp.eq.s32.totalorder %s22, 0
    %p264 = por %p262, %p263
    %p265 = scmp.le.s32.totalorder 1, %s16
    %p266 = scmp.lt.s32.totalorder %s16, 3
    %p267 = pnand %p265, %p266
    %p268 = pneg %p267
    // Predicated region
    $region9: #{simple_transformer_forward.3} parent=5 // pred_check
      _
    $region10: #{simple_transformer_forward.3} parent=5 // pred_check_branch
      %270 = sbr.rel (%p267) target = $region12
    $region11: #{simple_transformer_forward.3} parent=5 // pred_region
      %s271 = ssub.s32 %s16, 1
      // Predicated region
      $region13: #{simple_transformer_forward.3} parent=11 // pred_check
        %p272 = pneg %p63
      $region14: #{simple_transformer_forward.3} parent=11 // pred_check_branch
        %274 = sbr.rel (%p272) target = $region16
      $region15: #{simple_transformer_forward.3} parent=11 // pred_region
        _
      $region16: #{simple_transformer_forward.3} parent=11 // pred_fallthru
        _
      // Predicated region
      $region17: #{simple_transformer_forward.3} parent=11 // pred_check
        %p275 = pneg %p84
      $region18: #{simple_transformer_forward.3} parent=11 // pred_check_branch
        %277 = sbr.rel (%p275) target = $region20
      $region19: #{simple_transformer_forward.3} parent=11 // pred_region
        _
      $region20: #{simple_transformer_forward.3} parent=11 // pred_fallthru
        _
      // Predicated region
      $region21: #{simple_transformer_forward.3} parent=11 // pred_check
        %p278 = pneg %p105
      $region22: #{simple_transformer_forward.3} parent=11 // pred_check_branch
        %280 = sbr.rel (%p278) target = $region24
      $region23: #{simple_transformer_forward.3} parent=11 // pred_region
        _
      $region24: #{simple_transformer_forward.3} parent=11 // pred_fallthru
        _
      // Predicated region
      $region25: #{simple_transformer_forward.3} parent=11 // pred_check
        %p281 = pneg %p126
      $region26: #{simple_transformer_forward.3} parent=11 // pred_check_branch
        %283 = sbr.rel (%p281) target = $region28
      $region27: #{simple_transformer_forward.3} parent=11 // pred_region
        _
      $region28: #{simple_transformer_forward.3} parent=11 // pred_fallthru
        _
      // Predicated region
      $region29: #{simple_transformer_forward.3} parent=11 // pred_check
        %p284 = pneg %p147
      $region30: #{simple_transformer_forward.3} parent=11 // pred_check_branch
        %286 = sbr.rel (%p284) target = $region32
      $region31: #{simple_transformer_forward.3} parent=11 // pred_region
        _
      $region32: #{simple_transformer_forward.3} parent=11 // pred_fallthru
        _
      // Predicated region
      $region33: #{simple_transformer_forward.3} parent=11 // pred_check
        %p287 = pneg %p168
      $region34: #{simple_transformer_forward.3} parent=11 // pred_check_branch
        %289 = sbr.rel (%p287) target = $region36
      $region35: #{simple_transformer_forward.3} parent=11 // pred_region
        _
      $region36: #{simple_transformer_forward.3} parent=11 // pred_fallthru
        _
      // Predicated region
      $region37: #{simple_transformer_forward.3} parent=11 // pred_check
        %p290 = pneg %p189
      $region38: #{simple_transformer_forward.3} parent=11 // pred_check_branch
        %292 = sbr.rel (%p290) target = $region40
      $region39: #{simple_transformer_forward.3} parent=11 // pred_region
        _
      $region40: #{simple_transformer_forward.3} parent=11 // pred_fallthru
        _
      // Predicated region
      $region41: #{simple_transformer_forward.3} parent=11 // pred_check
        %p293 = pneg %p210
      $region42: #{simple_transformer_forward.3} parent=11 // pred_check_branch
        %295 = sbr.rel (%p293) target = $region44
      $region43: #{simple_transformer_forward.3} parent=11 // pred_region
        _
      $region44: #{simple_transformer_forward.3} parent=11 // pred_fallthru
        _
      // Predicated region
      $region45: #{simple_transformer_forward.3} parent=11 // pred_check
        %p296 = pneg %p231
      $region46: #{simple_transformer_forward.3} parent=11 // pred_check_branch
        %298 = sbr.rel (%p296) target = $region48
      $region47: #{simple_transformer_forward.3} parent=11 // pred_region
        _
      $region48: #{simple_transformer_forward.3} parent=11 // pred_fallthru
        _
    $region12: #{simple_transformer_forward.3} parent=5 // pred_fallthru
      _
    %p299 = scmp.lt.s32.totalorder %s16, 2
    // Predicated region
    $region49: #{simple_transformer_forward.3} parent=5 // pred_check
      %p300 = pneg %p299
    $region50: #{simple_transformer_forward.3} parent=5 // pred_check_branch
      %302 = sbr.rel (%p300) target = $region52
    $region51: #{simple_transformer_forward.3} parent=5 // pred_region
      // Predicated region
      $region53: #{simple_transformer_forward.3} parent=51 // pred_check
        %p303 = pneg %p36
      $region54: #{simple_transformer_forward.3} parent=51 // pred_check_branch
        %305 = sbr.rel (%p303) target = $region56
      $region55: #{simple_transformer_forward.3} parent=51 // pred_region
        %s306 = smul.u32 8, %s16
        %p307 = scmp.lt.s32.totalorder %s306, 15
        %s308 = scalar_select %p307, %s306, 15
        %s309 = smul.addr %s308, 8
        %s310 = scalar_lea.vmem %s0, %s309
        %s311 = smul.u32 8, %s16
      $region56: #{simple_transformer_forward.3} parent=51 // pred_fallthru
        _
    $region52: #{simple_transformer_forward.3} parent=5 // pred_fallthru
      _
    %p312 = scmp.le.s32.totalorder 1, %s16
    %p313 = scmp.lt.s32.totalorder %s16, 3
    %p314 = pnand %p312, %p313
    %p315 = pneg %p314
    // Predicated region
    $region57: #{simple_transformer_forward.3} parent=5 // pred_check
      _
    $region58: #{simple_transformer_forward.3} parent=5 // pred_check_branch
      %317 = sbr.rel (%p314) target = $region60
    $region59: #{simple_transformer_forward.3} parent=5 // pred_region
      %s318 = ssub.s32 %s16, 1
      %s319 = smul.u32 8, %s21
      %p320 = scmp.lt.s32.totalorder %s319, 15
      %s321 = scalar_select %p320, %s319, 15
      %s322 = smul.addr %s321, 8
      %s323 = scalar_lea.vmem %s0, %s322
      %p324 = pneg %p42
      %p325 = pneg %p39
      %p326 = pneg %p63
      %p327 = pneg %p60
      %p328 = pneg %p84
      %p329 = pneg %p81
      %p330 = pneg %p105
      %p331 = pneg %p102
      %p332 = pneg %p126
      %p333 = pneg %p123
      %p334 = pneg %p147
      %p335 = pneg %p144
      %p336 = pneg %p168
      %p337 = pneg %p165
      %p338 = pneg %p189
      %p339 = pneg %p186
      %p340 = pneg %p210
      %p341 = pneg %p207
      %p342 = pneg %p231
      %p343 = pneg %p228
      %p344 = pneg %p257
      %p345 = pneg %p254
      %p346 = scmp.lt.s32.totalorder %s21, 1
      %s347 = scalar_select %p346, %s21, 1
      %s348 = smul.addr %s347, 8
      %s349 = scalar_lea.vmem %s10, %s348
      %s350 = smul.u32 8, %s21
      %p351 = scmp.lt.s32.totalorder %s350, 15
      %s352 = scalar_select %p351, %s350, 15
      %s353 = smul.addr %s352, 8
      %s354 = scalar_lea.vmem %s0, %s353
      %s355 = smul.u32 8, %s21
      %p356 = scmp.lt.s32.totalorder %s21, 1
      %s357 = scalar_select %p356, %s21, 1
      %s358 = smul.addr %s357, 8
      %s359 = scalar_lea.vmem %s10, %s358
      %v360 = vld [vmem:[%s354] sm:$0xff]
      %v361 = vld [vmem:[%s354 + $0x8] sm:$0xff]
      %v362 = vld [vmem:[%s354 + $0x10] sm:$0xff]
      %v363 = vld [vmem:[%s354 + $0x18] sm:$0xff]
      %v364 = vld [vmem:[%s354 + $0x20] sm:$0xff]
      %v365 = vld [vmem:[%s354 + $0x28] sm:$0xff]
      %v366 = vld [vmem:[%s354 + $0x30] sm:$0xff]
      %v367 = vld [vmem:[%s354 + $0x38] sm:$0xff]
      %v368 = vld [vmem:[%s4] sm:$0xff]
      %v369 = vld [vmem:[%s1] sm:$0xff]
      %v370 = vld [vmem:[%s1 + $0x8] sm:$0xff]
      %v371 = vld [vmem:[%s1 + $0x10] sm:$0xff]
      %v372 = vld [vmem:[%s1 + $0x18] sm:$0xff]
      %v373 = vld [vmem:[%s1 + $0x20] sm:$0xff]
      %v374 = vld [vmem:[%s1 + $0x28] sm:$0xff]
      %v375 = vld [vmem:[%s1 + $0x30] sm:$0xff]
      %v376 = vld [vmem:[%s1 + $0x38] sm:$0xff]
      %v377 = vld [vmem:[%s1 + $0x40] sm:$0xff]
      %v378 = vld [vmem:[%s1 + $0x48] sm:$0xff]
      %v379 = vld [vmem:[%s1 + $0x50] sm:$0xff]
      %v380 = vld [vmem:[%s1 + $0x58] sm:$0xff]
      %v381 = vld [vmem:[%s1 + $0x60] sm:$0xff]
      %v382 = vld [vmem:[%s1 + $0x68] sm:$0xff]
      %v383 = vld [vmem:[%s1 + $0x70] sm:$0xff]
      %v384 = vld [vmem:[%s1 + $0x78] sm:$0xff]
      %v385 = vld [vmem:[%s1 + $0x80] sm:$0xff]
      %v386 = vld [vmem:[%s1 + $0x88] sm:$0xff]
      %v387 = vld [vmem:[%s1 + $0x90] sm:$0xff]
      %v388 = vld [vmem:[%s1 + $0x98] sm:$0xff]
      %v389 = vld [vmem:[%s1 + $0xa0] sm:$0xff]
      %v390 = vld [vmem:[%s1 + $0xa8] sm:$0xff]
      %v391 = vld [vmem:[%s1 + $0xb0] sm:$0xff]
      %v392 = vld [vmem:[%s1 + $0xb8] sm:$0xff]
      %v393 = vld [vmem:[%s1 + $0xc0] sm:$0xff]
      %v394 = vld [vmem:[%s1 + $0xc8] sm:$0xff]
      %v395 = vld [vmem:[%s1 + $0xd0] sm:$0xff]
      %v396 = vld [vmem:[%s1 + $0xd8] sm:$0xff]
      %v397 = vld [vmem:[%s1 + $0xe0] sm:$0xff]
      %v398 = vld [vmem:[%s1 + $0xe8] sm:$0xff]
      %v399 = vld [vmem:[%s1 + $0xf0] sm:$0xff]
      %v400 = vld [vmem:[%s1 + $0xf8] sm:$0xff]
      %v401 = vld [vmem:[%s1 + $0x100] sm:$0xff]
      %v402 = vld [vmem:[%s1 + $0x108] sm:$0xff]
      %v403 = vld [vmem:[%s1 + $0x110] sm:$0xff]
      %v404 = vld [vmem:[%s1 + $0x118] sm:$0xff]
      %v405 = vld [vmem:[%s1 + $0x120] sm:$0xff]
      %v406 = vld [vmem:[%s1 + $0x128] sm:$0xff]
      %v407 = vld [vmem:[%s1 + $0x130] sm:$0xff]
      %v408 = vld [vmem:[%s1 + $0x138] sm:$0xff]
      %v409 = vld [vmem:[%s1 + $0x140] sm:$0xff]
      %v410 = vld [vmem:[%s1 + $0x148] sm:$0xff]
      %v411 = vld [vmem:[%s1 + $0x150] sm:$0xff]
      %v412 = vld [vmem:[%s1 + $0x158] sm:$0xff]
      %v413 = vld [vmem:[%s1 + $0x160] sm:$0xff]
      %v414 = vld [vmem:[%s1 + $0x168] sm:$0xff]
      %v415 = vld [vmem:[%s1 + $0x170] sm:$0xff]
      %v416 = vld [vmem:[%s1 + $0x178] sm:$0xff]
      %v417 = vld [vmem:[%s2] sm:$0x7]
      %v419 = vlaneseq
      %v420 = vshrl.u32 %v419, 7
      %v421 = vsub.s32 0, %v420
      %v422 = vrot.slane %v417, %v421
      %v423 = vlaneseq
      %v424 = vshrl.u32 %v423, 7
      %v425 = vsub.s32 1, %v424
      %v426 = vrot.slane %v417, %v425
      %v427 = vlaneseq
      %v428 = vshrl.u32 %v427, 7
      %v429 = vsub.s32 2, %v428
      %v430 = vrot.slane %v417, %v429
      %434 = vmatprep.subr.mxu0 %v370
      %435 = vmatpush1.msra.mxu0 %v369
      %436 = vmatprep.subr.mxu0 %v373
      %437 = vmatpush1.msra.mxu0 %v372
      %438 = vmatprep.subr.mxu0 %v376
      %439 = vmatpush1.msra.mxu0 %v375
      %440 = vmatprep.subr.mxu0 %v379
      %441 = vmatpush1.msra.mxu0 %v378
      %442 = vmatprep.subr.mxu0 %v382
      %443 = vmatpush1.msra.mxu0 %v381
      %444 = vmatprep.subr.mxu0 %v385
      %445 = vmatpush1.msra.mxu0 %v384
      %446 = vmatprep.subr.mxu0 %v388
      %447 = vmatpush1.msra.mxu0 %v387
      %448 = vmatprep.subr.mxu0 %v391
      %449 = vmatpush1.msra.mxu0 %v390
      %450 = vmatprep.subr.mxu0 %v394
      %451 = vmatpush1.msra.mxu0 %v393
      %452 = vmatprep.subr.mxu0 %v397
      %453 = vmatpush1.msra.mxu0 %v396
      %454 = vmatprep.subr.mxu0 %v400
      %455 = vmatpush1.msra.mxu0 %v399
      %456 = vmatprep.subr.mxu0 %v403
      %457 = vmatpush1.msra.mxu0 %v402
      %458 = vmatprep.subr.mxu0 %v406
      %459 = vmatpush1.msra.mxu0 %v405
      %460 = vmatprep.subr.mxu0 %v409
      %461 = vmatpush1.msra.mxu0 %v408
      %462 = vmatprep.subr.mxu0 %v412
      %463 = vmatpush1.msra.mxu0 %v411
      %464 = vmatprep.subr.mxu0 %v415
      %465 = vmatpush1.msra.mxu0 %v414
      %466 = vmatprep.subr.mxu0 0.0
      %467 = vmatpush1.msra.mxu0 0.0
      %468 = vmatprep.subr.mxu0 0.0
      %469 = vmatpush1.msra.mxu0 0.0
      %470 = vmatprep.subr.mxu0 0.0
      %471 = vmatpush1.msra.mxu0 0.0
      %472 = vmatprep.subr.mxu0 0.0
      %473 = vmatpush1.msra.mxu0 0.0
      %474 = vmatprep.subr.mxu0 0.0
      %475 = vmatpush1.msra.mxu0 0.0
      %476 = vmatprep.subr.mxu0 0.0
      %477 = vmatpush1.msra.mxu0 0.0
      %478 = vmatprep.subr.mxu0 0.0
      %479 = vmatpush1.msra.mxu0 0.0
      %480 = vmatprep.subr.mxu0 0.0
      %481 = vmatpush1.msra.mxu0 0.0
      %482 = vmatprep.subr.mxu0 0.0
      %483 = vmatpush1.msra.mxu0 0.0
      %484 = vmatprep.subr.mxu0 0.0
      %485 = vmatpush1.msra.mxu0 0.0
      %486 = vmatprep.subr.mxu0 0.0
      %487 = vmatpush1.msra.mxu0 0.0
      %488 = vmatprep.subr.mxu0 0.0
      %489 = vmatpush1.msra.mxu0 0.0
      %490 = vmatprep.subr.mxu0 0.0
      %491 = vmatpush1.msra.mxu0 0.0
      %492 = vmatprep.subr.mxu0 0.0
      %493 = vmatpush1.msra.mxu0 0.0
      %494 = vmatprep.subr.mxu0 0.0
      %495 = vmatpush1.msra.mxu0 0.0
      %496 = vmatprep.subr.mxu0 0.0
      %497 = vmatpush1.msra.mxu0 0.0
      %498 = vmatprep.mubr.f32.mxu0 0.0
      %499 = vmatmul.mubr.f32.gmra.mrb[0].mxu0 %v360
      %v500 = vpop.f32.mrb[0].mxu0
      %v501 = vadd.f32 %v422, %v500
      %v502 = vpop.f32.mrb[0].mxu0
      %v503 = vadd.f32 %v426, %v502
      %504 = vmatprep.mubr.f32.mxu0 0.0
      %505 = vmatmul.mubr.f32.gmra.mrb[0].mxu0 %v361
      %v506 = vpop.f32.mrb[0].mxu0
      %v507 = vadd.f32 %v422, %v506
      %v508 = vpop.f32.mrb[0].mxu0
      %v509 = vadd.f32 %v426, %v508
      %510 = vmatprep.mubr.f32.mxu0 0.0
      %511 = vmatmul.mubr.f32.gmra.mrb[0].mxu0 %v362
      %v512 = vpop.f32.mrb[0].mxu0
      %v513 = vadd.f32 %v422, %v512
      %v514 = vpop.f32.mrb[0].mxu0
      %v515 = vadd.f32 %v426, %v514
      %516 = vmatprep.mubr.f32.mxu0 0.0
      %517 = vmatmul.mubr.f32.gmra.mrb[0].mxu0 %v363
      %v518 = vpop.f32.mrb[0].mxu0
      %v519 = vadd.f32 %v422, %v518
      %v520 = vpop.f32.mrb[0].mxu0
      %v521 = vadd.f32 %v426, %v520
      %522 = vmatprep.mubr.f32.mxu0 0.0
      %523 = vmatmul.mubr.f32.gmra.mrb[0].mxu0 %v364
      %v524 = vpop.f32.mrb[0].mxu0
      %v525 = vadd.f32 %v422, %v524
      %v526 = vpop.f32.mrb[0].mxu0
      %v527 = vadd.f32 %v426, %v526
      %528 = vmatprep.mubr.f32.mxu0 0.0
      %529 = vmatmul.mubr.f32.gmra.mrb[0].mxu0 %v365
      %v530 = vpop.f32.mrb[0].mxu0
      %v531 = vadd.f32 %v422, %v530
      %v532 = vpop.f32.mrb[0].mxu0
      %v533 = vadd.f32 %v426, %v532
      %534 = vmatprep.mubr.f32.mxu0 0.0
      %535 = vmatmul.mubr.f32.gmra.mrb[0].mxu0 %v366
      %v536 = vpop.f32.mrb[0].mxu0
      %v537 = vadd.f32 %v422, %v536
      %v538 = vpop.f32.mrb[0].mxu0
      %v539 = vadd.f32 %v426, %v538
      %540 = vmatprep.mubr.f32.mxu0 0.0
      %541 = vmatmul.mubr.f32.gmra.mrb[0].mxu0 %v367
      %v542 = vpop.f32.mrb[0].mxu0
      %v543 = vadd.f32 %v422, %v542
      %v544 = vpop.f32.mrb[0].mxu0
      %v545 = vadd.f32 %v426, %v544
      %546 = vdwg.mxu0
      %547 = vmatprep.subr.mxu0 0.0
      %548 = vmatpush1.msra.mxu0 %v371
      %549 = vmatprep.subr.mxu0 0.0
      %550 = vmatpush1.msra.mxu0 %v374
      %551 = vmatprep.subr.mxu0 0.0
      %552 = vmatpush1.msra.mxu0 %v377
      %553 = vmatprep.subr.mxu0 0.0
      %554 = vmatpush1.msra.mxu0 %v380
      %555 = vmatprep.subr.mxu0 0.0
      %556 = vmatpush1.msra.mxu0 %v383
      %557 = vmatprep.subr.mxu0 0.0
      %558 = vmatpush1.msra.mxu0 %v386
      %559 = vmatprep.subr.mxu0 0.0
      %560 = vmatpush1.msra.mxu0 %v389
      %561 = vmatprep.subr.mxu0 0.0
      %562 = vmatpush1.msra.mxu0 %v392
      %563 = vmatprep.subr.mxu0 0.0
      %564 = vmatpush1.msra.mxu0 %v395
      %565 = vmatprep.subr.mxu0 0.0
      %566 = vmatpush1.msra.mxu0 %v398
      %567 = vmatprep.subr.mxu0 0.0
      %568 = vmatpush1.msra.mxu0 %v401
      %569 = vmatprep.subr.mxu0 0.0
      %570 = vmatpush1.msra.mxu0 %v404
      %571 = vmatprep.subr.mxu0 0.0
      %572 = vmatpush1.msra.mxu0 %v407
      %573 = vmatprep.subr.mxu0 0.0
      %574 = vmatpush1.msra.mxu0 %v410
      %575 = vmatprep.subr.mxu0 0.0
      %576 = vmatpush1.msra.mxu0 %v413
      %577 = vmatprep.subr.mxu0 0.0
      %578 = vmatpush1.msra.mxu0 %v416
      %579 = vmatprep.subr.mxu0 0.0
      %580 = vmatpush1.msra.mxu0 0.0
      %581 = vmatprep.subr.mxu0 0.0
      %582 = vmatpush1.msra.mxu0 0.0
      %583 = vmatprep.subr.mxu0 0.0
      %584 = vmatpush1.msra.mxu0 0.0
      %585 = vmatprep.subr.mxu0 0.0
      %586 = vmatpush1.msra.mxu0 0.0
      %587 = vmatprep.subr.mxu0 0.0
      %588 = vmatpush1.msra.mxu0 0.0
      %589 = vmatprep.subr.mxu0 0.0
      %590 = vmatpush1.msra.mxu0 0.0
      %591 = vmatprep.subr.mxu0 0.0
      %592 = vmatpush1.msra.mxu0 0.0
      %593 = vmatprep.subr.mxu0 0.0
      %594 = vmatpush1.msra.mxu0 0.0
      %595 = vmatprep.subr.mxu0 0.0
      %596 = vmatpush1.msra.mxu0 0.0
      %597 = vmatprep.subr.mxu0 0.0
      %598 = vmatpush1.msra.mxu0 0.0
      %599 = vmatprep.subr.mxu0 0.0
      %600 = vmatpush1.msra.mxu0 0.0
      %601 = vmatprep.subr.mxu0 0.0
      %602 = vmatpush1.msra.mxu0 0.0
      %603 = vmatprep.subr.mxu0 0.0
      %604 = vmatpush1.msra.mxu0 0.0
      %605 = vmatprep.subr.mxu0 0.0
      %606 = vmatpush1.msra.mxu0 0.0
      %607 = vmatprep.subr.mxu0 0.0
      %608 = vmatpush1.msra.mxu0 0.0
      %609 = vmatprep.subr.mxu0 0.0
      %610 = vmatpush1.msra.mxu0 0.0
      %611 = vmatprep.mubr.f32.mxu0 0.0
      %612 = vmatmul.mubr.f32.gmra.mrb[0].mxu0 %v360
      %v613 = vpop.f32.mrb[0].mxu0
      %v614 = vadd.f32 %v430, %v613
      %v615 = vpop.f32.mrb[0].mxu0
      %616 = vmatprep.mubr.f32.mxu0 0.0
      %617 = vmatmul.mubr.f32.gmra.mrb[0].mxu0 %v361
      %v618 = vpop.f32.mrb[0].mxu0
      %v619 = vadd.f32 %v430, %v618
      %v620 = vpop.f32.mrb[0].mxu0
      %621 = vmatprep.mubr.f32.mxu0 0.0
      %622 = vmatmul.mubr.f32.gmra.mrb[0].mxu0 %v362
      %v623 = vpop.f32.mrb[0].mxu0
      %v624 = vadd.f32 %v430, %v623
      %v625 = vpop.f32.mrb[0].mxu0
      %626 = vmatprep.mubr.f32.mxu0 0.0
      %627 = vmatmul.mubr.f32.gmra.mrb[0].mxu0 %v363
      %v628 = vpop.f32.mrb[0].mxu0
      %v629 = vadd.f32 %v430, %v628
      %v630 = vpop.f32.mrb[0].mxu0
      %631 = vmatprep.mubr.f32.mxu0 0.0
      %632 = vmatmul.mubr.f32.gmra.mrb[0].mxu0 %v364
      %v633 = vpop.f32.mrb[0].mxu0
      %v634 = vadd.f32 %v430, %v633
      %v635 = vpop.f32.mrb[0].mxu0
      %636 = vmatprep.mubr.f32.mxu0 0.0
      %637 = vmatmul.mubr.f32.gmra.mrb[0].mxu0 %v365
      %v638 = vpop.f32.mrb[0].mxu0
      %v639 = vadd.f32 %v430, %v638
      %v640 = vpop.f32.mrb[0].mxu0
      %641 = vmatprep.mubr.f32.mxu0 0.0
      %642 = vmatmul.mubr.f32.gmra.mrb[0].mxu0 %v366
      %v643 = vpop.f32.mrb[0].mxu0
      %v644 = vadd.f32 %v430, %v643
      %v645 = vpop.f32.mrb[0].mxu0
      %646 = vmatprep.mubr.f32.mxu0 0.0
      %647 = vmatmul.mubr.f32.gmra.mrb[0].mxu0 %v367
      %v648 = vpop.f32.mrb[0].mxu0
      %v649 = vadd.f32 %v430, %v648
      %v650 = vpop.f32.mrb[0].mxu0
      %651 = vdwg.mxu0
      %vm652 = vcmask 523264
      %v654 = vsel %vm652, %v501, 0
      %v657 = vsel %vm652, %v503, 0
      %659 = vmatprep.subr.mxu0 0.0
      %660 = vmatpush1.xpose.msra.mxu0 %v657
      %661 = vmatprep.subr.mxu0 0.0
      %662 = vmatpush1.xpose.msra.mxu0 0.0
      %663 = vmatprep.subr.mxu0 0.0
      %664 = vmatpush1.xpose.msra.mxu0 0.0
      %665 = vmatprep.subr.mxu0 0.0
      %666 = vmatpush1.xpose.msra.mxu0 0.0
      %667 = vmatprep.subr.mxu0 0.0
      %668 = vmatpush1.xpose.msra.mxu0 0.0
      %669 = vmatprep.subr.mxu0 0.0
      %670 = vmatpush1.xpose.msra.mxu0 0.0
      %671 = vmatprep.subr.mxu0 0.0
      %672 = vmatpush1.xpose.msra.mxu0 0.0
      %673 = vmatprep.subr.mxu0 0.0
      %674 = vmatpush1.xpose.msra.mxu0 0.0
      %675 = vmatprep.subr.mxu0 0.0
      %676 = vmatpush1.xpose.msra.mxu0 0.0
      %677 = vmatprep.subr.mxu0 0.0
      %678 = vmatpush1.xpose.msra.mxu0 0.0
      %679 = vmatprep.subr.mxu0 0.0
      %680 = vmatpush1.xpose.msra.mxu0 0.0
      %681 = vmatprep.subr.mxu0 0.0
      %682 = vmatpush1.xpose.msra.mxu0 0.0
      %683 = vmatprep.subr.mxu0 0.0
      %684 = vmatpush1.xpose.msra.mxu0 0.0
      %685 = vmatprep.subr.mxu0 0.0
      %686 = vmatpush1.xpose.msra.mxu0 0.0
      %687 = vmatprep.subr.mxu0 0.0
      %688 = vmatpush1.xpose.msra.mxu0 0.0
      %689 = vmatprep.subr.mxu0 0.0
      %690 = vmatpush1.xpose.msra.mxu0 0.0
      %691 = vmatprep.subr.mxu0 0.0
      %692 = vmatpush1.xpose.msra.mxu0 0.0
      %693 = vmatprep.subr.mxu0 0.0
      %694 = vmatpush1.xpose.msra.mxu0 0.0
      %695 = vmatprep.subr.mxu0 0.0
      %696 = vmatpush1.xpose.msra.mxu0 0.0
      %697 = vmatprep.subr.mxu0 0.0
      %698 = vmatpush1.xpose.msra.mxu0 0.0
      %699 = vmatprep.subr.mxu0 0.0
      %700 = vmatpush1.xpose.msra.mxu0 0.0
      %701 = vmatprep.subr.mxu0 0.0
      %702 = vmatpush1.xpose.msra.mxu0 0.0
      %703 = vmatprep.subr.mxu0 0.0
      %704 = vmatpush1.xpose.msra.mxu0 0.0
      %705 = vmatprep.subr.mxu0 0.0
      %706 = vmatpush1.xpose.msra.mxu0 0.0
      %707 = vmatprep.subr.mxu0 0.0
      %708 = vmatpush1.xpose.msra.mxu0 0.0
      %709 = vmatprep.subr.mxu0 0.0
      %710 = vmatpush1.xpose.msra.mxu0 0.0
      %711 = vmatprep.subr.mxu0 0.0
      %712 = vmatpush1.xpose.msra.mxu0 0.0
      %713 = vmatprep.subr.mxu0 0.0
      %714 = vmatpush1.xpose.msra.mxu0 0.0
      %715 = vmatprep.subr.mxu0 0.0
      %716 = vmatpush1.xpose.msra.mxu0 0.0
      %717 = vmatprep.subr.mxu0 0.0
      %718 = vmatpush1.xpose.msra.mxu0 0.0
      %719 = vmatprep.subr.mxu0 0.0
      %720 = vmatpush1.xpose.msra.mxu0 0.0
      %721 = vmatprep.subr.mxu0 0.0
      %722 = vmatpush1.xpose.msra.mxu0 0.0
      %723 = vmatprep.mubr.f32.mxu0 0.0
      %724 = vmatmul.mubr.f32.gmra.mrb[0].mxu0 %v654
      %v725 = vpop.f32.mrb[0].mxu0
      %v726 = vadd.f32 0.0, %v725
      %v727 = vpop.f32.mrb[0].mxu0
      %728 = vdwg.mxu0
      %v730 = vsel %vm652, %v507, 0
      %v733 = vsel %vm652, %v509, 0
      %735 = vmatprep.subr.mxu0 0.0
      %736 = vmatpush1.xpose.msra.mxu0 %v733
      %737 = vmatprep.subr.mxu0 0.0
      %738 = vmatpush1.xpose.msra.mxu0 0.0
      %739 = vmatprep.subr.mxu0 0.0
      %740 = vmatpush1.xpose.msra.mxu0 0.0
      %741 = vmatprep.subr.mxu0 0.0
      %742 = vmatpush1.xpose.msra.mxu0 0.0
      %743 = vmatprep.subr.mxu0 0.0
      %744 = vmatpush1.xpose.msra.mxu0 0.0
      %745 = vmatprep.subr.mxu0 0.0
      %746 = vmatpush1.xpose.msra.mxu0 0.0
      %747 = vmatprep.subr.mxu0 0.0
      %748 = vmatpush1.xpose.msra.mxu0 0.0
      %749 = vmatprep.subr.mxu0 0.0
      %750 = vmatpush1.xpose.msra.mxu0 0.0
      %751 = vmatprep.subr.mxu0 0.0
      %752 = vmatpush1.xpose.msra.mxu0 0.0
      %753 = vmatprep.subr.mxu0 0.0
      %754 = vmatpush1.xpose.msra.mxu0 0.0
      %755 = vmatprep.subr.mxu0 0.0
      %756 = vmatpush1.xpose.msra.mxu0 0.0
      %757 = vmatprep.subr.mxu0 0.0
      %758 = vmatpush1.xpose.msra.mxu0 0.0
      %759 = vmatprep.subr.mxu0 0.0
      %760 = vmatpush1.xpose.msra.mxu0 0.0
      %761 = vmatprep.subr.mxu0 0.0
      %762 = vmatpush1.xpose.msra.mxu0 0.0
      %763 = vmatprep.subr.mxu0 0.0
      %764 = vmatpush1.xpose.msra.mxu0 0.0
      %765 = vmatprep.subr.mxu0 0.0
      %766 = vmatpush1.xpose.msra.mxu0 0.0
      %767 = vmatprep.subr.mxu0 0.0
      %768 = vmatpush1.xpose.msra.mxu0 0.0
      %769 = vmatprep.subr.mxu0 0.0
      %770 = vmatpush1.xpose.msra.mxu0 0.0
      %771 = vmatprep.subr.mxu0 0.0
      %772 = vmatpush1.xpose.msra.mxu0 0.0
      %773 = vmatprep.subr.mxu0 0.0
      %774 = vmatpush1.xpose.msra.mxu0 0.0
      %775 = vmatprep.subr.mxu0 0.0
      %776 = vmatpush1.xpose.msra.mxu0 0.0
      %777 = vmatprep.subr.mxu0 0.0
      %778 = vmatpush1.xpose.msra.mxu0 0.0
      %779 = vmatprep.subr.mxu0 0.0
      %780 = vmatpush1.xpose.msra.mxu0 0.0
      %781 = vmatprep.subr.mxu0 0.0
      %782 = vmatpush1.xpose.msra.mxu0 0.0
      %783 = vmatprep.subr.mxu0 0.0
      %784 = vmatpush1.xpose.msra.mxu0 0.0
      %785 = vmatprep.subr.mxu0 0.0
      %786 = vmatpush1.xpose.msra.mxu0 0.0
      %787 = vmatprep.subr.mxu0 0.0
      %788 = vmatpush1.xpose.msra.mxu0 0.0
      %789 = vmatprep.subr.mxu0 0.0
      %790 = vmatpush1.xpose.msra.mxu0 0.0
      %791 = vmatprep.subr.mxu0 0.0
      %792 = vmatpush1.xpose.msra.mxu0 0.0
      %793 = vmatprep.subr.mxu0 0.0
      %794 = vmatpush1.xpose.msra.mxu0 0.0
      %795 = vmatprep.subr.mxu0 0.0
      %796 = vmatpush1.xpose.msra.mxu0 0.0
      %797 = vmatprep.subr.mxu0 0.0
      %798 = vmatpush1.xpose.msra.mxu0 0.0
      %799 = vmatprep.mubr.f32.mxu0 0.0
      %800 = vmatmul.mubr.f32.gmra.mrb[0].mxu0 %v730
      %v801 = vpop.f32.mrb[0].mxu0
      %v802 = vadd.f32 0.0, %v801
      %v803 = vpop.f32.mrb[0].mxu0
      %804 = vdwg.mxu0
      %v806 = vsel %vm652, %v513, 0
      %v809 = vsel %vm652, %v515, 0
      %811 = vmatprep.subr.mxu0 0.0
      %812 = vmatpush1.xpose.msra.mxu0 %v809
      %813 = vmatprep.subr.mxu0 0.0
      %814 = vmatpush1.xpose.msra.mxu0 0.0
      %815 = vmatprep.subr.mxu0 0.0
      %816 = vmatpush1.xpose.msra.mxu0 0.0
      %817 = vmatprep.subr.mxu0 0.0
      %818 = vmatpush1.xpose.msra.mxu0 0.0
      %819 = vmatprep.subr.mxu0 0.0
      %820 = vmatpush1.xpose.msra.mxu0 0.0
      %821 = vmatprep.subr.mxu0 0.0
      %822 = vmatpush1.xpose.msra.mxu0 0.0
      %823 = vmatprep.subr.mxu0 0.0
      %824 = vmatpush1.xpose.msra.mxu0 0.0
      %825 = vmatprep.subr.mxu0 0.0
      %826 = vmatpush1.xpose.msra.mxu0 0.0
      %827 = vmatprep.subr.mxu0 0.0
      %828 = vmatpush1.xpose.msra.mxu0 0.0
      %829 = vmatprep.subr.mxu0 0.0
      %830 = vmatpush1.xpose.msra.mxu0 0.0
      %831 = vmatprep.subr.mxu0 0.0
      %832 = vmatpush1.xpose.msra.mxu0 0.0
      %833 = vmatprep.subr.mxu0 0.0
      %834 = vmatpush1.xpose.msra.mxu0 0.0
      %835 = vmatprep.subr.mxu0 0.0
      %836 = vmatpush1.xpose.msra.mxu0 0.0
      %837 = vmatprep.subr.mxu0 0.0
      %838 = vmatpush1.xpose.msra.mxu0 0.0
      %839 = vmatprep.subr.mxu0 0.0
      %840 = vmatpush1.xpose.msra.mxu0 0.0
      %841 = vmatprep.subr.mxu0 0.0
      %842 = vmatpush1.xpose.msra.mxu0 0.0
      %843 = vmatprep.subr.mxu0 0.0
      %844 = vmatpush1.xpose.msra.mxu0 0.0
      %845 = vmatprep.subr.mxu0 0.0
      %846 = vmatpush1.xpose.msra.mxu0 0.0
      %847 = vmatprep.subr.mxu0 0.0
      %848 = vmatpush1.xpose.msra.mxu0 0.0
      %849 = vmatprep.subr.mxu0 0.0
      %850 = vmatpush1.xpose.msra.mxu0 0.0
      %851 = vmatprep.subr.mxu0 0.0
      %852 = vmatpush1.xpose.msra.mxu0 0.0
      %853 = vmatprep.subr.mxu0 0.0
      %854 = vmatpush1.xpose.msra.mxu0 0.0
      %855 = vmatprep.subr.mxu0 0.0
      %856 = vmatpush1.xpose.msra.mxu0 0.0
      %857 = vmatprep.subr.mxu0 0.0
      %858 = vmatpush1.xpose.msra.mxu0 0.0
      %859 = vmatprep.subr.mxu0 0.0
      %860 = vmatpush1.xpose.msra.mxu0 0.0
      %861 = vmatprep.subr.mxu0 0.0
      %862 = vmatpush1.xpose.msra.mxu0 0.0
      %863 = vmatprep.subr.mxu0 0.0
      %864 = vmatpush1.xpose.msra.mxu0 0.0
      %865 = vmatprep.subr.mxu0 0.0
      %866 = vmatpush1.xpose.msra.mxu0 0.0
      %867 = vmatprep.subr.mxu0 0.0
      %868 = vmatpush1.xpose.msra.mxu0 0.0
      %869 = vmatprep.subr.mxu0 0.0
      %870 = vmatpush1.xpose.msra.mxu0 0.0
      %871 = vmatprep.subr.mxu0 0.0
      %872 = vmatpush1.xpose.msra.mxu0 0.0
      %873 = vmatprep.subr.mxu0 0.0
      %874 = vmatpush1.xpose.msra.mxu0 0.0
      %875 = vmatprep.mubr.f32.mxu0 0.0
      %876 = vmatmul.mubr.f32.gmra.mrb[0].mxu0 %v806
      %v877 = vpop.f32.mrb[0].mxu0
      %v878 = vadd.f32 0.0, %v877
      %v879 = vpop.f32.mrb[0].mxu0
      %880 = vdwg.mxu0
      %v882 = vsel %vm652, %v519, 0
      %v885 = vsel %vm652, %v521, 0
      %887 = vmatprep.subr.mxu0 0.0
      %888 = vmatpush1.xpose.msra.mxu0 %v885
      %889 = vmatprep.subr.mxu0 0.0
      %890 = vmatpush1.xpose.msra.mxu0 0.0
      %891 = vmatprep.subr.mxu0 0.0
      %892 = vmatpush1.xpose.msra.mxu0 0.0
      %893 = vmatprep.subr.mxu0 0.0
      %894 = vmatpush1.xpose.msra.mxu0 0.0
      %895 = vmatprep.subr.mxu0 0.0
      %896 = vmatpush1.xpose.msra.mxu0 0.0
      %897 = vmatprep.subr.mxu0 0.0
      %898 = vmatpush1.xpose.msra.mxu0 0.0
      %899 = vmatprep.subr.mxu0 0.0
      %900 = vmatpush1.xpose.msra.mxu0 0.0
      %901 = vmatprep.subr.mxu0 0.0
      %902 = vmatpush1.xpose.msra.mxu0 0.0
      %903 = vmatprep.subr.mxu0 0.0
      %904 = vmatpush1.xpose.msra.mxu0 0.0
      %905 = vmatprep.subr.mxu0 0.0
      %906 = vmatpush1.xpose.msra.mxu0 0.0
      %907 = vmatprep.subr.mxu0 0.0
      %908 = vmatpush1.xpose.msra.mxu0 0.0
      %909 = vmatprep.subr.mxu0 0.0
      %910 = vmatpush1.xpose.msra.mxu0 0.0
      %911 = vmatprep.subr.mxu0 0.0
      %912 = vmatpush1.xpose.msra.mxu0 0.0
      %913 = vmatprep.subr.mxu0 0.0
      %914 = vmatpush1.xpose.msra.mxu0 0.0
      %915 = vmatprep.subr.mxu0 0.0
      %916 = vmatpush1.xpose.msra.mxu0 0.0
      %917 = vmatprep.subr.mxu0 0.0
      %918 = vmatpush1.xpose.msra.mxu0 0.0
      %919 = vmatprep.subr.mxu0 0.0
      %920 = vmatpush1.xpose.msra.mxu0 0.0
      %921 = vmatprep.subr.mxu0 0.0
      %922 = vmatpush1.xpose.msra.mxu0 0.0
      %923 = vmatprep.subr.mxu0 0.0
      %924 = vmatpush1.xpose.msra.mxu0 0.0
      %925 = vmatprep.subr.mxu0 0.0
      %926 = vmatpush1.xpose.msra.mxu0 0.0
      %927 = vmatprep.subr.mxu0 0.0
      %928 = vmatpush1.xpose.msra.mxu0 0.0
      %929 = vmatprep.subr.mxu0 0.0
      %930 = vmatpush1.xpose.msra.mxu0 0.0
      %931 = vmatprep.subr.mxu0 0.0
      %932 = vmatpush1.xpose.msra.mxu0 0.0
      %933 = vmatprep.subr.mxu0 0.0
      %934 = vmatpush1.xpose.msra.mxu0 0.0
      %935 = vmatprep.subr.mxu0 0.0
      %936 = vmatpush1.xpose.msra.mxu0 0.0
      %937 = vmatprep.subr.mxu0 0.0
      %938 = vmatpush1.xpose.msra.mxu0 0.0
      %939 = vmatprep.subr.mxu0 0.0
      %940 = vmatpush1.xpose.msra.mxu0 0.0
      %941 = vmatprep.subr.mxu0 0.0
      %942 = vmatpush1.xpose.msra.mxu0 0.0
      %943 = vmatprep.subr.mxu0 0.0
      %944 = vmatpush1.xpose.msra.mxu0 0.0
      %945 = vmatprep.subr.mxu0 0.0
      %946 = vmatpush1.xpose.msra.mxu0 0.0
      %947 = vmatprep.subr.mxu0 0.0
      %948 = vmatpush1.xpose.msra.mxu0 0.0
      %949 = vmatprep.subr.mxu0 0.0
      %950 = vmatpush1.xpose.msra.mxu0 0.0
      %951 = vmatprep.mubr.f32.mxu0 0.0
      %952 = vmatmul.mubr.f32.gmra.mrb[0].mxu0 %v882
      %v953 = vpop.f32.mrb[0].mxu0
      %v954 = vadd.f32 0.0, %v953
      %v955 = vpop.f32.mrb[0].mxu0
      %956 = vdwg.mxu0
      %v958 = vsel %vm652, %v525, 0
      %v961 = vsel %vm652, %v527, 0
      %963 = vmatprep.subr.mxu0 0.0
      %964 = vmatpush1.xpose.msra.mxu0 %v961
      %965 = vmatprep.subr.mxu0 0.0
      %966 = vmatpush1.xpose.msra.mxu0 0.0
      %967 = vmatprep.subr.mxu0 0.0
      %968 = vmatpush1.xpose.msra.mxu0 0.0
      %969 = vmatprep.subr.mxu0 0.0
      %970 = vmatpush1.xpose.msra.mxu0 0.0
      %971 = vmatprep.subr.mxu0 0.0
      %972 = vmatpush1.xpose.msra.mxu0 0.0
      %973 = vmatprep.subr.mxu0 0.0
      %974 = vmatpush1.xpose.msra.mxu0 0.0
      %975 = vmatprep.subr.mxu0 0.0
      %976 = vmatpush1.xpose.msra.mxu0 0.0
      %977 = vmatprep.subr.mxu0 0.0
      %978 = vmatpush1.xpose.msra.mxu0 0.0
      %979 = vmatprep.subr.mxu0 0.0
      %980 = vmatpush1.xpose.msra.mxu0 0.0
      %981 = vmatprep.subr.mxu0 0.0
      %982 = vmatpush1.xpose.msra.mxu0 0.0
      %983 = vmatprep.subr.mxu0 0.0
      %984 = vmatpush1.xpose.msra.mxu0 0.0
      %985 = vmatprep.subr.mxu0 0.0
      %986 = vmatpush1.xpose.msra.mxu0 0.0
      %987 = vmatprep.subr.mxu0 0.0
      %988 = vmatpush1.xpose.msra.mxu0 0.0
      %989 = vmatprep.subr.mxu0 0.0
      %990 = vmatpush1.xpose.msra.mxu0 0.0
      %991 = vmatprep.subr.mxu0 0.0
      %992 = vmatpush1.xpose.msra.mxu0 0.0
      %993 = vmatprep.subr.mxu0 0.0
      %994 = vmatpush1.xpose.msra.mxu0 0.0
      %995 = vmatprep.subr.mxu0 0.0
      %996 = vmatpush1.xpose.msra.mxu0 0.0
      %997 = vmatprep.subr.mxu0 0.0
      %998 = vmatpush1.xpose.msra.mxu0 0.0
      %999 = vmatprep.subr.mxu0 0.0
      %1000 = vmatpush1.xpose.msra.mxu0 0.0
      %1001 = vmatprep.subr.mxu0 0.0
      %1002 = vmatpush1.xpose.msra.mxu0 0.0
      %1003 = vmatprep.subr.mxu0 0.0
      %1004 = vmatpush1.xpose.msra.mxu0 0.0
      %1005 = vmatprep.subr.mxu0 0.0
      %1006 = vmatpush1.xpose.msra.mxu0 0.0
      %1007 = vmatprep.subr.mxu0 0.0
      %1008 = vmatpush1.xpose.msra.mxu0 0.0
      %1009 = vmatprep.subr.mxu0 0.0
      %1010 = vmatpush1.xpose.msra.mxu0 0.0
      %1011 = vmatprep.subr.mxu0 0.0
      %1012 = vmatpush1.xpose.msra.mxu0 0.0
      %1013 = vmatprep.subr.mxu0 0.0
      %1014 = vmatpush1.xpose.msra.mxu0 0.0
      %1015 = vmatprep.subr.mxu0 0.0
      %1016 = vmatpush1.xpose.msra.mxu0 0.0
      %1017 = vmatprep.subr.mxu0 0.0
      %1018 = vmatpush1.xpose.msra.mxu0 0.0
      %1019 = vmatprep.subr.mxu0 0.0
      %1020 = vmatpush1.xpose.msra.mxu0 0.0
      %1021 = vmatprep.subr.mxu0 0.0
      %1022 = vmatpush1.xpose.msra.mxu0 0.0
      %1023 = vmatprep.subr.mxu0 0.0
      %1024 = vmatpush1.xpose.msra.mxu0 0.0
      %1025 = vmatprep.subr.mxu0 0.0
      %1026 = vmatpush1.xpose.msra.mxu0 0.0
      %1027 = vmatprep.mubr.f32.mxu0 0.0
      %1028 = vmatmul.mubr.f32.gmra.mrb[0].mxu0 %v958
      %v1029 = vpop.f32.mrb[0].mxu0
      %v1030 = vadd.f32 0.0, %v1029
      %v1031 = vpop.f32.mrb[0].mxu0
      %1032 = vdwg.mxu0
      %v1034 = vsel %vm652, %v531, 0
      %v1037 = vsel %vm652, %v533, 0
      %1039 = vmatprep.subr.mxu0 0.0
      %1040 = vmatpush1.xpose.msra.mxu0 %v1037
      %1041 = vmatprep.subr.mxu0 0.0
      %1042 = vmatpush1.xpose.msra.mxu0 0.0
      %1043 = vmatprep.subr.mxu0 0.0
      %1044 = vmatpush1.xpose.msra.mxu0 0.0
      %1045 = vmatprep.subr.mxu0 0.0
      %1046 = vmatpush1.xpose.msra.mxu0 0.0
      %1047 = vmatprep.subr.mxu0 0.0
      %1048 = vmatpush1.xpose.msra.mxu0 0.0
      %1049 = vmatprep.subr.mxu0 0.0
      %1050 = vmatpush1.xpose.msra.mxu0 0.0
      %1051 = vmatprep.subr.mxu0 0.0
      %1052 = vmatpush1.xpose.msra.mxu0 0.0
      %1053 = vmatprep.subr.mxu0 0.0
      %1054 = vmatpush1.xpose.msra.mxu0 0.0
      %1055 = vmatprep.subr.mxu0 0.0
      %1056 = vmatpush1.xpose.msra.mxu0 0.0
      %1057 = vmatprep.subr.mxu0 0.0
      %1058 = vmatpush1.xpose.msra.mxu0 0.0
      %1059 = vmatprep.subr.mxu0 0.0
      %1060 = vmatpush1.xpose.msra.mxu0 0.0
      %1061 = vmatprep.subr.mxu0 0.0
      %1062 = vmatpush1.xpose.msra.mxu0 0.0
      %1063 = vmatprep.subr.mxu0 0.0
      %1064 = vmatpush1.xpose.msra.mxu0 0.0
      %1065 = vmatprep.subr.mxu0 0.0
      %1066 = vmatpush1.xpose.msra.mxu0 0.0
      %1067 = vmatprep.subr.mxu0 0.0
      %1068 = vmatpush1.xpose.msra.mxu0 0.0
      %1069 = vmatprep.subr.mxu0 0.0
      %1070 = vmatpush1.xpose.msra.mxu0 0.0
      %1071 = vmatprep.subr.mxu0 0.0
      %1072 = vmatpush1.xpose.msra.mxu0 0.0
      %1073 = vmatprep.subr.mxu0 0.0
      %1074 = vmatpush1.xpose.msra.mxu0 0.0
      %1075 = vmatprep.subr.mxu0 0.0
      %1076 = vmatpush1.xpose.msra.mxu0 0.0
      %1077 = vmatprep.subr.mxu0 0.0
      %1078 = vmatpush1.xpose.msra.mxu0 0.0
      %1079 = vmatprep.subr.mxu0 0.0
      %1080 = vmatpush1.xpose.msra.mxu0 0.0
      %1081 = vmatprep.subr.mxu0 0.0
      %1082 = vmatpush1.xpose.msra.mxu0 0.0
      %1083 = vmatprep.subr.mxu0 0.0
      %1084 = vmatpush1.xpose.msra.mxu0 0.0
      %1085 = vmatprep.subr.mxu0 0.0
      %1086 = vmatpush1.xpose.msra.mxu0 0.0
      %1087 = vmatprep.subr.mxu0 0.0
      %1088 = vmatpush1.xpose.msra.mxu0 0.0
      %1089 = vmatprep.subr.mxu0 0.0
      %1090 = vmatpush1.xpose.msra.mxu0 0.0
      %1091 = vmatprep.subr.mxu0 0.0
      %1092 = vmatpush1.xpose.msra.mxu0 0.0
      %1093 = vmatprep.subr.mxu0 0.0
      %1094 = vmatpush1.xpose.msra.mxu0 0.0
      %1095 = vmatprep.subr.mxu0 0.0
      %1096 = vmatpush1.xpose.msra.mxu0 0.0
      %1097 = vmatprep.subr.mxu0 0.0
      %1098 = vmatpush1.xpose.msra.mxu0 0.0
      %1099 = vmatprep.subr.mxu0 0.0
      %1100 = vmatpush1.xpose.msra.mxu0 0.0
      %1101 = vmatprep.subr.mxu0 0.0
      %1102 = vmatpush1.xpose.msra.mxu0 0.0
      %1103 = vmatprep.mubr.f32.mxu0 0.0
      %1104 = vmatmul.mubr.f32.gmra.mrb[0].mxu0 %v1034
      %v1105 = vpop.f32.mrb[0].mxu0
      %v1106 = vadd.f32 0.0, %v1105
      %v1107 = vpop.f32.mrb[0].mxu0
      %1108 = vdwg.mxu0
      %v1110 = vsel %vm652, %v537, 0
      %v1113 = vsel %vm652, %v539, 0
      %1115 = vmatprep.subr.mxu0 0.0
      %1116 = vmatpush1.xpose.msra.mxu0 %v1113
      %1117 = vmatprep.subr.mxu0 0.0
      %1118 = vmatpush1.xpose.msra.mxu0 0.0
      %1119 = vmatprep.subr.mxu0 0.0
      %1120 = vmatpush1.xpose.msra.mxu0 0.0
      %1121 = vmatprep.subr.mxu0 0.0
      %1122 = vmatpush1.xpose.msra.mxu0 0.0
      %1123 = vmatprep.subr.mxu0 0.0
      %1124 = vmatpush1.xpose.msra.mxu0 0.0
      %1125 = vmatprep.subr.mxu0 0.0
      %1126 = vmatpush1.xpose.msra.mxu0 0.0
      %1127 = vmatprep.subr.mxu0 0.0
      %1128 = vmatpush1.xpose.msra.mxu0 0.0
      %1129 = vmatprep.subr.mxu0 0.0
      %1130 = vmatpush1.xpose.msra.mxu0 0.0
      %1131 = vmatprep.subr.mxu0 0.0
      %1132 = vmatpush1.xpose.msra.mxu0 0.0
      %1133 = vmatprep.subr.mxu0 0.0
      %1134 = vmatpush1.xpose.msra.mxu0 0.0
      %1135 = vmatprep.subr.mxu0 0.0
      %1136 = vmatpush1.xpose.msra.mxu0 0.0
      %1137 = vmatprep.subr.mxu0 0.0
      %1138 = vmatpush1.xpose.msra.mxu0 0.0
      %1139 = vmatprep.subr.mxu0 0.0
      %1140 = vmatpush1.xpose.msra.mxu0 0.0
      %1141 = vmatprep.subr.mxu0 0.0
      %1142 = vmatpush1.xpose.msra.mxu0 0.0
      %1143 = vmatprep.subr.mxu0 0.0
      %1144 = vmatpush1.xpose.msra.mxu0 0.0
      %1145 = vmatprep.subr.mxu0 0.0
      %1146 = vmatpush1.xpose.msra.mxu0 0.0
      %1147 = vmatprep.subr.mxu0 0.0
      %1148 = vmatpush1.xpose.msra.mxu0 0.0
      %1149 = vmatprep.subr.mxu0 0.0
      %1150 = vmatpush1.xpose.msra.mxu0 0.0
      %1151 = vmatprep.subr.mxu0 0.0
      %1152 = vmatpush1.xpose.msra.mxu0 0.0
      %1153 = vmatprep.subr.mxu0 0.0
      %1154 = vmatpush1.xpose.msra.mxu0 0.0
      %1155 = vmatprep.subr.mxu0 0.0
      %1156 = vmatpush1.xpose.msra.mxu0 0.0
      %1157 = vmatprep.subr.mxu0 0.0
      %1158 = vmatpush1.xpose.msra.mxu0 0.0
      %1159 = vmatprep.subr.mxu0 0.0
      %1160 = vmatpush1.xpose.msra.mxu0 0.0
      %1161 = vmatprep.subr.mxu0 0.0
      %1162 = vmatpush1.xpose.msra.mxu0 0.0
      %1163 = vmatprep.subr.mxu0 0.0
      %1164 = vmatpush1.xpose.msra.mxu0 0.0
      %1165 = vmatprep.subr.mxu0 0.0
      %1166 = vmatpush1.xpose.msra.mxu0 0.0
      %1167 = vmatprep.subr.mxu0 0.0
      %1168 = vmatpush1.xpose.msra.mxu0 0.0
      %1169 = vmatprep.subr.mxu0 0.0
      %1170 = vmatpush1.xpose.msra.mxu0 0.0
      %1171 = vmatprep.subr.mxu0 0.0
      %1172 = vmatpush1.xpose.msra.mxu0 0.0
      %1173 = vmatprep.subr.mxu0 0.0
      %1174 = vmatpush1.xpose.msra.mxu0 0.0
      %1175 = vmatprep.subr.mxu0 0.0
      %1176 = vmatpush1.xpose.msra.mxu0 0.0
      %1177 = vmatprep.subr.mxu0 0.0
      %1178 = vmatpush1.xpose.msra.mxu0 0.0
      %1179 = vmatprep.mubr.f32.mxu0 0.0
      %1180 = vmatmul.mubr.f32.gmra.mrb[0].mxu0 %v1110
      %v1181 = vpop.f32.mrb[0].mxu0
      %v1182 = vadd.f32 0.0, %v1181
      %v1183 = vpop.f32.mrb[0].mxu0
      %1184 = vdwg.mxu0
      %v1186 = vsel %vm652, %v543, 0
      %v1189 = vsel %vm652, %v545, 0
      %1191 = vmatprep.subr.mxu0 0.0
      %1192 = vmatpush1.xpose.msra.mxu0 %v1189
      %1193 = vmatprep.subr.mxu0 0.0
      %1194 = vmatpush1.xpose.msra.mxu0 0.0
      %1195 = vmatprep.subr.mxu0 0.0
      %1196 = vmatpush1.xpose.msra.mxu0 0.0
      %1197 = vmatprep.subr.mxu0 0.0
      %1198 = vmatpush1.xpose.msra.mxu0 0.0
      %1199 = vmatprep.subr.mxu0 0.0
      %1200 = vmatpush1.xpose.msra.mxu0 0.0
      %1201 = vmatprep.subr.mxu0 0.0
      %1202 = vmatpush1.xpose.msra.mxu0 0.0
      %1203 = vmatprep.subr.mxu0 0.0
      %1204 = vmatpush1.xpose.msra.mxu0 0.0
      %1205 = vmatprep.subr.mxu0 0.0
      %1206 = vmatpush1.xpose.msra.mxu0 0.0
      %1207 = vmatprep.subr.mxu0 0.0
      %1208 = vmatpush1.xpose.msra.mxu0 0.0
      %1209 = vmatprep.subr.mxu0 0.0
      %1210 = vmatpush1.xpose.msra.mxu0 0.0
      %1211 = vmatprep.subr.mxu0 0.0
      %1212 = vmatpush1.xpose.msra.mxu0 0.0
      %1213 = vmatprep.subr.mxu0 0.0
      %1214 = vmatpush1.xpose.msra.mxu0 0.0
      %1215 = vmatprep.subr.mxu0 0.0
      %1216 = vmatpush1.xpose.msra.mxu0 0.0
      %1217 = vmatprep.subr.mxu0 0.0
      %1218 = vmatpush1.xpose.msra.mxu0 0.0
      %1219 = vmatprep.subr.mxu0 0.0
      %1220 = vmatpush1.xpose.msra.mxu0 0.0
      %1221 = vmatprep.subr.mxu0 0.0
      %1222 = vmatpush1.xpose.msra.mxu0 0.0
      %1223 = vmatprep.subr.mxu0 0.0
      %1224 = vmatpush1.xpose.msra.mxu0 0.0
      %1225 = vmatprep.subr.mxu0 0.0
      %1226 = vmatpush1.xpose.msra.mxu0 0.0
      %1227 = vmatprep.subr.mxu0 0.0
      %1228 = vmatpush1.xpose.msra.mxu0 0.0
      %1229 = vmatprep.subr.mxu0 0.0
      %1230 = vmatpush1.xpose.msra.mxu0 0.0
      %1231 = vmatprep.subr.mxu0 0.0
      %1232 = vmatpush1.xpose.msra.mxu0 0.0
      %1233 = vmatprep.subr.mxu0 0.0
      %1234 = vmatpush1.xpose.msra.mxu0 0.0
      %1235 = vmatprep.subr.mxu0 0.0
      %1236 = vmatpush1.xpose.msra.mxu0 0.0
      %1237 = vmatprep.subr.mxu0 0.0
      %1238 = vmatpush1.xpose.msra.mxu0 0.0
      %1239 = vmatprep.subr.mxu0 0.0
      %1240 = vmatpush1.xpose.msra.mxu0 0.0
      %1241 = vmatprep.subr.mxu0 0.0
      %1242 = vmatpush1.xpose.msra.mxu0 0.0
      %1243 = vmatprep.subr.mxu0 0.0
      %1244 = vmatpush1.xpose.msra.mxu0 0.0
      %1245 = vmatprep.subr.mxu0 0.0
      %1246 = vmatpush1.xpose.msra.mxu0 0.0
      %1247 = vmatprep.subr.mxu0 0.0
      %1248 = vmatpush1.xpose.msra.mxu0 0.0
      %1249 = vmatprep.subr.mxu0 0.0
      %1250 = vmatpush1.xpose.msra.mxu0 0.0
      %1251 = vmatprep.subr.mxu0 0.0
      %1252 = vmatpush1.xpose.msra.mxu0 0.0
      %1253 = vmatprep.subr.mxu0 0.0
      %1254 = vmatpush1.xpose.msra.mxu0 0.0
      %1255 = vmatprep.mubr.f32.mxu0 0.0
      %1256 = vmatmul.mubr.f32.gmra.mrb[0].mxu0 %v1186
      %v1257 = vpop.f32.mrb[0].mxu0
      %v1258 = vadd.f32 0.0, %v1257
      %v1259 = vpop.f32.mrb[0].mxu0
      %1260 = vdwg.mxu0
      %v1261 = vmul.f32 %v726, 0.125
      %v1262 = vmul.f32 %v802, 0.125
      %v1263 = vmul.f32 %v878, 0.125
      %v1264 = vmul.f32 %v954, 0.125
      %v1265 = vmul.f32 %v1030, 0.125
      %v1266 = vmul.f32 %v1106, 0.125
      %v1267 = vmul.f32 %v1182, 0.125
      %v1268 = vmul.f32 %v1258, 0.125
      %vm1269 = vcmask 64512
      %v1270 = vsel %vm1269, %v1261, -inf
      %1271 = vmax.xlane.f32.xlu0 %v1270
      %v1272 = vpop.xlane.xlu0 %1271
      %v1273 = vsel %vm1269, %v1262, -inf
      %1274 = vmax.xlane.f32.xlu0 %v1273
      %v1275 = vpop.xlane.xlu0 %1274
      %v1276 = vsel %vm1269, %v1263, -inf
      %1277 = vmax.xlane.f32.xlu0 %v1276
      %v1278 = vpop.xlane.xlu0 %1277
      %v1279 = vsel %vm1269, %v1264, -inf
      %1280 = vmax.xlane.f32.xlu0 %v1279
      %v1281 = vpop.xlane.xlu0 %1280
      %v1282 = vsel %vm1269, %v1265, -inf
      %1283 = vmax.xlane.f32.xlu0 %v1282
      %v1284 = vpop.xlane.xlu0 %1283
      %v1285 = vsel %vm1269, %v1266, -inf
      %1286 = vmax.xlane.f32.xlu0 %v1285
      %v1287 = vpop.xlane.xlu0 %1286
      %v1288 = vsel %vm1269, %v1267, -inf
      %1289 = vmax.xlane.f32.xlu0 %v1288
      %v1290 = vpop.xlane.xlu0 %1289
      %v1291 = vsel %vm1269, %v1268, -inf
      %1292 = vmax.xlane.f32.xlu0 %v1291
      %v1293 = vpop.xlane.xlu0 %1292
      %v1294 = vsub.f32 %v1261, %v1272
      %v1295 = vsub.f32 %v1262, %v1275
      %v1296 = vsub.f32 %v1263, %v1278
      %v1297 = vsub.f32 %v1264, %v1281
      %v1298 = vsub.f32 %v1265, %v1284
      %v1299 = vsub.f32 %v1266, %v1287
      %v1300 = vsub.f32 %v1267, %v1290
      %v1301 = vsub.f32 %v1268, %v1293
      %v1302 = vmul.f32 %v1294, 1.442695
      %v1303 = vpow.pop %v1302
      %v1304 = vmul.f32 %v1295, 1.442695
      %v1305 = vpow.pop %v1304
      %v1306 = vmul.f32 %v1296, 1.442695
      %v1307 = vpow.pop %v1306
      %v1308 = vmul.f32 %v1297, 1.442695
      %v1309 = vpow.pop %v1308
      %v1310 = vmul.f32 %v1298, 1.442695
      %v1311 = vpow.pop %v1310
      %v1312 = vmul.f32 %v1299, 1.442695
      %v1313 = vpow.pop %v1312
      %v1314 = vmul.f32 %v1300, 1.442695
      %v1315 = vpow.pop %v1314
      %v1316 = vmul.f32 %v1301, 1.442695
      %v1317 = vpow.pop %v1316
      %v1318 = vsel %vm1269, %v1303, 0.0
      %1319 = vadd.xlane.f32.xlu0 %v1318
      %v1320 = vpop.xlane.xlu0 %1319
      %v1321 = vsel %vm1269, %v1305, 0.0
      %1322 = vadd.xlane.f32.xlu0 %v1321
      %v1323 = vpop.xlane.xlu0 %1322
      %v1324 = vsel %vm1269, %v1307, 0.0
      %1325 = vadd.xlane.f32.xlu0 %v1324
      %v1326 = vpop.xlane.xlu0 %1325
      %v1327 = vsel %vm1269, %v1309, 0.0
      %1328 = vadd.xlane.f32.xlu0 %v1327
      %v1329 = vpop.xlane.xlu0 %1328
      %v1330 = vsel %vm1269, %v1311, 0.0
      %1331 = vadd.xlane.f32.xlu0 %v1330
      %v1332 = vpop.xlane.xlu0 %1331
      %v1333 = vsel %vm1269, %v1313, 0.0
      %1334 = vadd.xlane.f32.xlu0 %v1333
      %v1335 = vpop.xlane.xlu0 %1334
      %v1336 = vsel %vm1269, %v1315, 0.0
      %1337 = vadd.xlane.f32.xlu0 %v1336
      %v1338 = vpop.xlane.xlu0 %1337
      %v1339 = vsel %vm1269, %v1317, 0.0
      %1340 = vadd.xlane.f32.xlu0 %v1339
      %v1341 = vpop.xlane.xlu0 %1340
      %v1342 = vrcp.pop %v1320
      %v1343 = vmul.f32 %v1303, %v1342
      %v1344 = vrcp.pop %v1323
      %v1345 = vmul.f32 %v1305, %v1344
      %v1346 = vrcp.pop %v1326
      %v1347 = vmul.f32 %v1307, %v1346
      %v1348 = vrcp.pop %v1329
      %v1349 = vmul.f32 %v1309, %v1348
      %v1350 = vrcp.pop %v1332
      %v1351 = vmul.f32 %v1311, %v1350
      %v1352 = vrcp.pop %v1335
      %v1353 = vmul.f32 %v1313, %v1352
      %v1354 = vrcp.pop %v1338
      %v1355 = vmul.f32 %v1315, %v1354
      %v1356 = vrcp.pop %v1341
      %v1357 = vmul.f32 %v1317, %v1356
      %v1359 = vsel %vm1269, %v1343, 0
      %1361 = vmatprep.subr.mxu0 0.0
      %1362 = vmatpush1.msra.mxu0 %v614
      %1363 = vmatprep.subr.mxu0 0.0
      %1364 = vmatpush1.msra.mxu0 0.0
      %1365 = vmatprep.subr.mxu0 0.0
      %1366 = vmatpush1.msra.mxu0 0.0
      %1367 = vmatprep.subr.mxu0 0.0
      %1368 = vmatpush1.msra.mxu0 0.0
      %1369 = vmatprep.subr.mxu0 0.0
      %1370 = vmatpush1.msra.mxu0 0.0
      %1371 = vmatprep.subr.mxu0 0.0
      %1372 = vmatpush1.msra.mxu0 0.0
      %1373 = vmatprep.subr.mxu0 0.0
      %1374 = vmatpush1.msra.mxu0 0.0
      %1375 = vmatprep.subr.mxu0 0.0
      %1376 = vmatpush1.msra.mxu0 0.0
      %1377 = vmatprep.subr.mxu0 0.0
      %1378 = vmatpush1.msra.mxu0 0.0
      %1379 = vmatprep.subr.mxu0 0.0
      %1380 = vmatpush1.msra.mxu0 0.0
      %1381 = vmatprep.subr.mxu0 0.0
      %1382 = vmatpush1.msra.mxu0 0.0
      %1383 = vmatprep.subr.mxu0 0.0
      %1384 = vmatpush1.msra.mxu0 0.0
      %1385 = vmatprep.subr.mxu0 0.0
      %1386 = vmatpush1.msra.mxu0 0.0
      %1387 = vmatprep.subr.mxu0 0.0
      %1388 = vmatpush1.msra.mxu0 0.0
      %1389 = vmatprep.subr.mxu0 0.0
      %1390 = vmatpush1.msra.mxu0 0.0
      %1391 = vmatprep.subr.mxu0 0.0
      %1392 = vmatpush1.msra.mxu0 0.0
      %1393 = vmatprep.subr.mxu0 0.0
      %1394 = vmatpush1.msra.mxu0 0.0
      %1395 = vmatprep.subr.mxu0 0.0
      %1396 = vmatpush1.msra.mxu0 0.0
      %1397 = vmatprep.subr.mxu0 0.0
      %1398 = vmatpush1.msra.mxu0 0.0
      %1399 = vmatprep.subr.mxu0 0.0
      %1400 = vmatpush1.msra.mxu0 0.0
      %1401 = vmatprep.subr.mxu0 0.0
      %1402 = vmatpush1.msra.mxu0 0.0
      %1403 = vmatprep.subr.mxu0 0.0
      %1404 = vmatpush1.msra.mxu0 0.0
      %1405 = vmatprep.subr.mxu0 0.0
      %1406 = vmatpush1.msra.mxu0 0.0
      %1407 = vmatprep.subr.mxu0 0.0
      %1408 = vmatpush1.msra.mxu0 0.0
      %1409 = vmatprep.subr.mxu0 0.0
      %1410 = vmatpush1.msra.mxu0 0.0
      %1411 = vmatprep.subr.mxu0 0.0
      %1412 = vmatpush1.msra.mxu0 0.0
      %1413 = vmatprep.subr.mxu0 0.0
      %1414 = vmatpush1.msra.mxu0 0.0
      %1415 = vmatprep.subr.mxu0 0.0
      %1416 = vmatpush1.msra.mxu0 0.0
      %1417 = vmatprep.subr.mxu0 0.0
      %1418 = vmatpush1.msra.mxu0 0.0
      %1419 = vmatprep.subr.mxu0 0.0
      %1420 = vmatpush1.msra.mxu0 0.0
      %1421 = vmatprep.subr.mxu0 0.0
      %1422 = vmatpush1.msra.mxu0 0.0
      %1423 = vmatprep.subr.mxu0 0.0
      %1424 = vmatpush1.msra.mxu0 0.0
      %1425 = vmatprep.mubr.f32.mxu0 0.0
      %1426 = vmatmul.mubr.f32.gmra.mrb[0].mxu0 %v1359
      %v1427 = vpop.f32.mrb[0].mxu0
      %v1428 = vadd.f32 0.0, %v1427
      %v1429 = vpop.f32.mrb[0].mxu0
      %1430 = vdwg.mxu0
      %v1432 = vsel %vm1269, %v1345, 0
      %1434 = vmatprep.subr.mxu0 0.0
      %1435 = vmatpush1.msra.mxu0 %v619
      %1436 = vmatprep.subr.mxu0 0.0
      %1437 = vmatpush1.msra.mxu0 0.0
      %1438 = vmatprep.subr.mxu0 0.0
      %1439 = vmatpush1.msra.mxu0 0.0
      %1440 = vmatprep.subr.mxu0 0.0
      %1441 = vmatpush1.msra.mxu0 0.0
      %1442 = vmatprep.subr.mxu0 0.0
      %1443 = vmatpush1.msra.mxu0 0.0
      %1444 = vmatprep.subr.mxu0 0.0
      %1445 = vmatpush1.msra.mxu0 0.0
      %1446 = vmatprep.subr.mxu0 0.0
      %1447 = vmatpush1.msra.mxu0 0.0
      %1448 = vmatprep.subr.mxu0 0.0
      %1449 = vmatpush1.msra.mxu0 0.0
      %1450 = vmatprep.subr.mxu0 0.0
      %1451 = vmatpush1.msra.mxu0 0.0
      %1452 = vmatprep.subr.mxu0 0.0
      %1453 = vmatpush1.msra.mxu0 0.0
      %1454 = vmatprep.subr.mxu0 0.0
      %1455 = vmatpush1.msra.mxu0 0.0
      %1456 = vmatprep.subr.mxu0 0.0
      %1457 = vmatpush1.msra.mxu0 0.0
      %1458 = vmatprep.subr.mxu0 0.0
      %1459 = vmatpush1.msra.mxu0 0.0
      %1460 = vmatprep.subr.mxu0 0.0
      %1461 = vmatpush1.msra.mxu0 0.0
      %1462 = vmatprep.subr.mxu0 0.0
      %1463 = vmatpush1.msra.mxu0 0.0
      %1464 = vmatprep.subr.mxu0 0.0
      %1465 = vmatpush1.msra.mxu0 0.0
      %1466 = vmatprep.subr.mxu0 0.0
      %1467 = vmatpush1.msra.mxu0 0.0
      %1468 = vmatprep.subr.mxu0 0.0
      %1469 = vmatpush1.msra.mxu0 0.0
      %1470 = vmatprep.subr.mxu0 0.0
      %1471 = vmatpush1.msra.mxu0 0.0
      %1472 = vmatprep.subr.mxu0 0.0
      %1473 = vmatpush1.msra.mxu0 0.0
      %1474 = vmatprep.subr.mxu0 0.0
      %1475 = vmatpush1.msra.mxu0 0.0
      %1476 = vmatprep.subr.mxu0 0.0
      %1477 = vmatpush1.msra.mxu0 0.0
      %1478 = vmatprep.subr.mxu0 0.0
      %1479 = vmatpush1.msra.mxu0 0.0
      %1480 = vmatprep.subr.mxu0 0.0
      %1481 = vmatpush1.msra.mxu0 0.0
      %1482 = vmatprep.subr.mxu0 0.0
      %1483 = vmatpush1.msra.mxu0 0.0
      %1484 = vmatprep.subr.mxu0 0.0
      %1485 = vmatpush1.msra.mxu0 0.0
      %1486 = vmatprep.subr.mxu0 0.0
      %1487 = vmatpush1.msra.mxu0 0.0
      %1488 = vmatprep.subr.mxu0 0.0
      %1489 = vmatpush1.msra.mxu0 0.0
      %1490 = vmatprep.subr.mxu0 0.0
      %1491 = vmatpush1.msra.mxu0 0.0
      %1492 = vmatprep.subr.mxu0 0.0
      %1493 = vmatpush1.msra.mxu0 0.0
      %1494 = vmatprep.subr.mxu0 0.0
      %1495 = vmatpush1.msra.mxu0 0.0
      %1496 = vmatprep.subr.mxu0 0.0
      %1497 = vmatpush1.msra.mxu0 0.0
      %1498 = vmatprep.mubr.f32.mxu0 0.0
      %1499 = vmatmul.mubr.f32.gmra.mrb[0].mxu0 %v1432
      %v1500 = vpop.f32.mrb[0].mxu0
      %v1501 = vadd.f32 0.0, %v1500
      %v1502 = vpop.f32.mrb[0].mxu0
      %1503 = vdwg.mxu0
      %v1505 = vsel %vm1269, %v1347, 0
      %1507 = vmatprep.subr.mxu0 0.0
      %1508 = vmatpush1.msra.mxu0 %v624
      %1509 = vmatprep.subr.mxu0 0.0
      %1510 = vmatpush1.msra.mxu0 0.0
      %1511 = vmatprep.subr.mxu0 0.0
      %1512 = vmatpush1.msra.mxu0 0.0
      %1513 = vmatprep.subr.mxu0 0.0
      %1514 = vmatpush1.msra.mxu0 0.0
      %1515 = vmatprep.subr.mxu0 0.0
      %1516 = vmatpush1.msra.mxu0 0.0
      %1517 = vmatprep.subr.mxu0 0.0
      %1518 = vmatpush1.msra.mxu0 0.0
      %1519 = vmatprep.subr.mxu0 0.0
      %1520 = vmatpush1.msra.mxu0 0.0
      %1521 = vmatprep.subr.mxu0 0.0
      %1522 = vmatpush1.msra.mxu0 0.0
      %1523 = vmatprep.subr.mxu0 0.0
      %1524 = vmatpush1.msra.mxu0 0.0
      %1525 = vmatprep.subr.mxu0 0.0
      %1526 = vmatpush1.msra.mxu0 0.0
      %1527 = vmatprep.subr.mxu0 0.0
      %1528 = vmatpush1.msra.mxu0 0.0
      %1529 = vmatprep.subr.mxu0 0.0
      %1530 = vmatpush1.msra.mxu0 0.0
      %1531 = vmatprep.subr.mxu0 0.0
      %1532 = vmatpush1.msra.mxu0 0.0
      %1533 = vmatprep.subr.mxu0 0.0
      %1534 = vmatpush1.msra.mxu0 0.0
      %1535 = vmatprep.subr.mxu0 0.0
      %1536 = vmatpush1.msra.mxu0 0.0
      %1537 = vmatprep.subr.mxu0 0.0
      %1538 = vmatpush1.msra.mxu0 0.0
      %1539 = vmatprep.subr.mxu0 0.0
      %1540 = vmatpush1.msra.mxu0 0.0
      %1541 = vmatprep.subr.mxu0 0.0
      %1542 = vmatpush1.msra.mxu0 0.0
      %1543 = vmatprep.subr.mxu0 0.0
      %1544 = vmatpush1.msra.mxu0 0.0
      %1545 = vmatprep.subr.mxu0 0.0
      %1546 = vmatpush1.msra.mxu0 0.0
      %1547 = vmatprep.subr.mxu0 0.0
      %1548 = vmatpush1.msra.mxu0 0.0
      %1549 = vmatprep.subr.mxu0 0.0
      %1550 = vmatpush1.msra.mxu0 0.0
      %1551 = vmatprep.subr.mxu0 0.0
      %1552 = vmatpush1.msra.mxu0 0.0
      %1553 = vmatprep.subr.mxu0 0.0
      %1554 = vmatpush1.msra.mxu0 0.0
      %1555 = vmatprep.subr.mxu0 0.0
      %1556 = vmatpush1.msra.mxu0 0.0
      %1557 = vmatprep.subr.mxu0 0.0
      %1558 = vmatpush1.msra.mxu0 0.0
      %1559 = vmatprep.subr.mxu0 0.0
      %1560 = vmatpush1.msra.mxu0 0.0
      %1561 = vmatprep.subr.mxu0 0.0
      %1562 = vmatpush1.msra.mxu0 0.0
      %1563 = vmatprep.subr.mxu0 0.0
      %1564 = vmatpush1.msra.mxu0 0.0
      %1565 = vmatprep.subr.mxu0 0.0
      %1566 = vmatpush1.msra.mxu0 0.0
      %1567 = vmatprep.subr.mxu0 0.0
      %1568 = vmatpush1.msra.mxu0 0.0
      %1569 = vmatprep.subr.mxu0 0.0
      %1570 = vmatpush1.msra.mxu0 0.0
      %1571 = vmatprep.mubr.f32.mxu0 0.0
      %1572 = vmatmul.mubr.f32.gmra.mrb[0].mxu0 %v1505
      %v1573 = vpop.f32.mrb[0].mxu0
      %v1574 = vadd.f32 0.0, %v1573
      %v1575 = vpop.f32.mrb[0].mxu0
      %1576 = vdwg.mxu0
      %v1578 = vsel %vm1269, %v1349, 0
      %1580 = vmatprep.subr.mxu0 0.0
      %1581 = vmatpush1.msra.mxu0 %v629
      %1582 = vmatprep.subr.mxu0 0.0
      %1583 = vmatpush1.msra.mxu0 0.0
      %1584 = vmatprep.subr.mxu0 0.0
      %1585 = vmatpush1.msra.mxu0 0.0
      %1586 = vmatprep.subr.mxu0 0.0
      %1587 = vmatpush1.msra.mxu0 0.0
      %1588 = vmatprep.subr.mxu0 0.0
      %1589 = vmatpush1.msra.mxu0 0.0
      %1590 = vmatprep.subr.mxu0 0.0
      %1591 = vmatpush1.msra.mxu0 0.0
      %1592 = vmatprep.subr.mxu0 0.0
      %1593 = vmatpush1.msra.mxu0 0.0
      %1594 = vmatprep.subr.mxu0 0.0
      %1595 = vmatpush1.msra.mxu0 0.0
      %1596 = vmatprep.subr.mxu0 0.0
      %1597 = vmatpush1.msra.mxu0 0.0
      %1598 = vmatprep.subr.mxu0 0.0
      %1599 = vmatpush1.msra.mxu0 0.0
      %1600 = vmatprep.subr.mxu0 0.0
      %1601 = vmatpush1.msra.mxu0 0.0
      %1602 = vmatprep.subr.mxu0 0.0
      %1603 = vmatpush1.msra.mxu0 0.0
      %1604 = vmatprep.subr.mxu0 0.0
      %1605 = vmatpush1.msra.mxu0 0.0
      %1606 = vmatprep.subr.mxu0 0.0
      %1607 = vmatpush1.msra.mxu0 0.0
      %1608 = vmatprep.subr.mxu0 0.0
      %1609 = vmatpush1.msra.mxu0 0.0
      %1610 = vmatprep.subr.mxu0 0.0
      %1611 = vmatpush1.msra.mxu0 0.0
      %1612 = vmatprep.subr.mxu0 0.0
      %1613 = vmatpush1.msra.mxu0 0.0
      %1614 = vmatprep.subr.mxu0 0.0
      %1615 = vmatpush1.msra.mxu0 0.0
      %1616 = vmatprep.subr.mxu0 0.0
      %1617 = vmatpush1.msra.mxu0 0.0
      %1618 = vmatprep.subr.mxu0 0.0
      %1619 = vmatpush1.msra.mxu0 0.0
      %1620 = vmatprep.subr.mxu0 0.0
      %1621 = vmatpush1.msra.mxu0 0.0
      %1622 = vmatprep.subr.mxu0 0.0
      %1623 = vmatpush1.msra.mxu0 0.0
      %1624 = vmatprep.subr.mxu0 0.0
      %1625 = vmatpush1.msra.mxu0 0.0
      %1626 = vmatprep.subr.mxu0 0.0
      %1627 = vmatpush1.msra.mxu0 0.0
      %1628 = vmatprep.subr.mxu0 0.0
      %1629 = vmatpush1.msra.mxu0 0.0
      %1630 = vmatprep.subr.mxu0 0.0
      %1631 = vmatpush1.msra.mxu0 0.0
      %1632 = vmatprep.subr.mxu0 0.0
      %1633 = vmatpush1.msra.mxu0 0.0
      %1634 = vmatprep.subr.mxu0 0.0
      %1635 = vmatpush1.msra.mxu0 0.0
      %1636 = vmatprep.subr.mxu0 0.0
      %1637 = vmatpush1.msra.mxu0 0.0
      %1638 = vmatprep.subr.mxu0 0.0
      %1639 = vmatpush1.msra.mxu0 0.0
      %1640 = vmatprep.subr.mxu0 0.0
      %1641 = vmatpush1.msra.mxu0 0.0
      %1642 = vmatprep.subr.mxu0 0.0
      %1643 = vmatpush1.msra.mxu0 0.0
      %1644 = vmatprep.mubr.f32.mxu0 0.0
      %1645 = vmatmul.mubr.f32.gmra.mrb[0].mxu0 %v1578
      %v1646 = vpop.f32.mrb[0].mxu0
      %v1647 = vadd.f32 0.0, %v1646
      %v1648 = vpop.f32.mrb[0].mxu0
      %1649 = vdwg.mxu0
      %v1651 = vsel %vm1269, %v1351, 0
      %1653 = vmatprep.subr.mxu0 0.0
      %1654 = vmatpush1.msra.mxu0 %v634
      %1655 = vmatprep.subr.mxu0 0.0
      %1656 = vmatpush1.msra.mxu0 0.0
      %1657 = vmatprep.subr.mxu0 0.0
      %1658 = vmatpush1.msra.mxu0 0.0
      %1659 = vmatprep.subr.mxu0 0.0
      %1660 = vmatpush1.msra.mxu0 0.0
      %1661 = vmatprep.subr.mxu0 0.0
      %1662 = vmatpush1.msra.mxu0 0.0
      %1663 = vmatprep.subr.mxu0 0.0
      %1664 = vmatpush1.msra.mxu0 0.0
      %1665 = vmatprep.subr.mxu0 0.0
      %1666 = vmatpush1.msra.mxu0 0.0
      %1667 = vmatprep.subr.mxu0 0.0
      %1668 = vmatpush1.msra.mxu0 0.0
      %1669 = vmatprep.subr.mxu0 0.0
      %1670 = vmatpush1.msra.mxu0 0.0
      %1671 = vmatprep.subr.mxu0 0.0
      %1672 = vmatpush1.msra.mxu0 0.0
      %1673 = vmatprep.subr.mxu0 0.0
      %1674 = vmatpush1.msra.mxu0 0.0
      %1675 = vmatprep.subr.mxu0 0.0
      %1676 = vmatpush1.msra.mxu0 0.0
      %1677 = vmatprep.subr.mxu0 0.0
      %1678 = vmatpush1.msra.mxu0 0.0
      %1679 = vmatprep.subr.mxu0 0.0
      %1680 = vmatpush1.msra.mxu0 0.0
      %1681 = vmatprep.subr.mxu0 0.0
      %1682 = vmatpush1.msra.mxu0 0.0
      %1683 = vmatprep.subr.mxu0 0.0
      %1684 = vmatpush1.msra.mxu0 0.0
      %1685 = vmatprep.subr.mxu0 0.0
      %1686 = vmatpush1.msra.mxu0 0.0
      %1687 = vmatprep.subr.mxu0 0.0
      %1688 = vmatpush1.msra.mxu0 0.0
      %1689 = vmatprep.subr.mxu0 0.0
      %1690 = vmatpush1.msra.mxu0 0.0
      %1691 = vmatprep.subr.mxu0 0.0
      %1692 = vmatpush1.msra.mxu0 0.0
      %1693 = vmatprep.subr.mxu0 0.0
      %1694 = vmatpush1.msra.mxu0 0.0
      %1695 = vmatprep.subr.mxu0 0.0
      %1696 = vmatpush1.msra.mxu0 0.0
      %1697 = vmatprep.subr.mxu0 0.0
      %1698 = vmatpush1.msra.mxu0 0.0
      %1699 = vmatprep.subr.mxu0 0.0
      %1700 = vmatpush1.msra.mxu0 0.0
      %1701 = vmatprep.subr.mxu0 0.0
      %1702 = vmatpush1.msra.mxu0 0.0
      %1703 = vmatprep.subr.mxu0 0.0
      %1704 = vmatpush1.msra.mxu0 0.0
      %1705 = vmatprep.subr.mxu0 0.0
      %1706 = vmatpush1.msra.mxu0 0.0
      %1707 = vmatprep.subr.mxu0 0.0
      %1708 = vmatpush1.msra.mxu0 0.0
      %1709 = vmatprep.subr.mxu0 0.0
      %1710 = vmatpush1.msra.mxu0 0.0
      %1711 = vmatprep.subr.mxu0 0.0
      %1712 = vmatpush1.msra.mxu0 0.0
      %1713 = vmatprep.subr.mxu0 0.0
      %1714 = vmatpush1.msra.mxu0 0.0
      %1715 = vmatprep.subr.mxu0 0.0
      %1716 = vmatpush1.msra.mxu0 0.0
      %1717 = vmatprep.mubr.f32.mxu0 0.0
      %1718 = vmatmul.mubr.f32.gmra.mrb[0].mxu0 %v1651
      %v1719 = vpop.f32.mrb[0].mxu0
      %v1720 = vadd.f32 0.0, %v1719
      %v1721 = vpop.f32.mrb[0].mxu0
      %1722 = vdwg.mxu0
      %v1724 = vsel %vm1269, %v1353, 0
      %1726 = vmatprep.subr.mxu0 0.0
      %1727 = vmatpush1.msra.mxu0 %v639
      %1728 = vmatprep.subr.mxu0 0.0
      %1729 = vmatpush1.msra.mxu0 0.0
      %1730 = vmatprep.subr.mxu0 0.0
      %1731 = vmatpush1.msra.mxu0 0.0
      %1732 = vmatprep.subr.mxu0 0.0
      %1733 = vmatpush1.msra.mxu0 0.0
      %1734 = vmatprep.subr.mxu0 0.0
      %1735 = vmatpush1.msra.mxu0 0.0
      %1736 = vmatprep.subr.mxu0 0.0
      %1737 = vmatpush1.msra.mxu0 0.0
      %1738 = vmatprep.subr.mxu0 0.0
      %1739 = vmatpush1.msra.mxu0 0.0
      %1740 = vmatprep.subr.mxu0 0.0
      %1741 = vmatpush1.msra.mxu0 0.0
      %1742 = vmatprep.subr.mxu0 0.0
      %1743 = vmatpush1.msra.mxu0 0.0
      %1744 = vmatprep.subr.mxu0 0.0
      %1745 = vmatpush1.msra.mxu0 0.0
      %1746 = vmatprep.subr.mxu0 0.0
      %1747 = vmatpush1.msra.mxu0 0.0
      %1748 = vmatprep.subr.mxu0 0.0
      %1749 = vmatpush1.msra.mxu0 0.0
      %1750 = vmatprep.subr.mxu0 0.0
      %1751 = vmatpush1.msra.mxu0 0.0
      %1752 = vmatprep.subr.mxu0 0.0
      %1753 = vmatpush1.msra.mxu0 0.0
      %1754 = vmatprep.subr.mxu0 0.0
      %1755 = vmatpush1.msra.mxu0 0.0
      %1756 = vmatprep.subr.mxu0 0.0
      %1757 = vmatpush1.msra.mxu0 0.0
      %1758 = vmatprep.subr.mxu0 0.0
      %1759 = vmatpush1.msra.mxu0 0.0
      %1760 = vmatprep.subr.mxu0 0.0
      %1761 = vmatpush1.msra.mxu0 0.0
      %1762 = vmatprep.subr.mxu0 0.0
      %1763 = vmatpush1.msra.mxu0 0.0
      %1764 = vmatprep.subr.mxu0 0.0
      %1765 = vmatpush1.msra.mxu0 0.0
      %1766 = vmatprep.subr.mxu0 0.0
      %1767 = vmatpush1.msra.mxu0 0.0
      %1768 = vmatprep.subr.mxu0 0.0
      %1769 = vmatpush1.msra.mxu0 0.0
      %1770 = vmatprep.subr.mxu0 0.0
      %1771 = vmatpush1.msra.mxu0 0.0
      %1772 = vmatprep.subr.mxu0 0.0
      %1773 = vmatpush1.msra.mxu0 0.0
      %1774 = vmatprep.subr.mxu0 0.0
      %1775 = vmatpush1.msra.mxu0 0.0
      %1776 = vmatprep.subr.mxu0 0.0
      %1777 = vmatpush1.msra.mxu0 0.0
      %1778 = vmatprep.subr.mxu0 0.0
      %1779 = vmatpush1.msra.mxu0 0.0
      %1780 = vmatprep.subr.mxu0 0.0
      %1781 = vmatpush1.msra.mxu0 0.0
      %1782 = vmatprep.subr.mxu0 0.0
      %1783 = vmatpush1.msra.mxu0 0.0
      %1784 = vmatprep.subr.mxu0 0.0
      %1785 = vmatpush1.msra.mxu0 0.0
      %1786 = vmatprep.subr.mxu0 0.0
      %1787 = vmatpush1.msra.mxu0 0.0
      %1788 = vmatprep.subr.mxu0 0.0
      %1789 = vmatpush1.msra.mxu0 0.0
      %1790 = vmatprep.mubr.f32.mxu0 0.0
      %1791 = vmatmul.mubr.f32.gmra.mrb[0].mxu0 %v1724
      %v1792 = vpop.f32.mrb[0].mxu0
      %v1793 = vadd.f32 0.0, %v1792
      %v1794 = vpop.f32.mrb[0].mxu0
      %1795 = vdwg.mxu0
      %v1797 = vsel %vm1269, %v1355, 0
      %1799 = vmatprep.subr.mxu0 0.0
      %1800 = vmatpush1.msra.mxu0 %v644
      %1801 = vmatprep.subr.mxu0 0.0
      %1802 = vmatpush1.msra.mxu0 0.0
      %1803 = vmatprep.subr.mxu0 0.0
      %1804 = vmatpush1.msra.mxu0 0.0
      %1805 = vmatprep.subr.mxu0 0.0
      %1806 = vmatpush1.msra.mxu0 0.0
      %1807 = vmatprep.subr.mxu0 0.0
      %1808 = vmatpush1.msra.mxu0 0.0
      %1809 = vmatprep.subr.mxu0 0.0
      %1810 = vmatpush1.msra.mxu0 0.0
      %1811 = vmatprep.subr.mxu0 0.0
      %1812 = vmatpush1.msra.mxu0 0.0
      %1813 = vmatprep.subr.mxu0 0.0
      %1814 = vmatpush1.msra.mxu0 0.0
      %1815 = vmatprep.subr.mxu0 0.0
      %1816 = vmatpush1.msra.mxu0 0.0
      %1817 = vmatprep.subr.mxu0 0.0
      %1818 = vmatpush1.msra.mxu0 0.0
      %1819 = vmatprep.subr.mxu0 0.0
      %1820 = vmatpush1.msra.mxu0 0.0
      %1821 = vmatprep.subr.mxu0 0.0
      %1822 = vmatpush1.msra.mxu0 0.0
      %1823 = vmatprep.subr.mxu0 0.0
      %1824 = vmatpush1.msra.mxu0 0.0
      %1825 = vmatprep.subr.mxu0 0.0
      %1826 = vmatpush1.msra.mxu0 0.0
      %1827 = vmatprep.subr.mxu0 0.0
      %1828 = vmatpush1.msra.mxu0 0.0
      %1829 = vmatprep.subr.mxu0 0.0
      %1830 = vmatpush1.msra.mxu0 0.0
      %1831 = vmatprep.subr.mxu0 0.0
      %1832 = vmatpush1.msra.mxu0 0.0
      %1833 = vmatprep.subr.mxu0 0.0
      %1834 = vmatpush1.msra.mxu0 0.0
      %1835 = vmatprep.subr.mxu0 0.0
      %1836 = vmatpush1.msra.mxu0 0.0
      %1837 = vmatprep.subr.mxu0 0.0
      %1838 = vmatpush1.msra.mxu0 0.0
      %1839 = vmatprep.subr.mxu0 0.0
      %1840 = vmatpush1.msra.mxu0 0.0
      %1841 = vmatprep.subr.mxu0 0.0
      %1842 = vmatpush1.msra.mxu0 0.0
      %1843 = vmatprep.subr.mxu0 0.0
      %1844 = vmatpush1.msra.mxu0 0.0
      %1845 = vmatprep.subr.mxu0 0.0
      %1846 = vmatpush1.msra.mxu0 0.0
      %1847 = vmatprep.subr.mxu0 0.0
      %1848 = vmatpush1.msra.mxu0 0.0
      %1849 = vmatprep.subr.mxu0 0.0
      %1850 = vmatpush1.msra.mxu0 0.0
      %1851 = vmatprep.subr.mxu0 0.0
      %1852 = vmatpush1.msra.mxu0 0.0
      %1853 = vmatprep.subr.mxu0 0.0
      %1854 = vmatpush1.msra.mxu0 0.0
      %1855 = vmatprep.subr.mxu0 0.0
      %1856 = vmatpush1.msra.mxu0 0.0
      %1857 = vmatprep.subr.mxu0 0.0
      %1858 = vmatpush1.msra.mxu0 0.0
      %1859 = vmatprep.subr.mxu0 0.0
      %1860 = vmatpush1.msra.mxu0 0.0
      %1861 = vmatprep.subr.mxu0 0.0
      %1862 = vmatpush1.msra.mxu0 0.0
      %1863 = vmatprep.mubr.f32.mxu0 0.0
      %1864 = vmatmul.mubr.f32.gmra.mrb[0].mxu0 %v1797
      %v1865 = vpop.f32.mrb[0].mxu0
      %v1866 = vadd.f32 0.0, %v1865
      %v1867 = vpop.f32.mrb[0].mxu0
      %1868 = vdwg.mxu0
      %v1870 = vsel %vm1269, %v1357, 0
      %1872 = vmatprep.subr.mxu0 0.0
      %1873 = vmatpush1.msra.mxu0 %v649
      %1874 = vmatprep.subr.mxu0 0.0
      %1875 = vmatpush1.msra.mxu0 0.0
      %1876 = vmatprep.subr.mxu0 0.0
      %1877 = vmatpush1.msra.mxu0 0.0
      %1878 = vmatprep.subr.mxu0 0.0
      %1879 = vmatpush1.msra.mxu0 0.0
      %1880 = vmatprep.subr.mxu0 0.0
      %1881 = vmatpush1.msra.mxu0 0.0
      %1882 = vmatprep.subr.mxu0 0.0
      %1883 = vmatpush1.msra.mxu0 0.0
      %1884 = vmatprep.subr.mxu0 0.0
      %1885 = vmatpush1.msra.mxu0 0.0
      %1886 = vmatprep.subr.mxu0 0.0
      %1887 = vmatpush1.msra.mxu0 0.0
      %1888 = vmatprep.subr.mxu0 0.0
      %1889 = vmatpush1.msra.mxu0 0.0
      %1890 = vmatprep.subr.mxu0 0.0
      %1891 = vmatpush1.msra.mxu0 0.0
      %1892 = vmatprep.subr.mxu0 0.0
      %1893 = vmatpush1.msra.mxu0 0.0
      %1894 = vmatprep.subr.mxu0 0.0
      %1895 = vmatpush1.msra.mxu0 0.0
      %1896 = vmatprep.subr.mxu0 0.0
      %1897 = vmatpush1.msra.mxu0 0.0
      %1898 = vmatprep.subr.mxu0 0.0
      %1899 = vmatpush1.msra.mxu0 0.0
      %1900 = vmatprep.subr.mxu0 0.0
      %1901 = vmatpush1.msra.mxu0 0.0
      %1902 = vmatprep.subr.mxu0 0.0
      %1903 = vmatpush1.msra.mxu0 0.0
      %1904 = vmatprep.subr.mxu0 0.0
      %1905 = vmatpush1.msra.mxu0 0.0
      %1906 = vmatprep.subr.mxu0 0.0
      %1907 = vmatpush1.msra.mxu0 0.0
      %1908 = vmatprep.subr.mxu0 0.0
      %1909 = vmatpush1.msra.mxu0 0.0
      %1910 = vmatprep.subr.mxu0 0.0
      %1911 = vmatpush1.msra.mxu0 0.0
      %1912 = vmatprep.subr.mxu0 0.0
      %1913 = vmatpush1.msra.mxu0 0.0
      %1914 = vmatprep.subr.mxu0 0.0
      %1915 = vmatpush1.msra.mxu0 0.0
      %1916 = vmatprep.subr.mxu0 0.0
      %1917 = vmatpush1.msra.mxu0 0.0
      %1918 = vmatprep.subr.mxu0 0.0
      %1919 = vmatpush1.msra.mxu0 0.0
      %1920 = vmatprep.subr.mxu0 0.0
      %1921 = vmatpush1.msra.mxu0 0.0
      %1922 = vmatprep.subr.mxu0 0.0
      %1923 = vmatpush1.msra.mxu0 0.0
      %1924 = vmatprep.subr.mxu0 0.0
      %1925 = vmatpush1.msra.mxu0 0.0
      %1926 = vmatprep.subr.mxu0 0.0
      %1927 = vmatpush1.msra.mxu0 0.0
      %1928 = vmatprep.subr.mxu0 0.0
      %1929 = vmatpush1.msra.mxu0 0.0
      %1930 = vmatprep.subr.mxu0 0.0
      %1931 = vmatpush1.msra.mxu0 0.0
      %1932 = vmatprep.subr.mxu0 0.0
      %1933 = vmatpush1.msra.mxu0 0.0
      %1934 = vmatprep.subr.mxu0 0.0
      %1935 = vmatpush1.msra.mxu0 0.0
      %1936 = vmatprep.mubr.f32.mxu0 0.0
      %1937 = vmatmul.mubr.f32.gmra.mrb[0].mxu0 %v1870
      %v1938 = vpop.f32.mrb[0].mxu0
      %v1939 = vadd.f32 0.0, %v1938
      %v1940 = vpop.f32.mrb[0].mxu0
      %1941 = vdwg.mxu0
      %v1942 = vld [vmem:[%s3] sm:$0xff]
      %v1943 = vld [vmem:[%s3 + $0x8] sm:$0xff]
      %v1944 = vld [vmem:[%s3 + $0x10] sm:$0xff]
      %v1945 = vld [vmem:[%s3 + $0x18] sm:$0xff]
      %v1946 = vld [vmem:[%s3 + $0x20] sm:$0xff]
      %v1947 = vld [vmem:[%s3 + $0x28] sm:$0xff]
      %v1948 = vld [vmem:[%s3 + $0x30] sm:$0xff]
      %v1949 = vld [vmem:[%s3 + $0x38] sm:$0xff]
      %1950 = vrot.lane.b32.xlu0 %v501, 64
      %v1951 = vpop.permute.xlu0 %1950
      %1952 = vrot.lane.b32.xlu0 %v503, 64
      %v1953 = vpop.permute.xlu0 %1952
      %v1954 = vsel %vm652, %v1951, 0
      %v1956 = vsel %vm652, %v1953, 0
      %1958 = vmatprep.subr.mxu0 0.0
      %1959 = vmatpush1.xpose.msra.mxu0 %v1956
      %1960 = vmatprep.subr.mxu0 0.0
      %1961 = vmatpush1.xpose.msra.mxu0 0.0
      %1962 = vmatprep.subr.mxu0 0.0
      %1963 = vmatpush1.xpose.msra.mxu0 0.0
      %1964 = vmatprep.subr.mxu0 0.0
      %1965 = vmatpush1.xpose.msra.mxu0 0.0
      %1966 = vmatprep.subr.mxu0 0.0
      %1967 = vmatpush1.xpose.msra.mxu0 0.0
      %1968 = vmatprep.subr.mxu0 0.0
      %1969 = vmatpush1.xpose.msra.mxu0 0.0
      %1970 = vmatprep.subr.mxu0 0.0
      %1971 = vmatpush1.xpose.msra.mxu0 0.0
      %1972 = vmatprep.subr.mxu0 0.0
      %1973 = vmatpush1.xpose.msra.mxu0 0.0
      %1974 = vmatprep.subr.mxu0 0.0
      %1975 = vmatpush1.xpose.msra.mxu0 0.0
      %1976 = vmatprep.subr.mxu0 0.0
      %1977 = vmatpush1.xpose.msra.mxu0 0.0
      %1978 = vmatprep.subr.mxu0 0.0
      %1979 = vmatpush1.xpose.msra.mxu0 0.0
      %1980 = vmatprep.subr.mxu0 0.0
      %1981 = vmatpush1.xpose.msra.mxu0 0.0
      %1982 = vmatprep.subr.mxu0 0.0
      %1983 = vmatpush1.xpose.msra.mxu0 0.0
      %1984 = vmatprep.subr.mxu0 0.0
      %1985 = vmatpush1.xpose.msra.mxu0 0.0
      %1986 = vmatprep.subr.mxu0 0.0
      %1987 = vmatpush1.xpose.msra.mxu0 0.0
      %1988 = vmatprep.subr.mxu0 0.0
      %1989 = vmatpush1.xpose.msra.mxu0 0.0
      %1990 = vmatprep.subr.mxu0 0.0
      %1991 = vmatpush1.xpose.msra.mxu0 0.0
      %1992 = vmatprep.subr.mxu0 0.0
      %1993 = vmatpush1.xpose.msra.mxu0 0.0
      %1994 = vmatprep.subr.mxu0 0.0
      %1995 = vmatpush1.xpose.msra.mxu0 0.0
      %1996 = vmatprep.subr.mxu0 0.0
      %1997 = vmatpush1.xpose.msra.mxu0 0.0
      %1998 = vmatprep.subr.mxu0 0.0
      %1999 = vmatpush1.xpose.msra.mxu0 0.0
      %2000 = vmatprep.subr.mxu0 0.0
      %2001 = vmatpush1.xpose.msra.mxu0 0.0
      %2002 = vmatprep.subr.mxu0 0.0
      %2003 = vmatpush1.xpose.msra.mxu0 0.0
      %2004 = vmatprep.subr.mxu0 0.0
      %2005 = vmatpush1.xpose.msra.mxu0 0.0
      %2006 = vmatprep.subr.mxu0 0.0
      %2007 = vmatpush1.xpose.msra.mxu0 0.0
      %2008 = vmatprep.subr.mxu0 0.0
      %2009 = vmatpush1.xpose.msra.mxu0 0.0
      %2010 = vmatprep.subr.mxu0 0.0
      %2011 = vmatpush1.xpose.msra.mxu0 0.0
      %2012 = vmatprep.subr.mxu0 0.0
      %2013 = vmatpush1.xpose.msra.mxu0 0.0
      %2014 = vmatprep.subr.mxu0 0.0
      %2015 = vmatpush1.xpose.msra.mxu0 0.0
      %2016 = vmatprep.subr.mxu0 0.0
      %2017 = vmatpush1.xpose.msra.mxu0 0.0
      %2018 = vmatprep.subr.mxu0 0.0
      %2019 = vmatpush1.xpose.msra.mxu0 0.0
      %2020 = vmatprep.subr.mxu0 0.0
      %2021 = vmatpush1.xpose.msra.mxu0 0.0
      %2022 = vmatprep.mubr.f32.mxu0 0.0
      %2023 = vmatmul.mubr.f32.gmra.mrb[0].mxu0 %v1954
      %v2024 = vpop.f32.mrb[0].mxu0
      %v2025 = vadd.f32 0.0, %v2024
      %v2026 = vpop.f32.mrb[0].mxu0
      %2027 = vdwg.mxu0
      %2028 = vrot.lane.b32.xlu0 %v507, 64
      %v2029 = vpop.permute.xlu0 %2028
      %2030 = vrot.lane.b32.xlu0 %v509, 64
      %v2031 = vpop.permute.xlu0 %2030
      %v2032 = vsel %vm652, %v2029, 0
      %v2034 = vsel %vm652, %v2031, 0
      %2036 = vmatprep.subr.mxu0 0.0
      %2037 = vmatpush1.xpose.msra.mxu0 %v2034
      %2038 = vmatprep.subr.mxu0 0.0
      %2039 = vmatpush1.xpose.msra.mxu0 0.0
      %2040 = vmatprep.subr.mxu0 0.0
      %2041 = vmatpush1.xpose.msra.mxu0 0.0
      %2042 = vmatprep.subr.mxu0 0.0
      %2043 = vmatpush1.xpose.msra.mxu0 0.0
      %2044 = vmatprep.subr.mxu0 0.0
      %2045 = vmatpush1.xpose.msra.mxu0 0.0
      %2046 = vmatprep.subr.mxu0 0.0
      %2047 = vmatpush1.xpose.msra.mxu0 0.0
      %2048 = vmatprep.subr.mxu0 0.0
      %2049 = vmatpush1.xpose.msra.mxu0 0.0
      %2050 = vmatprep.subr.mxu0 0.0
      %2051 = vmatpush1.xpose.msra.mxu0 0.0
      %2052 = vmatprep.subr.mxu0 0.0
      %2053 = vmatpush1.xpose.msra.mxu0 0.0
      %2054 = vmatprep.subr.mxu0 0.0
      %2055 = vmatpush1.xpose.msra.mxu0 0.0
      %2056 = vmatprep.subr.mxu0 0.0
      %2057 = vmatpush1.xpose.msra.mxu0 0.0
      %2058 = vmatprep.subr.mxu0 0.0
      %2059 = vmatpush1.xpose.msra.mxu0 0.0
      %2060 = vmatprep.subr.mxu0 0.0
      %2061 = vmatpush1.xpose.msra.mxu0 0.0
      %2062 = vmatprep.subr.mxu0 0.0
      %2063 = vmatpush1.xpose.msra.mxu0 0.0
      %2064 = vmatprep.subr.mxu0 0.0
      %2065 = vmatpush1.xpose.msra.mxu0 0.0
      %2066 = vmatprep.subr.mxu0 0.0
      %2067 = vmatpush1.xpose.msra.mxu0 0.0
      %2068 = vmatprep.subr.mxu0 0.0
      %2069 = vmatpush1.xpose.msra.mxu0 0.0
      %2070 = vmatprep.subr.mxu0 0.0
      %2071 = vmatpush1.xpose.msra.mxu0 0.0
      %2072 = vmatprep.subr.mxu0 0.0
      %2073 = vmatpush1.xpose.msra.mxu0 0.0
      %2074 = vmatprep.subr.mxu0 0.0
      %2075 = vmatpush1.xpose.msra.mxu0 0.0
      %2076 = vmatprep.subr.mxu0 0.0
      %2077 = vmatpush1.xpose.msra.mxu0 0.0
      %2078 = vmatprep.subr.mxu0 0.0
      %2079 = vmatpush1.xpose.msra.mxu0 0.0
      %2080 = vmatprep.subr.mxu0 0.0
      %2081 = vmatpush1.xpose.msra.mxu0 0.0
      %2082 = vmatprep.subr.mxu0 0.0
      %2083 = vmatpush1.xpose.msra.mxu0 0.0
      %2084 = vmatprep.subr.mxu0 0.0
      %2085 = vmatpush1.xpose.msra.mxu0 0.0
      %2086 = vmatprep.subr.mxu0 0.0
      %2087 = vmatpush1.xpose.msra.mxu0 0.0
      %2088 = vmatprep.subr.mxu0 0.0
      %2089 = vmatpush1.xpose.msra.mxu0 0.0
      %2090 = vmatprep.subr.mxu0 0.0
      %2091 = vmatpush1.xpose.msra.mxu0 0.0
      %2092 = vmatprep.subr.mxu0 0.0
      %2093 = vmatpush1.xpose.msra.mxu0 0.0
      %2094 = vmatprep.subr.mxu0 0.0
      %2095 = vmatpush1.xpose.msra.mxu0 0.0
      %2096 = vmatprep.subr.mxu0 0.0
      %2097 = vmatpush1.xpose.msra.mxu0 0.0
      %2098 = vmatprep.subr.mxu0 0.0
      %2099 = vmatpush1.xpose.msra.mxu0 0.0
      %2100 = vmatprep.mubr.f32.mxu0 0.0
      %2101 = vmatmul.mubr.f32.gmra.mrb[0].mxu0 %v2032
      %v2102 = vpop.f32.mrb[0].mxu0
      %v2103 = vadd.f32 0.0, %v2102
      %v2104 = vpop.f32.mrb[0].mxu0
      %2105 = vdwg.mxu0
      %2106 = vrot.lane.b32.xlu0 %v513, 64
      %v2107 = vpop.permute.xlu0 %2106
      %2108 = vrot.lane.b32.xlu0 %v515, 64
      %v2109 = vpop.permute.xlu0 %2108
      %v2110 = vsel %vm652, %v2107, 0
      %v2112 = vsel %vm652, %v2109, 0
      %2114 = vmatprep.subr.mxu0 0.0
      %2115 = vmatpush1.xpose.msra.mxu0 %v2112
      %2116 = vmatprep.subr.mxu0 0.0
      %2117 = vmatpush1.xpose.msra.mxu0 0.0
      %2118 = vmatprep.subr.mxu0 0.0
      %2119 = vmatpush1.xpose.msra.mxu0 0.0
      %2120 = vmatprep.subr.mxu0 0.0
      %2121 = vmatpush1.xpose.msra.mxu0 0.0
      %2122 = vmatprep.subr.mxu0 0.0
      %2123 = vmatpush1.xpose.msra.mxu0 0.0
      %2124 = vmatprep.subr.mxu0 0.0
      %2125 = vmatpush1.xpose.msra.mxu0 0.0
      %2126 = vmatprep.subr.mxu0 0.0
      %2127 = vmatpush1.xpose.msra.mxu0 0.0
      %2128 = vmatprep.subr.mxu0 0.0
      %2129 = vmatpush1.xpose.msra.mxu0 0.0
      %2130 = vmatprep.subr.mxu0 0.0
      %2131 = vmatpush1.xpose.msra.mxu0 0.0
      %2132 = vmatprep.subr.mxu0 0.0
      %2133 = vmatpush1.xpose.msra.mxu0 0.0
      %2134 = vmatprep.subr.mxu0 0.0
      %2135 = vmatpush1.xpose.msra.mxu0 0.0
      %2136 = vmatprep.subr.mxu0 0.0
      %2137 = vmatpush1.xpose.msra.mxu0 0.0
      %2138 = vmatprep.subr.mxu0 0.0
      %2139 = vmatpush1.xpose.msra.mxu0 0.0
      %2140 = vmatprep.subr.mxu0 0.0
      %2141 = vmatpush1.xpose.msra.mxu0 0.0
      %2142 = vmatprep.subr.mxu0 0.0
      %2143 = vmatpush1.xpose.msra.mxu0 0.0
      %2144 = vmatprep.subr.mxu0 0.0
      %2145 = vmatpush1.xpose.msra.mxu0 0.0
      %2146 = vmatprep.subr.mxu0 0.0
      %2147 = vmatpush1.xpose.msra.mxu0 0.0
      %2148 = vmatprep.subr.mxu0 0.0
      %2149 = vmatpush1.xpose.msra.mxu0 0.0
      %2150 = vmatprep.subr.mxu0 0.0
      %2151 = vmatpush1.xpose.msra.mxu0 0.0
      %2152 = vmatprep.subr.mxu0 0.0
      %2153 = vmatpush1.xpose.msra.mxu0 0.0
      %2154 = vmatprep.subr.mxu0 0.0
      %2155 = vmatpush1.xpose.msra.mxu0 0.0
      %2156 = vmatprep.subr.mxu0 0.0
      %2157 = vmatpush1.xpose.msra.mxu0 0.0
      %2158 = vmatprep.subr.mxu0 0.0
      %2159 = vmatpush1.xpose.msra.mxu0 0.0
      %2160 = vmatprep.subr.mxu0 0.0
      %2161 = vmatpush1.xpose.msra.mxu0 0.0
      %2162 = vmatprep.subr.mxu0 0.0
      %2163 = vmatpush1.xpose.msra.mxu0 0.0
      %2164 = vmatprep.subr.mxu0 0.0
      %2165 = vmatpush1.xpose.msra.mxu0 0.0
      %2166 = vmatprep.subr.mxu0 0.0
      %2167 = vmatpush1.xpose.msra.mxu0 0.0
      %2168 = vmatprep.subr.mxu0 0.0
      %2169 = vmatpush1.xpose.msra.mxu0 0.0
      %2170 = vmatprep.subr.mxu0 0.0
      %2171 = vmatpush1.xpose.msra.mxu0 0.0
      %2172 = vmatprep.subr.mxu0 0.0
      %2173 = vmatpush1.xpose.msra.mxu0 0.0
      %2174 = vmatprep.subr.mxu0 0.0
      %2175 = vmatpush1.xpose.msra.mxu0 0.0
      %2176 = vmatprep.subr.mxu0 0.0
      %2177 = vmatpush1.xpose.msra.mxu0 0.0
      %2178 = vmatprep.mubr.f32.mxu0 0.0
      %2179 = vmatmul.mubr.f32.gmra.mrb[0].mxu0 %v2110
      %v2180 = vpop.f32.mrb[0].mxu0
      %v2181 = vadd.f32 0.0, %v2180
      %v2182 = vpop.f32.mrb[0].mxu0
      %2183 = vdwg.mxu0
      %2184 = vrot.lane.b32.xlu0 %v519, 64
      %v2185 = vpop.permute.xlu0 %2184
      %2186 = vrot.lane.b32.xlu0 %v521, 64
      %v2187 = vpop.permute.xlu0 %2186
      %v2188 = vsel %vm652, %v2185, 0
      %v2190 = vsel %vm652, %v2187, 0
      %2192 = vmatprep.subr.mxu0 0.0
      %2193 = vmatpush1.xpose.msra.mxu0 %v2190
      %2194 = vmatprep.subr.mxu0 0.0
      %2195 = vmatpush1.xpose.msra.mxu0 0.0
      %2196 = vmatprep.subr.mxu0 0.0
      %2197 = vmatpush1.xpose.msra.mxu0 0.0
      %2198 = vmatprep.subr.mxu0 0.0
      %2199 = vmatpush1.xpose.msra.mxu0 0.0
      %2200 = vmatprep.subr.mxu0 0.0
      %2201 = vmatpush1.xpose.msra.mxu0 0.0
      %2202 = vmatprep.subr.mxu0 0.0
      %2203 = vmatpush1.xpose.msra.mxu0 0.0
      %2204 = vmatprep.subr.mxu0 0.0
      %2205 = vmatpush1.xpose.msra.mxu0 0.0
      %2206 = vmatprep.subr.mxu0 0.0
      %2207 = vmatpush1.xpose.msra.mxu0 0.0
      %2208 = vmatprep.subr.mxu0 0.0
      %2209 = vmatpush1.xpose.msra.mxu0 0.0
      %2210 = vmatprep.subr.mxu0 0.0
      %2211 = vmatpush1.xpose.msra.mxu0 0.0
      %2212 = vmatprep.subr.mxu0 0.0
      %2213 = vmatpush1.xpose.msra.mxu0 0.0
      %2214 = vmatprep.subr.mxu0 0.0
      %2215 = vmatpush1.xpose.msra.mxu0 0.0
      %2216 = vmatprep.subr.mxu0 0.0
      %2217 = vmatpush1.xpose.msra.mxu0 0.0
      %2218 = vmatprep.subr.mxu0 0.0
      %2219 = vmatpush1.xpose.msra.mxu0 0.0
      %2220 = vmatprep.subr.mxu0 0.0
      %2221 = vmatpush1.xpose.msra.mxu0 0.0
      %2222 = vmatprep.subr.mxu0 0.0
      %2223 = vmatpush1.xpose.msra.mxu0 0.0
      %2224 = vmatprep.subr.mxu0 0.0
      %2225 = vmatpush1.xpose.msra.mxu0 0.0
      %2226 = vmatprep.subr.mxu0 0.0
      %2227 = vmatpush1.xpose.msra.mxu0 0.0
      %2228 = vmatprep.subr.mxu0 0.0
      %2229 = vmatpush1.xpose.msra.mxu0 0.0
      %2230 = vmatprep.subr.mxu0 0.0
      %2231 = vmatpush1.xpose.msra.mxu0 0.0
      %2232 = vmatprep.subr.mxu0 0.0
      %2233 = vmatpush1.xpose.msra.mxu0 0.0
      %2234 = vmatprep.subr.mxu0 0.0
      %2235 = vmatpush1.xpose.msra.mxu0 0.0
      %2236 = vmatprep.subr.mxu0 0.0
      %2237 = vmatpush1.xpose.msra.mxu0 0.0
      %2238 = vmatprep.subr.mxu0 0.0
      %2239 = vmatpush1.xpose.msra.mxu0 0.0
      %2240 = vmatprep.subr.mxu0 0.0
      %2241 = vmatpush1.xpose.msra.mxu0 0.0
      %2242 = vmatprep.subr.mxu0 0.0
      %2243 = vmatpush1.xpose.msra.mxu0 0.0
      %2244 = vmatprep.subr.mxu0 0.0
      %2245 = vmatpush1.xpose.msra.mxu0 0.0
      %2246 = vmatprep.subr.mxu0 0.0
      %2247 = vmatpush1.xpose.msra.mxu0 0.0
      %2248 = vmatprep.subr.mxu0 0.0
      %2249 = vmatpush1.xpose.msra.mxu0 0.0
      %2250 = vmatprep.subr.mxu0 0.0
      %2251 = vmatpush1.xpose.msra.mxu0 0.0
      %2252 = vmatprep.subr.mxu0 0.0
      %2253 = vmatpush1.xpose.msra.mxu0 0.0
      %2254 = vmatprep.subr.mxu0 0.0
      %2255 = vmatpush1.xpose.msra.mxu0 0.0
      %2256 = vmatprep.mubr.f32.mxu0 0.0
      %2257 = vmatmul.mubr.f32.gmra.mrb[0].mxu0 %v2188
      %v2258 = vpop.f32.mrb[0].mxu0
      %v2259 = vadd.f32 0.0, %v2258
      %v2260 = vpop.f32.mrb[0].mxu0
      %2261 = vdwg.mxu0
      %2262 = vrot.lane.b32.xlu0 %v525, 64
      %v2263 = vpop.permute.xlu0 %2262
      %2264 = vrot.lane.b32.xlu0 %v527, 64
      %v2265 = vpop.permute.xlu0 %2264
      %v2266 = vsel %vm652, %v2263, 0
      %v2268 = vsel %vm652, %v2265, 0
      %2270 = vmatprep.subr.mxu0 0.0
      %2271 = vmatpush1.xpose.msra.mxu0 %v2268
      %2272 = vmatprep.subr.mxu0 0.0
      %2273 = vmatpush1.xpose.msra.mxu0 0.0
      %2274 = vmatprep.subr.mxu0 0.0
      %2275 = vmatpush1.xpose.msra.mxu0 0.0
      %2276 = vmatprep.subr.mxu0 0.0
      %2277 = vmatpush1.xpose.msra.mxu0 0.0
      %2278 = vmatprep.subr.mxu0 0.0
      %2279 = vmatpush1.xpose.msra.mxu0 0.0
      %2280 = vmatprep.subr.mxu0 0.0
      %2281 = vmatpush1.xpose.msra.mxu0 0.0
      %2282 = vmatprep.subr.mxu0 0.0
      %2283 = vmatpush1.xpose.msra.mxu0 0.0
      %2284 = vmatprep.subr.mxu0 0.0
      %2285 = vmatpush1.xpose.msra.mxu0 0.0
      %2286 = vmatprep.subr.mxu0 0.0
      %2287 = vmatpush1.xpose.msra.mxu0 0.0
      %2288 = vmatprep.subr.mxu0 0.0
      %2289 = vmatpush1.xpose.msra.mxu0 0.0
      %2290 = vmatprep.subr.mxu0 0.0
      %2291 = vmatpush1.xpose.msra.mxu0 0.0
      %2292 = vmatprep.subr.mxu0 0.0
      %2293 = vmatpush1.xpose.msra.mxu0 0.0
      %2294 = vmatprep.subr.mxu0 0.0
      %2295 = vmatpush1.xpose.msra.mxu0 0.0
      %2296 = vmatprep.subr.mxu0 0.0
      %2297 = vmatpush1.xpose.msra.mxu0 0.0
      %2298 = vmatprep.subr.mxu0 0.0
      %2299 = vmatpush1.xpose.msra.mxu0 0.0
      %2300 = vmatprep.subr.mxu0 0.0
      %2301 = vmatpush1.xpose.msra.mxu0 0.0
      %2302 = vmatprep.subr.mxu0 0.0
      %2303 = vmatpush1.xpose.msra.mxu0 0.0
      %2304 = vmatprep.subr.mxu0 0.0
      %2305 = vmatpush1.xpose.msra.mxu0 0.0
      %2306 = vmatprep.subr.mxu0 0.0
      %2307 = vmatpush1.xpose.msra.mxu0 0.0
      %2308 = vmatprep.subr.mxu0 0.0
      %2309 = vmatpush1.xpose.msra.mxu0 0.0
      %2310 = vmatprep.subr.mxu0 0.0
      %2311 = vmatpush1.xpose.msra.mxu0 0.0
      %2312 = vmatprep.subr.mxu0 0.0
      %2313 = vmatpush1.xpose.msra.mxu0 0.0
      %2314 = vmatprep.subr.mxu0 0.0
      %2315 = vmatpush1.xpose.msra.mxu0 0.0
      %2316 = vmatprep.subr.mxu0 0.0
      %2317 = vmatpush1.xpose.msra.mxu0 0.0
      %2318 = vmatprep.subr.mxu0 0.0
      %2319 = vmatpush1.xpose.msra.mxu0 0.0
      %2320 = vmatprep.subr.mxu0 0.0
      %2321 = vmatpush1.xpose.msra.mxu0 0.0
      %2322 = vmatprep.subr.mxu0 0.0
      %2323 = vmatpush1.xpose.msra.mxu0 0.0
      %2324 = vmatprep.subr.mxu0 0.0
      %2325 = vmatpush1.xpose.msra.mxu0 0.0
      %2326 = vmatprep.subr.mxu0 0.0
      %2327 = vmatpush1.xpose.msra.mxu0 0.0
      %2328 = vmatprep.subr.mxu0 0.0
      %2329 = vmatpush1.xpose.msra.mxu0 0.0
      %2330 = vmatprep.subr.mxu0 0.0
      %2331 = vmatpush1.xpose.msra.mxu0 0.0
      %2332 = vmatprep.subr.mxu0 0.0
      %2333 = vmatpush1.xpose.msra.mxu0 0.0
      %2334 = vmatprep.mubr.f32.mxu0 0.0
      %2335 = vmatmul.mubr.f32.gmra.mrb[0].mxu0 %v2266
      %v2336 = vpop.f32.mrb[0].mxu0
      %v2337 = vadd.f32 0.0, %v2336
      %v2338 = vpop.f32.mrb[0].mxu0
      %2339 = vdwg.mxu0
      %2340 = vrot.lane.b32.xlu0 %v531, 64
      %v2341 = vpop.permute.xlu0 %2340
      %2342 = vrot.lane.b32.xlu0 %v533, 64
      %v2343 = vpop.permute.xlu0 %2342
      %v2344 = vsel %vm652, %v2341, 0
      %v2346 = vsel %vm652, %v2343, 0
      %2348 = vmatprep.subr.mxu0 0.0
      %2349 = vmatpush1.xpose.msra.mxu0 %v2346
      %2350 = vmatprep.subr.mxu0 0.0
      %2351 = vmatpush1.xpose.msra.mxu0 0.0
      %2352 = vmatprep.subr.mxu0 0.0
      %2353 = vmatpush1.xpose.msra.mxu0 0.0
      %2354 = vmatprep.subr.mxu0 0.0
      %2355 = vmatpush1.xpose.msra.mxu0 0.0
      %2356 = vmatprep.subr.mxu0 0.0
      %2357 = vmatpush1.xpose.msra.mxu0 0.0
      %2358 = vmatprep.subr.mxu0 0.0
      %2359 = vmatpush1.xpose.msra.mxu0 0.0
      %2360 = vmatprep.subr.mxu0 0.0
      %2361 = vmatpush1.xpose.msra.mxu0 0.0
      %2362 = vmatprep.subr.mxu0 0.0
      %2363 = vmatpush1.xpose.msra.mxu0 0.0
      %2364 = vmatprep.subr.mxu0 0.0
      %2365 = vmatpush1.xpose.msra.mxu0 0.0
      %2366 = vmatprep.subr.mxu0 0.0
      %2367 = vmatpush1.xpose.msra.mxu0 0.0
      %2368 = vmatprep.subr.mxu0 0.0
      %2369 = vmatpush1.xpose.msra.mxu0 0.0
      %2370 = vmatprep.subr.mxu0 0.0
      %2371 = vmatpush1.xpose.msra.mxu0 0.0
      %2372 = vmatprep.subr.mxu0 0.0
      %2373 = vmatpush1.xpose.msra.mxu0 0.0
      %2374 = vmatprep.subr.mxu0 0.0
      %2375 = vmatpush1.xpose.msra.mxu0 0.0
      %2376 = vmatprep.subr.mxu0 0.0
      %2377 = vmatpush1.xpose.msra.mxu0 0.0
      %2378 = vmatprep.subr.mxu0 0.0
      %2379 = vmatpush1.xpose.msra.mxu0 0.0
      %2380 = vmatprep.subr.mxu0 0.0
      %2381 = vmatpush1.xpose.msra.mxu0 0.0
      %2382 = vmatprep.subr.mxu0 0.0
      %2383 = vmatpush1.xpose.msra.mxu0 0.0
      %2384 = vmatprep.subr.mxu0 0.0
      %2385 = vmatpush1.xpose.msra.mxu0 0.0
      %2386 = vmatprep.subr.mxu0 0.0
      %2387 = vmatpush1.xpose.msra.mxu0 0.0
      %2388 = vmatprep.subr.mxu0 0.0
      %2389 = vmatpush1.xpose.msra.mxu0 0.0
      %2390 = vmatprep.subr.mxu0 0.0
      %2391 = vmatpush1.xpose.msra.mxu0 0.0
      %2392 = vmatprep.subr.mxu0 0.0
      %2393 = vmatpush1.xpose.msra.mxu0 0.0
      %2394 = vmatprep.subr.mxu0 0.0
      %2395 = vmatpush1.xpose.msra.mxu0 0.0
      %2396 = vmatprep.subr.mxu0 0.0
      %2397 = vmatpush1.xpose.msra.mxu0 0.0
      %2398 = vmatprep.subr.mxu0 0.0
      %2399 = vmatpush1.xpose.msra.mxu0 0.0
      %2400 = vmatprep.subr.mxu0 0.0
      %2401 = vmatpush1.xpose.msra.mxu0 0.0
      %2402 = vmatprep.subr.mxu0 0.0
      %2403 = vmatpush1.xpose.msra.mxu0 0.0
      %2404 = vmatprep.subr.mxu0 0.0
      %2405 = vmatpush1.xpose.msra.mxu0 0.0
      %2406 = vmatprep.subr.mxu0 0.0
      %2407 = vmatpush1.xpose.msra.mxu0 0.0
      %2408 = vmatprep.subr.mxu0 0.0
      %2409 = vmatpush1.xpose.msra.mxu0 0.0
      %2410 = vmatprep.subr.mxu0 0.0
      %2411 = vmatpush1.xpose.msra.mxu0 0.0
      %2412 = vmatprep.mubr.f32.mxu0 0.0
      %2413 = vmatmul.mubr.f32.gmra.mrb[0].mxu0 %v2344
      %v2414 = vpop.f32.mrb[0].mxu0
      %v2415 = vadd.f32 0.0, %v2414
      %v2416 = vpop.f32.mrb[0].mxu0
      %2417 = vdwg.mxu0
      %2418 = vrot.lane.b32.xlu0 %v537, 64
      %v2419 = vpop.permute.xlu0 %2418
      %2420 = vrot.lane.b32.xlu0 %v539, 64
      %v2421 = vpop.permute.xlu0 %2420
      %v2422 = vsel %vm652, %v2419, 0
      %v2424 = vsel %vm652, %v2421, 0
      %2426 = vmatprep.subr.mxu0 0.0
      %2427 = vmatpush1.xpose.msra.mxu0 %v2424
      %2428 = vmatprep.subr.mxu0 0.0
      %2429 = vmatpush1.xpose.msra.mxu0 0.0
      %2430 = vmatprep.subr.mxu0 0.0
      %2431 = vmatpush1.xpose.msra.mxu0 0.0
      %2432 = vmatprep.subr.mxu0 0.0
      %2433 = vmatpush1.xpose.msra.mxu0 0.0
      %2434 = vmatprep.subr.mxu0 0.0
      %2435 = vmatpush1.xpose.msra.mxu0 0.0
      %2436 = vmatprep.subr.mxu0 0.0
      %2437 = vmatpush1.xpose.msra.mxu0 0.0
      %2438 = vmatprep.subr.mxu0 0.0
      %2439 = vmatpush1.xpose.msra.mxu0 0.0
      %2440 = vmatprep.subr.mxu0 0.0
      %2441 = vmatpush1.xpose.msra.mxu0 0.0
      %2442 = vmatprep.subr.mxu0 0.0
      %2443 = vmatpush1.xpose.msra.mxu0 0.0
      %2444 = vmatprep.subr.mxu0 0.0
      %2445 = vmatpush1.xpose.msra.mxu0 0.0
      %2446 = vmatprep.subr.mxu0 0.0
      %2447 = vmatpush1.xpose.msra.mxu0 0.0
      %2448 = vmatprep.subr.mxu0 0.0
      %2449 = vmatpush1.xpose.msra.mxu0 0.0
      %2450 = vmatprep.subr.mxu0 0.0
      %2451 = vmatpush1.xpose.msra.mxu0 0.0
      %2452 = vmatprep.subr.mxu0 0.0
      %2453 = vmatpush1.xpose.msra.mxu0 0.0
      %2454 = vmatprep.subr.mxu0 0.0
      %2455 = vmatpush1.xpose.msra.mxu0 0.0
      %2456 = vmatprep.subr.mxu0 0.0
      %2457 = vmatpush1.xpose.msra.mxu0 0.0
      %2458 = vmatprep.subr.mxu0 0.0
      %2459 = vmatpush1.xpose.msra.mxu0 0.0
      %2460 = vmatprep.subr.mxu0 0.0
      %2461 = vmatpush1.xpose.msra.mxu0 0.0
      %2462 = vmatprep.subr.mxu0 0.0
      %2463 = vmatpush1.xpose.msra.mxu0 0.0
      %2464 = vmatprep.subr.mxu0 0.0
      %2465 = vmatpush1.xpose.msra.mxu0 0.0
      %2466 = vmatprep.subr.mxu0 0.0
      %2467 = vmatpush1.xpose.msra.mxu0 0.0
      %2468 = vmatprep.subr.mxu0 0.0
      %2469 = vmatpush1.xpose.msra.mxu0 0.0
      %2470 = vmatprep.subr.mxu0 0.0
      %2471 = vmatpush1.xpose.msra.mxu0 0.0
      %2472 = vmatprep.subr.mxu0 0.0
      %2473 = vmatpush1.xpose.msra.mxu0 0.0
      %2474 = vmatprep.subr.mxu0 0.0
      %2475 = vmatpush1.xpose.msra.mxu0 0.0
      %2476 = vmatprep.subr.mxu0 0.0
      %2477 = vmatpush1.xpose.msra.mxu0 0.0
      %2478 = vmatprep.subr.mxu0 0.0
      %2479 = vmatpush1.xpose.msra.mxu0 0.0
      %2480 = vmatprep.subr.mxu0 0.0
      %2481 = vmatpush1.xpose.msra.mxu0 0.0
      %2482 = vmatprep.subr.mxu0 0.0
      %2483 = vmatpush1.xpose.msra.mxu0 0.0
      %2484 = vmatprep.subr.mxu0 0.0
      %2485 = vmatpush1.xpose.msra.mxu0 0.0
      %2486 = vmatprep.subr.mxu0 0.0
      %2487 = vmatpush1.xpose.msra.mxu0 0.0
      %2488 = vmatprep.subr.mxu0 0.0
      %2489 = vmatpush1.xpose.msra.mxu0 0.0
      %2490 = vmatprep.mubr.f32.mxu0 0.0
      %2491 = vmatmul.mubr.f32.gmra.mrb[0].mxu0 %v2422
      %v2492 = vpop.f32.mrb[0].mxu0
      %v2493 = vadd.f32 0.0, %v2492
      %v2494 = vpop.f32.mrb[0].mxu0
      %2495 = vdwg.mxu0
      %2496 = vrot.lane.b32.xlu0 %v543, 64
      %v2497 = vpop.permute.xlu0 %2496
      %2498 = vrot.lane.b32.xlu0 %v545, 64
      %v2499 = vpop.permute.xlu0 %2498
      %v2500 = vsel %vm652, %v2497, 0
      %v2502 = vsel %vm652, %v2499, 0
      %2504 = vmatprep.subr.mxu0 0.0
      %2505 = vmatpush1.xpose.msra.mxu0 %v2502
      %2506 = vmatprep.subr.mxu0 0.0
      %2507 = vmatpush1.xpose.msra.mxu0 0.0
      %2508 = vmatprep.subr.mxu0 0.0
      %2509 = vmatpush1.xpose.msra.mxu0 0.0
      %2510 = vmatprep.subr.mxu0 0.0
      %2511 = vmatpush1.xpose.msra.mxu0 0.0
      %2512 = vmatprep.subr.mxu0 0.0
      %2513 = vmatpush1.xpose.msra.mxu0 0.0
      %2514 = vmatprep.subr.mxu0 0.0
      %2515 = vmatpush1.xpose.msra.mxu0 0.0
      %2516 = vmatprep.subr.mxu0 0.0
      %2517 = vmatpush1.xpose.msra.mxu0 0.0
      %2518 = vmatprep.subr.mxu0 0.0
      %2519 = vmatpush1.xpose.msra.mxu0 0.0
      %2520 = vmatprep.subr.mxu0 0.0
      %2521 = vmatpush1.xpose.msra.mxu0 0.0
      %2522 = vmatprep.subr.mxu0 0.0
      %2523 = vmatpush1.xpose.msra.mxu0 0.0
      %2524 = vmatprep.subr.mxu0 0.0
      %2525 = vmatpush1.xpose.msra.mxu0 0.0
      %2526 = vmatprep.subr.mxu0 0.0
      %2527 = vmatpush1.xpose.msra.mxu0 0.0
      %2528 = vmatprep.subr.mxu0 0.0
      %2529 = vmatpush1.xpose.msra.mxu0 0.0
      %2530 = vmatprep.subr.mxu0 0.0
      %2531 = vmatpush1.xpose.msra.mxu0 0.0
      %2532 = vmatprep.subr.mxu0 0.0
      %2533 = vmatpush1.xpose.msra.mxu0 0.0
      %2534 = vmatprep.subr.mxu0 0.0
      %2535 = vmatpush1.xpose.msra.mxu0 0.0
      %2536 = vmatprep.subr.mxu0 0.0
      %2537 = vmatpush1.xpose.msra.mxu0 0.0
      %2538 = vmatprep.subr.mxu0 0.0
      %2539 = vmatpush1.xpose.msra.mxu0 0.0
      %2540 = vmatprep.subr.mxu0 0.0
      %2541 = vmatpush1.xpose.msra.mxu0 0.0
      %2542 = vmatprep.subr.mxu0 0.0
      %2543 = vmatpush1.xpose.msra.mxu0 0.0
      %2544 = vmatprep.subr.mxu0 0.0
      %2545 = vmatpush1.xpose.msra.mxu0 0.0
      %2546 = vmatprep.subr.mxu0 0.0
      %2547 = vmatpush1.xpose.msra.mxu0 0.0
      %2548 = vmatprep.subr.mxu0 0.0
      %2549 = vmatpush1.xpose.msra.mxu0 0.0
      %2550 = vmatprep.subr.mxu0 0.0
      %2551 = vmatpush1.xpose.msra.mxu0 0.0
      %2552 = vmatprep.subr.mxu0 0.0
      %2553 = vmatpush1.xpose.msra.mxu0 0.0
      %2554 = vmatprep.subr.mxu0 0.0
      %2555 = vmatpush1.xpose.msra.mxu0 0.0
      %2556 = vmatprep.subr.mxu0 0.0
      %2557 = vmatpush1.xpose.msra.mxu0 0.0
      %2558 = vmatprep.subr.mxu0 0.0
      %2559 = vmatpush1.xpose.msra.mxu0 0.0
      %2560 = vmatprep.subr.mxu0 0.0
      %2561 = vmatpush1.xpose.msra.mxu0 0.0
      %2562 = vmatprep.subr.mxu0 0.0
      %2563 = vmatpush1.xpose.msra.mxu0 0.0
      %2564 = vmatprep.subr.mxu0 0.0
      %2565 = vmatpush1.xpose.msra.mxu0 0.0
      %2566 = vmatprep.subr.mxu0 0.0
      %2567 = vmatpush1.xpose.msra.mxu0 0.0
      %2568 = vmatprep.mubr.f32.mxu0 0.0
      %2569 = vmatmul.mubr.f32.gmra.mrb[0].mxu0 %v2500
      %v2570 = vpop.f32.mrb[0].mxu0
      %v2571 = vadd.f32 0.0, %v2570
      %v2572 = vpop.f32.mrb[0].mxu0
      %2573 = vdwg.mxu0
      %v2574 = vmul.f32 %v2025, 0.125
      %v2575 = vmul.f32 %v2103, 0.125
      %v2576 = vmul.f32 %v2181, 0.125
      %v2577 = vmul.f32 %v2259, 0.125
      %v2578 = vmul.f32 %v2337, 0.125
      %v2579 = vmul.f32 %v2415, 0.125
      %v2580 = vmul.f32 %v2493, 0.125
      %v2581 = vmul.f32 %v2571, 0.125
      %v2582 = vsel %vm1269, %v2574, -inf
      %2583 = vmax.xlane.f32.xlu0 %v2582
      %v2584 = vpop.xlane.xlu0 %2583
      %v2585 = vsel %vm1269, %v2575, -inf
      %2586 = vmax.xlane.f32.xlu0 %v2585
      %v2587 = vpop.xlane.xlu0 %2586
      %v2588 = vsel %vm1269, %v2576, -inf
      %2589 = vmax.xlane.f32.xlu0 %v2588
      %v2590 = vpop.xlane.xlu0 %2589
      %v2591 = vsel %vm1269, %v2577, -inf
      %2592 = vmax.xlane.f32.xlu0 %v2591
      %v2593 = vpop.xlane.xlu0 %2592
      %v2594 = vsel %vm1269, %v2578, -inf
      %2595 = vmax.xlane.f32.xlu0 %v2594
      %v2596 = vpop.xlane.xlu0 %2595
      %v2597 = vsel %vm1269, %v2579, -inf
      %2598 = vmax.xlane.f32.xlu0 %v2597
      %v2599 = vpop.xlane.xlu0 %2598
      %v2600 = vsel %vm1269, %v2580, -inf
      %2601 = vmax.xlane.f32.xlu0 %v2600
      %v2602 = vpop.xlane.xlu0 %2601
      %v2603 = vsel %vm1269, %v2581, -inf
      %2604 = vmax.xlane.f32.xlu0 %v2603
      %v2605 = vpop.xlane.xlu0 %2604
      %v2606 = vsub.f32 %v2574, %v2584
      %v2607 = vsub.f32 %v2575, %v2587
      %v2608 = vsub.f32 %v2576, %v2590
      %v2609 = vsub.f32 %v2577, %v2593
      %v2610 = vsub.f32 %v2578, %v2596
      %v2611 = vsub.f32 %v2579, %v2599
      %v2612 = vsub.f32 %v2580, %v2602
      %v2613 = vsub.f32 %v2581, %v2605
      %v2614 = vmul.f32 %v2606, 1.442695
      %v2615 = vpow.pop %v2614
      %v2616 = vmul.f32 %v2607, 1.442695
      %v2617 = vpow.pop %v2616
      %v2618 = vmul.f32 %v2608, 1.442695
      %v2619 = vpow.pop %v2618
      %v2620 = vmul.f32 %v2609, 1.442695
      %v2621 = vpow.pop %v2620
      %v2622 = vmul.f32 %v2610, 1.442695
      %v2623 = vpow.pop %v2622
      %v2624 = vmul.f32 %v2611, 1.442695
      %v2625 = vpow.pop %v2624
      %v2626 = vmul.f32 %v2612, 1.442695
      %v2627 = vpow.pop %v2626
      %v2628 = vmul.f32 %v2613, 1.442695
      %v2629 = vpow.pop %v2628
      %v2630 = vsel %vm1269, %v2615, 0.0
      %2631 = vadd.xlane.f32.xlu0 %v2630
      %v2632 = vpop.xlane.xlu0 %2631
      %v2633 = vsel %vm1269, %v2617, 0.0
      %2634 = vadd.xlane.f32.xlu0 %v2633
      %v2635 = vpop.xlane.xlu0 %2634
      %v2636 = vsel %vm1269, %v2619, 0.0
      %2637 = vadd.xlane.f32.xlu0 %v2636
      %v2638 = vpop.xlane.xlu0 %2637
      %v2639 = vsel %vm1269, %v2621, 0.0
      %2640 = vadd.xlane.f32.xlu0 %v2639
      %v2641 = vpop.xlane.xlu0 %2640
      %v2642 = vsel %vm1269, %v2623, 0.0
      %2643 = vadd.xlane.f32.xlu0 %v2642
      %v2644 = vpop.xlane.xlu0 %2643
      %v2645 = vsel %vm1269, %v2625, 0.0
      %2646 = vadd.xlane.f32.xlu0 %v2645
      %v2647 = vpop.xlane.xlu0 %2646
      %v2648 = vsel %vm1269, %v2627, 0.0
      %2649 = vadd.xlane.f32.xlu0 %v2648
      %v2650 = vpop.xlane.xlu0 %2649
      %v2651 = vsel %vm1269, %v2629, 0.0
      %2652 = vadd.xlane.f32.xlu0 %v2651
      %v2653 = vpop.xlane.xlu0 %2652
      %v2654 = vrcp.pop %v2632
      %v2655 = vmul.f32 %v2615, %v2654
      %v2656 = vrcp.pop %v2635
      %v2657 = vmul.f32 %v2617, %v2656
      %v2658 = vrcp.pop %v2638
      %v2659 = vmul.f32 %v2619, %v2658
      %v2660 = vrcp.pop %v2641
      %v2661 = vmul.f32 %v2621, %v2660
      %v2662 = vrcp.pop %v2644
      %v2663 = vmul.f32 %v2623, %v2662
      %v2664 = vrcp.pop %v2647
      %v2665 = vmul.f32 %v2625, %v2664
      %v2666 = vrcp.pop %v2650
      %v2667 = vmul.f32 %v2627, %v2666
      %v2668 = vrcp.pop %v2653
      %v2669 = vmul.f32 %v2629, %v2668
      %2671 = vrot.lane.b32.xlu0 %v614, 64
      %v2672 = vpop.permute.xlu0 %2671
      %v2675 = vsel %vm1269, %v2655, 0
      %2677 = vmatprep.subr.mxu0 0.0
      %2678 = vmatpush1.msra.mxu0 %v2672
      %2679 = vmatprep.subr.mxu0 0.0
      %2680 = vmatpush1.msra.mxu0 0.0
      %2681 = vmatprep.subr.mxu0 0.0
      %2682 = vmatpush1.msra.mxu0 0.0
      %2683 = vmatprep.subr.mxu0 0.0
      %2684 = vmatpush1.msra.mxu0 0.0
      %2685 = vmatprep.subr.mxu0 0.0
      %2686 = vmatpush1.msra.mxu0 0.0
      %2687 = vmatprep.subr.mxu0 0.0
      %2688 = vmatpush1.msra.mxu0 0.0
      %2689 = vmatprep.subr.mxu0 0.0
      %2690 = vmatpush1.msra.mxu0 0.0
      %2691 = vmatprep.subr.mxu0 0.0
      %2692 = vmatpush1.msra.mxu0 0.0
      %2693 = vmatprep.subr.mxu0 0.0
      %2694 = vmatpush1.msra.mxu0 0.0
      %2695 = vmatprep.subr.mxu0 0.0
      %2696 = vmatpush1.msra.mxu0 0.0
      %2697 = vmatprep.subr.mxu0 0.0
      %2698 = vmatpush1.msra.mxu0 0.0
      %2699 = vmatprep.subr.mxu0 0.0
      %2700 = vmatpush1.msra.mxu0 0.0
      %2701 = vmatprep.subr.mxu0 0.0
      %2702 = vmatpush1.msra.mxu0 0.0
      %2703 = vmatprep.subr.mxu0 0.0
      %2704 = vmatpush1.msra.mxu0 0.0
      %2705 = vmatprep.subr.mxu0 0.0
      %2706 = vmatpush1.msra.mxu0 0.0
      %2707 = vmatprep.subr.mxu0 0.0
      %2708 = vmatpush1.msra.mxu0 0.0
      %2709 = vmatprep.subr.mxu0 0.0
      %2710 = vmatpush1.msra.mxu0 0.0
      %2711 = vmatprep.subr.mxu0 0.0
      %2712 = vmatpush1.msra.mxu0 0.0
      %2713 = vmatprep.subr.mxu0 0.0
      %2714 = vmatpush1.msra.mxu0 0.0
      %2715 = vmatprep.subr.mxu0 0.0
      %2716 = vmatpush1.msra.mxu0 0.0
      %2717 = vmatprep.subr.mxu0 0.0
      %2718 = vmatpush1.msra.mxu0 0.0
      %2719 = vmatprep.subr.mxu0 0.0
      %2720 = vmatpush1.msra.mxu0 0.0
      %2721 = vmatprep.subr.mxu0 0.0
      %2722 = vmatpush1.msra.mxu0 0.0
      %2723 = vmatprep.subr.mxu0 0.0
      %2724 = vmatpush1.msra.mxu0 0.0
      %2725 = vmatprep.subr.mxu0 0.0
      %2726 = vmatpush1.msra.mxu0 0.0
      %2727 = vmatprep.subr.mxu0 0.0
      %2728 = vmatpush1.msra.mxu0 0.0
      %2729 = vmatprep.subr.mxu0 0.0
      %2730 = vmatpush1.msra.mxu0 0.0
      %2731 = vmatprep.subr.mxu0 0.0
      %2732 = vmatpush1.msra.mxu0 0.0
      %2733 = vmatprep.subr.mxu0 0.0
      %2734 = vmatpush1.msra.mxu0 0.0
      %2735 = vmatprep.subr.mxu0 0.0
      %2736 = vmatpush1.msra.mxu0 0.0
      %2737 = vmatprep.subr.mxu0 0.0
      %2738 = vmatpush1.msra.mxu0 0.0
      %2739 = vmatprep.subr.mxu0 0.0
      %2740 = vmatpush1.msra.mxu0 0.0
      %2741 = vmatprep.mubr.f32.mxu0 0.0
      %2742 = vmatmul.mubr.f32.gmra.mrb[0].mxu0 %v2675
      %v2743 = vpop.f32.mrb[0].mxu0
      %v2744 = vadd.f32 0.0, %v2743
      %v2745 = vpop.f32.mrb[0].mxu0
      %2746 = vdwg.mxu0
      %2748 = vrot.lane.b32.xlu0 %v619, 64
      %v2749 = vpop.permute.xlu0 %2748
      %v2752 = vsel %vm1269, %v2657, 0
      %2754 = vmatprep.subr.mxu0 0.0
      %2755 = vmatpush1.msra.mxu0 %v2749
      %2756 = vmatprep.subr.mxu0 0.0
      %2757 = vmatpush1.msra.mxu0 0.0
      %2758 = vmatprep.subr.mxu0 0.0
      %2759 = vmatpush1.msra.mxu0 0.0
      %2760 = vmatprep.subr.mxu0 0.0
      %2761 = vmatpush1.msra.mxu0 0.0
      %2762 = vmatprep.subr.mxu0 0.0
      %2763 = vmatpush1.msra.mxu0 0.0
      %2764 = vmatprep.subr.mxu0 0.0
      %2765 = vmatpush1.msra.mxu0 0.0
      %2766 = vmatprep.subr.mxu0 0.0
      %2767 = vmatpush1.msra.mxu0 0.0
      %2768 = vmatprep.subr.mxu0 0.0
      %2769 = vmatpush1.msra.mxu0 0.0
      %2770 = vmatprep.subr.mxu0 0.0
      %2771 = vmatpush1.msra.mxu0 0.0
      %2772 = vmatprep.subr.mxu0 0.0
      %2773 = vmatpush1.msra.mxu0 0.0
      %2774 = vmatprep.subr.mxu0 0.0
      %2775 = vmatpush1.msra.mxu0 0.0
      %2776 = vmatprep.subr.mxu0 0.0
      %2777 = vmatpush1.msra.mxu0 0.0
      %2778 = vmatprep.subr.mxu0 0.0
      %2779 = vmatpush1.msra.mxu0 0.0
      %2780 = vmatprep.subr.mxu0 0.0
      %2781 = vmatpush1.msra.mxu0 0.0
      %2782 = vmatprep.subr.mxu0 0.0
      %2783 = vmatpush1.msra.mxu0 0.0
      %2784 = vmatprep.subr.mxu0 0.0
      %2785 = vmatpush1.msra.mxu0 0.0
      %2786 = vmatprep.subr.mxu0 0.0
      %2787 = vmatpush1.msra.mxu0 0.0
      %2788 = vmatprep.subr.mxu0 0.0
      %2789 = vmatpush1.msra.mxu0 0.0
      %2790 = vmatprep.subr.mxu0 0.0
      %2791 = vmatpush1.msra.mxu0 0.0
      %2792 = vmatprep.subr.mxu0 0.0
      %2793 = vmatpush1.msra.mxu0 0.0
      %2794 = vmatprep.subr.mxu0 0.0
      %2795 = vmatpush1.msra.mxu0 0.0
      %2796 = vmatprep.subr.mxu0 0.0
      %2797 = vmatpush1.msra.mxu0 0.0
      %2798 = vmatprep.subr.mxu0 0.0
      %2799 = vmatpush1.msra.mxu0 0.0
      %2800 = vmatprep.subr.mxu0 0.0
      %2801 = vmatpush1.msra.mxu0 0.0
      %2802 = vmatprep.subr.mxu0 0.0
      %2803 = vmatpush1.msra.mxu0 0.0
      %2804 = vmatprep.subr.mxu0 0.0
      %2805 = vmatpush1.msra.mxu0 0.0
      %2806 = vmatprep.subr.mxu0 0.0
      %2807 = vmatpush1.msra.mxu0 0.0
      %2808 = vmatprep.subr.mxu0 0.0
      %2809 = vmatpush1.msra.mxu0 0.0
      %2810 = vmatprep.subr.mxu0 0.0
      %2811 = vmatpush1.msra.mxu0 0.0
      %2812 = vmatprep.subr.mxu0 0.0
      %2813 = vmatpush1.msra.mxu0 0.0
      %2814 = vmatprep.subr.mxu0 0.0
      %2815 = vmatpush1.msra.mxu0 0.0
      %2816 = vmatprep.subr.mxu0 0.0
      %2817 = vmatpush1.msra.mxu0 0.0
      %2818 = vmatprep.mubr.f32.mxu0 0.0
      %2819 = vmatmul.mubr.f32.gmra.mrb[0].mxu0 %v2752
      %v2820 = vpop.f32.mrb[0].mxu0
      %v2821 = vadd.f32 0.0, %v2820
      %v2822 = vpop.f32.mrb[0].mxu0
      %2823 = vdwg.mxu0
      %2825 = vrot.lane.b32.xlu0 %v624, 64
      %v2826 = vpop.permute.xlu0 %2825
      %v2829 = vsel %vm1269, %v2659, 0
      %2831 = vmatprep.subr.mxu0 0.0
      %2832 = vmatpush1.msra.mxu0 %v2826
      %2833 = vmatprep.subr.mxu0 0.0
      %2834 = vmatpush1.msra.mxu0 0.0
      %2835 = vmatprep.subr.mxu0 0.0
      %2836 = vmatpush1.msra.mxu0 0.0
      %2837 = vmatprep.subr.mxu0 0.0
      %2838 = vmatpush1.msra.mxu0 0.0
      %2839 = vmatprep.subr.mxu0 0.0
      %2840 = vmatpush1.msra.mxu0 0.0
      %2841 = vmatprep.subr.mxu0 0.0
      %2842 = vmatpush1.msra.mxu0 0.0
      %2843 = vmatprep.subr.mxu0 0.0
      %2844 = vmatpush1.msra.mxu0 0.0
      %2845 = vmatprep.subr.mxu0 0.0
      %2846 = vmatpush1.msra.mxu0 0.0
      %2847 = vmatprep.subr.mxu0 0.0
      %2848 = vmatpush1.msra.mxu0 0.0
      %2849 = vmatprep.subr.mxu0 0.0
      %2850 = vmatpush1.msra.mxu0 0.0
      %2851 = vmatprep.subr.mxu0 0.0
      %2852 = vmatpush1.msra.mxu0 0.0
      %2853 = vmatprep.subr.mxu0 0.0
      %2854 = vmatpush1.msra.mxu0 0.0
      %2855 = vmatprep.subr.mxu0 0.0
      %2856 = vmatpush1.msra.mxu0 0.0
      %2857 = vmatprep.subr.mxu0 0.0
      %2858 = vmatpush1.msra.mxu0 0.0
      %2859 = vmatprep.subr.mxu0 0.0
      %2860 = vmatpush1.msra.mxu0 0.0
      %2861 = vmatprep.subr.mxu0 0.0
      %2862 = vmatpush1.msra.mxu0 0.0
      %2863 = vmatprep.subr.mxu0 0.0
      %2864 = vmatpush1.msra.mxu0 0.0
      %2865 = vmatprep.subr.mxu0 0.0
      %2866 = vmatpush1.msra.mxu0 0.0
      %2867 = vmatprep.subr.mxu0 0.0
      %2868 = vmatpush1.msra.mxu0 0.0
      %2869 = vmatprep.subr.mxu0 0.0
      %2870 = vmatpush1.msra.mxu0 0.0
      %2871 = vmatprep.subr.mxu0 0.0
      %2872 = vmatpush1.msra.mxu0 0.0
      %2873 = vmatprep.subr.mxu0 0.0
      %2874 = vmatpush1.msra.mxu0 0.0
      %2875 = vmatprep.subr.mxu0 0.0
      %2876 = vmatpush1.msra.mxu0 0.0
      %2877 = vmatprep.subr.mxu0 0.0
      %2878 = vmatpush1.msra.mxu0 0.0
      %2879 = vmatprep.subr.mxu0 0.0
      %2880 = vmatpush1.msra.mxu0 0.0
      %2881 = vmatprep.subr.mxu0 0.0
      %2882 = vmatpush1.msra.mxu0 0.0
      %2883 = vmatprep.subr.mxu0 0.0
      %2884 = vmatpush1.msra.mxu0 0.0
      %2885 = vmatprep.subr.mxu0 0.0
      %2886 = vmatpush1.msra.mxu0 0.0
      %2887 = vmatprep.subr.mxu0 0.0
      %2888 = vmatpush1.msra.mxu0 0.0
      %2889 = vmatprep.subr.mxu0 0.0
      %2890 = vmatpush1.msra.mxu0 0.0
      %2891 = vmatprep.subr.mxu0 0.0
      %2892 = vmatpush1.msra.mxu0 0.0
      %2893 = vmatprep.subr.mxu0 0.0
      %2894 = vmatpush1.msra.mxu0 0.0
      %2895 = vmatprep.mubr.f32.mxu0 0.0
      %2896 = vmatmul.mubr.f32.gmra.mrb[0].mxu0 %v2829
      %v2897 = vpop.f32.mrb[0].mxu0
      %v2898 = vadd.f32 0.0, %v2897
      %v2899 = vpop.f32.mrb[0].mxu0
      %2900 = vdwg.mxu0
      %2902 = vrot.lane.b32.xlu0 %v629, 64
      %v2903 = vpop.permute.xlu0 %2902
      %v2906 = vsel %vm1269, %v2661, 0
      %2908 = vmatprep.subr.mxu0 0.0
      %2909 = vmatpush1.msra.mxu0 %v2903
      %2910 = vmatprep.subr.mxu0 0.0
      %2911 = vmatpush1.msra.mxu0 0.0
      %2912 = vmatprep.subr.mxu0 0.0
      %2913 = vmatpush1.msra.mxu0 0.0
      %2914 = vmatprep.subr.mxu0 0.0
      %2915 = vmatpush1.msra.mxu0 0.0
      %2916 = vmatprep.subr.mxu0 0.0
      %2917 = vmatpush1.msra.mxu0 0.0
      %2918 = vmatprep.subr.mxu0 0.0
      %2919 = vmatpush1.msra.mxu0 0.0
      %2920 = vmatprep.subr.mxu0 0.0
      %2921 = vmatpush1.msra.mxu0 0.0
      %2922 = vmatprep.subr.mxu0 0.0
      %2923 = vmatpush1.msra.mxu0 0.0
      %2924 = vmatprep.subr.mxu0 0.0
      %2925 = vmatpush1.msra.mxu0 0.0
      %2926 = vmatprep.subr.mxu0 0.0
      %2927 = vmatpush1.msra.mxu0 0.0
      %2928 = vmatprep.subr.mxu0 0.0
      %2929 = vmatpush1.msra.mxu0 0.0
      %2930 = vmatprep.subr.mxu0 0.0
      %2931 = vmatpush1.msra.mxu0 0.0
      %2932 = vmatprep.subr.mxu0 0.0
      %2933 = vmatpush1.msra.mxu0 0.0
      %2934 = vmatprep.subr.mxu0 0.0
      %2935 = vmatpush1.msra.mxu0 0.0
      %2936 = vmatprep.subr.mxu0 0.0
      %2937 = vmatpush1.msra.mxu0 0.0
      %2938 = vmatprep.subr.mxu0 0.0
      %2939 = vmatpush1.msra.mxu0 0.0
      %2940 = vmatprep.subr.mxu0 0.0
      %2941 = vmatpush1.msra.mxu0 0.0
      %2942 = vmatprep.subr.mxu0 0.0
      %2943 = vmatpush1.msra.mxu0 0.0
      %2944 = vmatprep.subr.mxu0 0.0
      %2945 = vmatpush1.msra.mxu0 0.0
      %2946 = vmatprep.subr.mxu0 0.0
      %2947 = vmatpush1.msra.mxu0 0.0
      %2948 = vmatprep.subr.mxu0 0.0
      %2949 = vmatpush1.msra.mxu0 0.0
      %2950 = vmatprep.subr.mxu0 0.0
      %2951 = vmatpush1.msra.mxu0 0.0
      %2952 = vmatprep.subr.mxu0 0.0
      %2953 = vmatpush1.msra.mxu0 0.0
      %2954 = vmatprep.subr.mxu0 0.0
      %2955 = vmatpush1.msra.mxu0 0.0
      %2956 = vmatprep.subr.mxu0 0.0
      %2957 = vmatpush1.msra.mxu0 0.0
      %2958 = vmatprep.subr.mxu0 0.0
      %2959 = vmatpush1.msra.mxu0 0.0
      %2960 = vmatprep.subr.mxu0 0.0
      %2961 = vmatpush1.msra.mxu0 0.0
      %2962 = vmatprep.subr.mxu0 0.0
      %2963 = vmatpush1.msra.mxu0 0.0
      %2964 = vmatprep.subr.mxu0 0.0
      %2965 = vmatpush1.msra.mxu0 0.0
      %2966 = vmatprep.subr.mxu0 0.0
      %2967 = vmatpush1.msra.mxu0 0.0
      %2968 = vmatprep.subr.mxu0 0.0
      %2969 = vmatpush1.msra.mxu0 0.0
      %2970 = vmatprep.subr.mxu0 0.0
      %2971 = vmatpush1.msra.mxu0 0.0
      %2972 = vmatprep.mubr.f32.mxu0 0.0
      %2973 = vmatmul.mubr.f32.gmra.mrb[0].mxu0 %v2906
      %v2974 = vpop.f32.mrb[0].mxu0
      %v2975 = vadd.f32 0.0, %v2974
      %v2976 = vpop.f32.mrb[0].mxu0
      %2977 = vdwg.mxu0
      %2979 = vrot.lane.b32.xlu0 %v634, 64
      %v2980 = vpop.permute.xlu0 %2979
      %v2983 = vsel %vm1269, %v2663, 0
      %2985 = vmatprep.subr.mxu0 0.0
      %2986 = vmatpush1.msra.mxu0 %v2980
      %2987 = vmatprep.subr.mxu0 0.0
      %2988 = vmatpush1.msra.mxu0 0.0
      %2989 = vmatprep.subr.mxu0 0.0
      %2990 = vmatpush1.msra.mxu0 0.0
      %2991 = vmatprep.subr.mxu0 0.0
      %2992 = vmatpush1.msra.mxu0 0.0
      %2993 = vmatprep.subr.mxu0 0.0
      %2994 = vmatpush1.msra.mxu0 0.0
      %2995 = vmatprep.subr.mxu0 0.0
      %2996 = vmatpush1.msra.mxu0 0.0
      %2997 = vmatprep.subr.mxu0 0.0
      %2998 = vmatpush1.msra.mxu0 0.0
      %2999 = vmatprep.subr.mxu0 0.0
      %3000 = vmatpush1.msra.mxu0 0.0
      %3001 = vmatprep.subr.mxu0 0.0
      %3002 = vmatpush1.msra.mxu0 0.0
      %3003 = vmatprep.subr.mxu0 0.0
      %3004 = vmatpush1.msra.mxu0 0.0
      %3005 = vmatprep.subr.mxu0 0.0
      %3006 = vmatpush1.msra.mxu0 0.0
      %3007 = vmatprep.subr.mxu0 0.0
      %3008 = vmatpush1.msra.mxu0 0.0
      %3009 = vmatprep.subr.mxu0 0.0
      %3010 = vmatpush1.msra.mxu0 0.0
      %3011 = vmatprep.subr.mxu0 0.0
      %3012 = vmatpush1.msra.mxu0 0.0
      %3013 = vmatprep.subr.mxu0 0.0
      %3014 = vmatpush1.msra.mxu0 0.0
      %3015 = vmatprep.subr.mxu0 0.0
      %3016 = vmatpush1.msra.mxu0 0.0
      %3017 = vmatprep.subr.mxu0 0.0
      %3018 = vmatpush1.msra.mxu0 0.0
      %3019 = vmatprep.subr.mxu0 0.0
      %3020 = vmatpush1.msra.mxu0 0.0
      %3021 = vmatprep.subr.mxu0 0.0
      %3022 = vmatpush1.msra.mxu0 0.0
      %3023 = vmatprep.subr.mxu0 0.0
      %3024 = vmatpush1.msra.mxu0 0.0
      %3025 = vmatprep.subr.mxu0 0.0
      %3026 = vmatpush1.msra.mxu0 0.0
      %3027 = vmatprep.subr.mxu0 0.0
      %3028 = vmatpush1.msra.mxu0 0.0
      %3029 = vmatprep.subr.mxu0 0.0
      %3030 = vmatpush1.msra.mxu0 0.0
      %3031 = vmatprep.subr.mxu0 0.0
      %3032 = vmatpush1.msra.mxu0 0.0
      %3033 = vmatprep.subr.mxu0 0.0
      %3034 = vmatpush1.msra.mxu0 0.0
      %3035 = vmatprep.subr.mxu0 0.0
      %3036 = vmatpush1.msra.mxu0 0.0
      %3037 = vmatprep.subr.mxu0 0.0
      %3038 = vmatpush1.msra.mxu0 0.0
      %3039 = vmatprep.subr.mxu0 0.0
      %3040 = vmatpush1.msra.mxu0 0.0
      %3041 = vmatprep.subr.mxu0 0.0
      %3042 = vmatpush1.msra.mxu0 0.0
      %3043 = vmatprep.subr.mxu0 0.0
      %3044 = vmatpush1.msra.mxu0 0.0
      %3045 = vmatprep.subr.mxu0 0.0
      %3046 = vmatpush1.msra.mxu0 0.0
      %3047 = vmatprep.subr.mxu0 0.0
      %3048 = vmatpush1.msra.mxu0 0.0
      %3049 = vmatprep.mubr.f32.mxu0 0.0
      %3050 = vmatmul.mubr.f32.gmra.mrb[0].mxu0 %v2983
      %v3051 = vpop.f32.mrb[0].mxu0
      %v3052 = vadd.f32 0.0, %v3051
      %v3053 = vpop.f32.mrb[0].mxu0
      %3054 = vdwg.mxu0
      %3056 = vrot.lane.b32.xlu0 %v639, 64
      %v3057 = vpop.permute.xlu0 %3056
      %v3060 = vsel %vm1269, %v2665, 0
      %3062 = vmatprep.subr.mxu0 0.0
      %3063 = vmatpush1.msra.mxu0 %v3057
      %3064 = vmatprep.subr.mxu0 0.0
      %3065 = vmatpush1.msra.mxu0 0.0
      %3066 = vmatprep.subr.mxu0 0.0
      %3067 = vmatpush1.msra.mxu0 0.0
      %3068 = vmatprep.subr.mxu0 0.0
      %3069 = vmatpush1.msra.mxu0 0.0
      %3070 = vmatprep.subr.mxu0 0.0
      %3071 = vmatpush1.msra.mxu0 0.0
      %3072 = vmatprep.subr.mxu0 0.0
      %3073 = vmatpush1.msra.mxu0 0.0
      %3074 = vmatprep.subr.mxu0 0.0
      %3075 = vmatpush1.msra.mxu0 0.0
      %3076 = vmatprep.subr.mxu0 0.0
      %3077 = vmatpush1.msra.mxu0 0.0
      %3078 = vmatprep.subr.mxu0 0.0
      %3079 = vmatpush1.msra.mxu0 0.0
      %3080 = vmatprep.subr.mxu0 0.0
      %3081 = vmatpush1.msra.mxu0 0.0
      %3082 = vmatprep.subr.mxu0 0.0
      %3083 = vmatpush1.msra.mxu0 0.0
      %3084 = vmatprep.subr.mxu0 0.0
      %3085 = vmatpush1.msra.mxu0 0.0
      %3086 = vmatprep.subr.mxu0 0.0
      %3087 = vmatpush1.msra.mxu0 0.0
      %3088 = vmatprep.subr.mxu0 0.0
      %3089 = vmatpush1.msra.mxu0 0.0
      %3090 = vmatprep.subr.mxu0 0.0
      %3091 = vmatpush1.msra.mxu0 0.0
      %3092 = vmatprep.subr.mxu0 0.0
      %3093 = vmatpush1.msra.mxu0 0.0
      %3094 = vmatprep.subr.mxu0 0.0
      %3095 = vmatpush1.msra.mxu0 0.0
      %3096 = vmatprep.subr.mxu0 0.0
      %3097 = vmatpush1.msra.mxu0 0.0
      %3098 = vmatprep.subr.mxu0 0.0
      %3099 = vmatpush1.msra.mxu0 0.0
      %3100 = vmatprep.subr.mxu0 0.0
      %3101 = vmatpush1.msra.mxu0 0.0
      %3102 = vmatprep.subr.mxu0 0.0
      %3103 = vmatpush1.msra.mxu0 0.0
      %3104 = vmatprep.subr.mxu0 0.0
      %3105 = vmatpush1.msra.mxu0 0.0
      %3106 = vmatprep.subr.mxu0 0.0
      %3107 = vmatpush1.msra.mxu0 0.0
      %3108 = vmatprep.subr.mxu0 0.0
      %3109 = vmatpush1.msra.mxu0 0.0
      %3110 = vmatprep.subr.mxu0 0.0
      %3111 = vmatpush1.msra.mxu0 0.0
      %3112 = vmatprep.subr.mxu0 0.0
      %3113 = vmatpush1.msra.mxu0 0.0
      %3114 = vmatprep.subr.mxu0 0.0
      %3115 = vmatpush1.msra.mxu0 0.0
      %3116 = vmatprep.subr.mxu0 0.0
      %3117 = vmatpush1.msra.mxu0 0.0
      %3118 = vmatprep.subr.mxu0 0.0
      %3119 = vmatpush1.msra.mxu0 0.0
      %3120 = vmatprep.subr.mxu0 0.0
      %3121 = vmatpush1.msra.mxu0 0.0
      %3122 = vmatprep.subr.mxu0 0.0
      %3123 = vmatpush1.msra.mxu0 0.0
      %3124 = vmatprep.subr.mxu0 0.0
      %3125 = vmatpush1.msra.mxu0 0.0
      %3126 = vmatprep.mubr.f32.mxu0 0.0
      %3127 = vmatmul.mubr.f32.gmra.mrb[0].mxu0 %v3060
      %v3128 = vpop.f32.mrb[0].mxu0
      %v3129 = vadd.f32 0.0, %v3128
      %v3130 = vpop.f32.mrb[0].mxu0
      %3131 = vdwg.mxu0
      %3133 = vrot.lane.b32.xlu0 %v644, 64
      %v3134 = vpop.permute.xlu0 %3133
      %v3137 = vsel %vm1269, %v2667, 0
      %3139 = vmatprep.subr.mxu0 0.0
      %3140 = vmatpush1.msra.mxu0 %v3134
      %3141 = vmatprep.subr.mxu0 0.0
      %3142 = vmatpush1.msra.mxu0 0.0
      %3143 = vmatprep.subr.mxu0 0.0
      %3144 = vmatpush1.msra.mxu0 0.0
      %3145 = vmatprep.subr.mxu0 0.0
      %3146 = vmatpush1.msra.mxu0 0.0
      %3147 = vmatprep.subr.mxu0 0.0
      %3148 = vmatpush1.msra.mxu0 0.0
      %3149 = vmatprep.subr.mxu0 0.0
      %3150 = vmatpush1.msra.mxu0 0.0
      %3151 = vmatprep.subr.mxu0 0.0
      %3152 = vmatpush1.msra.mxu0 0.0
      %3153 = vmatprep.subr.mxu0 0.0
      %3154 = vmatpush1.msra.mxu0 0.0
      %3155 = vmatprep.subr.mxu0 0.0
      %3156 = vmatpush1.msra.mxu0 0.0
      %3157 = vmatprep.subr.mxu0 0.0
      %3158 = vmatpush1.msra.mxu0 0.0
      %3159 = vmatprep.subr.mxu0 0.0
      %3160 = vmatpush1.msra.mxu0 0.0
      %3161 = vmatprep.subr.mxu0 0.0
      %3162 = vmatpush1.msra.mxu0 0.0
      %3163 = vmatprep.subr.mxu0 0.0
      %3164 = vmatpush1.msra.mxu0 0.0
      %3165 = vmatprep.subr.mxu0 0.0
      %3166 = vmatpush1.msra.mxu0 0.0
      %3167 = vmatprep.subr.mxu0 0.0
      %3168 = vmatpush1.msra.mxu0 0.0
      %3169 = vmatprep.subr.mxu0 0.0
      %3170 = vmatpush1.msra.mxu0 0.0
      %3171 = vmatprep.subr.mxu0 0.0
      %3172 = vmatpush1.msra.mxu0 0.0
      %3173 = vmatprep.subr.mxu0 0.0
      %3174 = vmatpush1.msra.mxu0 0.0
      %3175 = vmatprep.subr.mxu0 0.0
      %3176 = vmatpush1.msra.mxu0 0.0
      %3177 = vmatprep.subr.mxu0 0.0
      %3178 = vmatpush1.msra.mxu0 0.0
      %3179 = vmatprep.subr.mxu0 0.0
      %3180 = vmatpush1.msra.mxu0 0.0
      %3181 = vmatprep.subr.mxu0 0.0
      %3182 = vmatpush1.msra.mxu0 0.0
      %3183 = vmatprep.subr.mxu0 0.0
      %3184 = vmatpush1.msra.mxu0 0.0
      %3185 = vmatprep.subr.mxu0 0.0
      %3186 = vmatpush1.msra.mxu0 0.0
      %3187 = vmatprep.subr.mxu0 0.0
      %3188 = vmatpush1.msra.mxu0 0.0
      %3189 = vmatprep.subr.mxu0 0.0
      %3190 = vmatpush1.msra.mxu0 0.0
      %3191 = vmatprep.subr.mxu0 0.0
      %3192 = vmatpush1.msra.mxu0 0.0
      %3193 = vmatprep.subr.mxu0 0.0
      %3194 = vmatpush1.msra.mxu0 0.0
      %3195 = vmatprep.subr.mxu0 0.0
      %3196 = vmatpush1.msra.mxu0 0.0
      %3197 = vmatprep.subr.mxu0 0.0
      %3198 = vmatpush1.msra.mxu0 0.0
      %3199 = vmatprep.subr.mxu0 0.0
      %3200 = vmatpush1.msra.mxu0 0.0
      %3201 = vmatprep.subr.mxu0 0.0
      %3202 = vmatpush1.msra.mxu0 0.0
      %3203 = vmatprep.mubr.f32.mxu0 0.0
      %3204 = vmatmul.mubr.f32.gmra.mrb[0].mxu0 %v3137
      %v3205 = vpop.f32.mrb[0].mxu0
      %v3206 = vadd.f32 0.0, %v3205
      %v3207 = vpop.f32.mrb[0].mxu0
      %3208 = vdwg.mxu0
      %3210 = vrot.lane.b32.xlu0 %v649, 64
      %v3211 = vpop.permute.xlu0 %3210
      %v3214 = vsel %vm1269, %v2669, 0
      %3216 = vmatprep.subr.mxu0 0.0
      %3217 = vmatpush1.msra.mxu0 %v3211
      %3218 = vmatprep.subr.mxu0 0.0
      %3219 = vmatpush1.msra.mxu0 0.0
      %3220 = vmatprep.subr.mxu0 0.0
      %3221 = vmatpush1.msra.mxu0 0.0
      %3222 = vmatprep.subr.mxu0 0.0
      %3223 = vmatpush1.msra.mxu0 0.0
      %3224 = vmatprep.subr.mxu0 0.0
      %3225 = vmatpush1.msra.mxu0 0.0
      %3226 = vmatprep.subr.mxu0 0.0
      %3227 = vmatpush1.msra.mxu0 0.0
      %3228 = vmatprep.subr.mxu0 0.0
      %3229 = vmatpush1.msra.mxu0 0.0
      %3230 = vmatprep.subr.mxu0 0.0
      %3231 = vmatpush1.msra.mxu0 0.0
      %3232 = vmatprep.subr.mxu0 0.0
      %3233 = vmatpush1.msra.mxu0 0.0
      %3234 = vmatprep.subr.mxu0 0.0
      %3235 = vmatpush1.msra.mxu0 0.0
      %3236 = vmatprep.subr.mxu0 0.0
      %3237 = vmatpush1.msra.mxu0 0.0
      %3238 = vmatprep.subr.mxu0 0.0
      %3239 = vmatpush1.msra.mxu0 0.0
      %3240 = vmatprep.subr.mxu0 0.0
      %3241 = vmatpush1.msra.mxu0 0.0
      %3242 = vmatprep.subr.mxu0 0.0
      %3243 = vmatpush1.msra.mxu0 0.0
      %3244 = vmatprep.subr.mxu0 0.0
      %3245 = vmatpush1.msra.mxu0 0.0
      %3246 = vmatprep.subr.mxu0 0.0
      %3247 = vmatpush1.msra.mxu0 0.0
      %3248 = vmatprep.subr.mxu0 0.0
      %3249 = vmatpush1.msra.mxu0 0.0
      %3250 = vmatprep.subr.mxu0 0.0
      %3251 = vmatpush1.msra.mxu0 0.0
      %3252 = vmatprep.subr.mxu0 0.0
      %3253 = vmatpush1.msra.mxu0 0.0
      %3254 = vmatprep.subr.mxu0 0.0
      %3255 = vmatpush1.msra.mxu0 0.0
      %3256 = vmatprep.subr.mxu0 0.0
      %3257 = vmatpush1.msra.mxu0 0.0
      %3258 = vmatprep.subr.mxu0 0.0
      %3259 = vmatpush1.msra.mxu0 0.0
      %3260 = vmatprep.subr.mxu0 0.0
      %3261 = vmatpush1.msra.mxu0 0.0
      %3262 = vmatprep.subr.mxu0 0.0
      %3263 = vmatpush1.msra.mxu0 0.0
      %3264 = vmatprep.subr.mxu0 0.0
      %3265 = vmatpush1.msra.mxu0 0.0
      %3266 = vmatprep.subr.mxu0 0.0
      %3267 = vmatpush1.msra.mxu0 0.0
      %3268 = vmatprep.subr.mxu0 0.0
      %3269 = vmatpush1.msra.mxu0 0.0
      %3270 = vmatprep.subr.mxu0 0.0
      %3271 = vmatpush1.msra.mxu0 0.0
      %3272 = vmatprep.subr.mxu0 0.0
      %3273 = vmatpush1.msra.mxu0 0.0
      %3274 = vmatprep.subr.mxu0 0.0
      %3275 = vmatpush1.msra.mxu0 0.0
      %3276 = vmatprep.subr.mxu0 0.0
      %3277 = vmatpush1.msra.mxu0 0.0
      %3278 = vmatprep.subr.mxu0 0.0
      %3279 = vmatpush1.msra.mxu0 0.0
      %3280 = vmatprep.mubr.f32.mxu0 0.0
      %3281 = vmatmul.mubr.f32.gmra.mrb[0].mxu0 %v3214
      %v3282 = vpop.f32.mrb[0].mxu0
      %v3283 = vadd.f32 0.0, %v3282
      %v3284 = vpop.f32.mrb[0].mxu0
      %3285 = vdwg.mxu0
      %s3286 = scalar_lea.vmem %s3, 64
      %v3287 = vld [vmem:[%s3286] sm:$0xff]
      %v3288 = vld [vmem:[%s3286 + $0x8] sm:$0xff]
      %v3289 = vld [vmem:[%s3286 + $0x10] sm:$0xff]
      %v3290 = vld [vmem:[%s3286 + $0x18] sm:$0xff]
      %v3291 = vld [vmem:[%s3286 + $0x20] sm:$0xff]
      %v3292 = vld [vmem:[%s3286 + $0x28] sm:$0xff]
      %v3293 = vld [vmem:[%s3286 + $0x30] sm:$0xff]
      %v3294 = vld [vmem:[%s3286 + $0x38] sm:$0xff]
      %v3296 = vsel %vm652, %v2744, 0
      %v3299 = vsel %vm652, %v2821, 0
      %v3302 = vsel %vm652, %v2898, 0
      %v3305 = vsel %vm652, %v2975, 0
      %v3308 = vsel %vm652, %v3052, 0
      %v3311 = vsel %vm652, %v3129, 0
      %v3314 = vsel %vm652, %v3206, 0
      %v3317 = vsel %vm652, %v3283, 0
      %3319 = vmatprep.subr.mxu0 0.0
      %3320 = vmatpush1.msra.mxu0 %v3287
      %3321 = vmatprep.subr.mxu0 0.0
      %3322 = vmatpush1.msra.mxu0 %v3288
      %3323 = vmatprep.subr.mxu0 0.0
      %3324 = vmatpush1.msra.mxu0 %v3289
      %3325 = vmatprep.subr.mxu0 0.0
      %3326 = vmatpush1.msra.mxu0 %v3290
      %3327 = vmatprep.subr.mxu0 0.0
      %3328 = vmatpush1.msra.mxu0 %v3291
      %3329 = vmatprep.subr.mxu0 0.0
      %3330 = vmatpush1.msra.mxu0 %v3292
      %3331 = vmatprep.subr.mxu0 0.0
      %3332 = vmatpush1.msra.mxu0 %v3293
      %3333 = vmatprep.subr.mxu0 0.0
      %3334 = vmatpush1.msra.mxu0 %v3294
      %3335 = vmatprep.subr.mxu0 0.0
      %3336 = vmatpush1.msra.mxu0 0.0
      %3337 = vmatprep.subr.mxu0 0.0
      %3338 = vmatpush1.msra.mxu0 0.0
      %3339 = vmatprep.subr.mxu0 0.0
      %3340 = vmatpush1.msra.mxu0 0.0
      %3341 = vmatprep.subr.mxu0 0.0
      %3342 = vmatpush1.msra.mxu0 0.0
      %3343 = vmatprep.subr.mxu0 0.0
      %3344 = vmatpush1.msra.mxu0 0.0
      %3345 = vmatprep.subr.mxu0 0.0
      %3346 = vmatpush1.msra.mxu0 0.0
      %3347 = vmatprep.subr.mxu0 0.0
      %3348 = vmatpush1.msra.mxu0 0.0
      %3349 = vmatprep.subr.mxu0 0.0
      %3350 = vmatpush1.msra.mxu0 0.0
      %3351 = vmatprep.subr.mxu0 0.0
      %3352 = vmatpush1.msra.mxu0 0.0
      %3353 = vmatprep.subr.mxu0 0.0
      %3354 = vmatpush1.msra.mxu0 0.0
      %3355 = vmatprep.subr.mxu0 0.0
      %3356 = vmatpush1.msra.mxu0 0.0
      %3357 = vmatprep.subr.mxu0 0.0
      %3358 = vmatpush1.msra.mxu0 0.0
      %3359 = vmatprep.subr.mxu0 0.0
      %3360 = vmatpush1.msra.mxu0 0.0
      %3361 = vmatprep.subr.mxu0 0.0
      %3362 = vmatpush1.msra.mxu0 0.0
      %3363 = vmatprep.subr.mxu0 0.0
      %3364 = vmatpush1.msra.mxu0 0.0
      %3365 = vmatprep.subr.mxu0 0.0
      %3366 = vmatpush1.msra.mxu0 0.0
      %3367 = vmatprep.subr.mxu0 0.0
      %3368 = vmatpush1.msra.mxu0 0.0
      %3369 = vmatprep.subr.mxu0 0.0
      %3370 = vmatpush1.msra.mxu0 0.0
      %3371 = vmatprep.subr.mxu0 0.0
      %3372 = vmatpush1.msra.mxu0 0.0
      %3373 = vmatprep.subr.mxu0 0.0
      %3374 = vmatpush1.msra.mxu0 0.0
      %3375 = vmatprep.subr.mxu0 0.0
      %3376 = vmatpush1.msra.mxu0 0.0
      %3377 = vmatprep.subr.mxu0 0.0
      %3378 = vmatpush1.msra.mxu0 0.0
      %3379 = vmatprep.subr.mxu0 0.0
      %3380 = vmatpush1.msra.mxu0 0.0
      %3381 = vmatprep.subr.mxu0 0.0
      %3382 = vmatpush1.msra.mxu0 0.0
      %3383 = vmatprep.mubr.f32.mxu0 0.0
      %3384 = vmatmul.mubr.f32.gmra.mrb[0].mxu0 %v3296
      %v3385 = vpop.f32.mrb[0].mxu0
      %v3386 = vadd.f32 0.0, %v3385
      %v3387 = vpop.f32.mrb[0].mxu0
      %3388 = vmatprep.mubr.f32.mxu0 0.0
      %3389 = vmatmul.mubr.f32.gmra.mrb[0].mxu0 %v3299
      %v3390 = vpop.f32.mrb[0].mxu0
      %v3391 = vadd.f32 0.0, %v3390
      %v3392 = vpop.f32.mrb[0].mxu0
      %3393 = vmatprep.mubr.f32.mxu0 0.0
      %3394 = vmatmul.mubr.f32.gmra.mrb[0].mxu0 %v3302
      %v3395 = vpop.f32.mrb[0].mxu0
      %v3396 = vadd.f32 0.0, %v3395
      %v3397 = vpop.f32.mrb[0].mxu0
      %3398 = vmatprep.mubr.f32.mxu0 0.0
      %3399 = vmatmul.mubr.f32.gmra.mrb[0].mxu0 %v3305
      %v3400 = vpop.f32.mrb[0].mxu0
      %v3401 = vadd.f32 0.0, %v3400
      %v3402 = vpop.f32.mrb[0].mxu0
      %3403 = vmatprep.mubr.f32.mxu0 0.0
      %3404 = vmatmul.mubr.f32.gmra.mrb[0].mxu0 %v3308
      %v3405 = vpop.f32.mrb[0].mxu0
      %v3406 = vadd.f32 0.0, %v3405
      %v3407 = vpop.f32.mrb[0].mxu0
      %3408 = vmatprep.mubr.f32.mxu0 0.0
      %3409 = vmatmul.mubr.f32.gmra.mrb[0].mxu0 %v3311
      %v3410 = vpop.f32.mrb[0].mxu0
      %v3411 = vadd.f32 0.0, %v3410
      %v3412 = vpop.f32.mrb[0].mxu0
      %3413 = vmatprep.mubr.f32.mxu0 0.0
      %3414 = vmatmul.mubr.f32.gmra.mrb[0].mxu0 %v3314
      %v3415 = vpop.f32.mrb[0].mxu0
      %v3416 = vadd.f32 0.0, %v3415
      %v3417 = vpop.f32.mrb[0].mxu0
      %3418 = vmatprep.mubr.f32.mxu0 0.0
      %3419 = vmatmul.mubr.f32.gmra.mrb[0].mxu0 %v3317
      %v3420 = vpop.f32.mrb[0].mxu0
      %v3421 = vadd.f32 0.0, %v3420
      %v3422 = vpop.f32.mrb[0].mxu0
      %3423 = vdwg.mxu0
      %v3425 = vsel %vm652, %v1428, 0
      %v3428 = vsel %vm652, %v1501, 0
      %v3431 = vsel %vm652, %v1574, 0
      %v3434 = vsel %vm652, %v1647, 0
      %v3437 = vsel %vm652, %v1720, 0
      %v3440 = vsel %vm652, %v1793, 0
      %v3443 = vsel %vm652, %v1866, 0
      %v3446 = vsel %vm652, %v1939, 0
      %3448 = vmatprep.subr.mxu0 0.0
      %3449 = vmatpush1.msra.mxu0 %v1942
      %3450 = vmatprep.subr.mxu0 0.0
      %3451 = vmatpush1.msra.mxu0 %v1943
      %3452 = vmatprep.subr.mxu0 0.0
      %3453 = vmatpush1.msra.mxu0 %v1944
      %3454 = vmatprep.subr.mxu0 0.0
      %3455 = vmatpush1.msra.mxu0 %v1945
      %3456 = vmatprep.subr.mxu0 0.0
      %3457 = vmatpush1.msra.mxu0 %v1946
      %3458 = vmatprep.subr.mxu0 0.0
      %3459 = vmatpush1.msra.mxu0 %v1947
      %3460 = vmatprep.subr.mxu0 0.0
      %3461 = vmatpush1.msra.mxu0 %v1948
      %3462 = vmatprep.subr.mxu0 0.0
      %3463 = vmatpush1.msra.mxu0 %v1949
      %3464 = vmatprep.subr.mxu0 0.0
      %3465 = vmatpush1.msra.mxu0 0.0
      %3466 = vmatprep.subr.mxu0 0.0
      %3467 = vmatpush1.msra.mxu0 0.0
      %3468 = vmatprep.subr.mxu0 0.0
      %3469 = vmatpush1.msra.mxu0 0.0
      %3470 = vmatprep.subr.mxu0 0.0
      %3471 = vmatpush1.msra.mxu0 0.0
      %3472 = vmatprep.subr.mxu0 0.0
      %3473 = vmatpush1.msra.mxu0 0.0
      %3474 = vmatprep.subr.mxu0 0.0
      %3475 = vmatpush1.msra.mxu0 0.0
      %3476 = vmatprep.subr.mxu0 0.0
      %3477 = vmatpush1.msra.mxu0 0.0
      %3478 = vmatprep.subr.mxu0 0.0
      %3479 = vmatpush1.msra.mxu0 0.0
      %3480 = vmatprep.subr.mxu0 0.0
      %3481 = vmatpush1.msra.mxu0 0.0
      %3482 = vmatprep.subr.mxu0 0.0
      %3483 = vmatpush1.msra.mxu0 0.0
      %3484 = vmatprep.subr.mxu0 0.0
      %3485 = vmatpush1.msra.mxu0 0.0
      %3486 = vmatprep.subr.mxu0 0.0
      %3487 = vmatpush1.msra.mxu0 0.0
      %3488 = vmatprep.subr.mxu0 0.0
      %3489 = vmatpush1.msra.mxu0 0.0
      %3490 = vmatprep.subr.mxu0 0.0
      %3491 = vmatpush1.msra.mxu0 0.0
      %3492 = vmatprep.subr.mxu0 0.0
      %3493 = vmatpush1.msra.mxu0 0.0
      %3494 = vmatprep.subr.mxu0 0.0
      %3495 = vmatpush1.msra.mxu0 0.0
      %3496 = vmatprep.subr.mxu0 0.0
      %3497 = vmatpush1.msra.mxu0 0.0
      %3498 = vmatprep.subr.mxu0 0.0
      %3499 = vmatpush1.msra.mxu0 0.0
      %3500 = vmatprep.subr.mxu0 0.0
      %3501 = vmatpush1.msra.mxu0 0.0
      %3502 = vmatprep.subr.mxu0 0.0
      %3503 = vmatpush1.msra.mxu0 0.0
      %3504 = vmatprep.subr.mxu0 0.0
      %3505 = vmatpush1.msra.mxu0 0.0
      %3506 = vmatprep.subr.mxu0 0.0
      %3507 = vmatpush1.msra.mxu0 0.0
      %3508 = vmatprep.subr.mxu0 0.0
      %3509 = vmatpush1.msra.mxu0 0.0
      %3510 = vmatprep.subr.mxu0 0.0
      %3511 = vmatpush1.msra.mxu0 0.0
      %3512 = vmatprep.mubr.f32.mxu0 0.0
      %3513 = vmatmul.mubr.f32.gmra.mrb[0].mxu0 %v3425
      %v3514 = vpop.f32.mrb[0].mxu0
      %v3515 = vadd.f32 %v3386, %v3514
      %v3516 = vpop.f32.mrb[0].mxu0
      %3517 = vmatprep.mubr.f32.mxu0 0.0
      %3518 = vmatmul.mubr.f32.gmra.mrb[0].mxu0 %v3428
      %v3519 = vpop.f32.mrb[0].mxu0
      %v3520 = vadd.f32 %v3391, %v3519
      %v3521 = vpop.f32.mrb[0].mxu0
      %3522 = vmatprep.mubr.f32.mxu0 0.0
      %3523 = vmatmul.mubr.f32.gmra.mrb[0].mxu0 %v3431
      %v3524 = vpop.f32.mrb[0].mxu0
      %v3525 = vadd.f32 %v3396, %v3524
      %v3526 = vpop.f32.mrb[0].mxu0
      %3527 = vmatprep.mubr.f32.mxu0 0.0
      %3528 = vmatmul.mubr.f32.gmra.mrb[0].mxu0 %v3434
      %v3529 = vpop.f32.mrb[0].mxu0
      %v3530 = vadd.f32 %v3401, %v3529
      %v3531 = vpop.f32.mrb[0].mxu0
      %3532 = vmatprep.mubr.f32.mxu0 0.0
      %3533 = vmatmul.mubr.f32.gmra.mrb[0].mxu0 %v3437
      %v3534 = vpop.f32.mrb[0].mxu0
      %v3535 = vadd.f32 %v3406, %v3534
      %v3536 = vpop.f32.mrb[0].mxu0
      %3537 = vmatprep.mubr.f32.mxu0 0.0
      %3538 = vmatmul.mubr.f32.gmra.mrb[0].mxu0 %v3440
      %v3539 = vpop.f32.mrb[0].mxu0
      %v3540 = vadd.f32 %v3411, %v3539
      %v3541 = vpop.f32.mrb[0].mxu0
      %3542 = vmatprep.mubr.f32.mxu0 0.0
      %3543 = vmatmul.mubr.f32.gmra.mrb[0].mxu0 %v3443
      %v3544 = vpop.f32.mrb[0].mxu0
      %v3545 = vadd.f32 %v3416, %v3544
      %v3546 = vpop.f32.mrb[0].mxu0
      %3547 = vmatprep.mubr.f32.mxu0 0.0
      %3548 = vmatmul.mubr.f32.gmra.mrb[0].mxu0 %v3446
      %v3549 = vpop.f32.mrb[0].mxu0
      %v3550 = vadd.f32 %v3421, %v3549
      %v3551 = vpop.f32.mrb[0].mxu0
      %3552 = vdwg.mxu0
      %v3553 = vlaneseq
      %v3554 = vshrl.u32 %v3553, 7
      %v3555 = vsub.s32 0, %v3554
      %v3556 = vrot.slane %v368, %v3555
      %v3557 = vadd.f32 %v3515, %v3556
      %v3558 = vadd.f32 %v3520, %v3556
      %v3559 = vadd.f32 %v3525, %v3556
      %v3560 = vadd.f32 %v3530, %v3556
      %v3561 = vadd.f32 %v3535, %v3556
      %v3562 = vadd.f32 %v3540, %v3556
      %v3563 = vadd.f32 %v3545, %v3556
      %v3564 = vadd.f32 %v3550, %v3556
      %v3565 = vadd.f32 %v360, %v3557
      %v3566 = vadd.f32 %v361, %v3558
      %v3567 = vadd.f32 %v362, %v3559
      %v3568 = vadd.f32 %v363, %v3560
      %v3569 = vadd.f32 %v364, %v3561
      %v3570 = vadd.f32 %v365, %v3562
      %v3571 = vadd.f32 %v366, %v3563
      %v3572 = vadd.f32 %v367, %v3564
      %3573 = vadd.xlane.f32.xlu0 %v3565
      %v3574 = vpop.xlane.xlu0 %3573
      %3575 = vadd.xlane.f32.xlu0 %v3566
      %v3576 = vpop.xlane.xlu0 %3575
      %3577 = vadd.xlane.f32.xlu0 %v3567
      %v3578 = vpop.xlane.xlu0 %3577
      %3579 = vadd.xlane.f32.xlu0 %v3568
      %v3580 = vpop.xlane.xlu0 %3579
      %3581 = vadd.xlane.f32.xlu0 %v3569
      %v3582 = vpop.xlane.xlu0 %3581
      %3583 = vadd.xlane.f32.xlu0 %v3570
      %v3584 = vpop.xlane.xlu0 %3583
      %3585 = vadd.xlane.f32.xlu0 %v3571
      %v3586 = vpop.xlane.xlu0 %3585
      %3587 = vadd.xlane.f32.xlu0 %v3572
      %v3588 = vpop.xlane.xlu0 %3587
      %v3589 = vrcp.pop 128.0
      %v3590 = vmul.f32 %v3574, %v3589
      %v3591 = vmul.f32 %v3576, %v3589
      %v3592 = vmul.f32 %v3578, %v3589
      %v3593 = vmul.f32 %v3580, %v3589
      %v3594 = vmul.f32 %v3582, %v3589
      %v3595 = vmul.f32 %v3584, %v3589
      %v3596 = vmul.f32 %v3586, %v3589
      %v3597 = vmul.f32 %v3588, %v3589
      %v3598 = vsub.f32 %v3565, %v3590
      %v3599 = vsub.f32 %v3566, %v3591
      %v3600 = vsub.f32 %v3567, %v3592
      %v3601 = vsub.f32 %v3568, %v3593
      %v3602 = vsub.f32 %v3569, %v3594
      %v3603 = vsub.f32 %v3570, %v3595
      %v3604 = vsub.f32 %v3571, %v3596
      %v3605 = vsub.f32 %v3572, %v3597
      %v3606 = vmul.f32 %v3598, %v3598
      %v3607 = vmul.f32 %v3599, %v3599
      %v3608 = vmul.f32 %v3600, %v3600
      %v3609 = vmul.f32 %v3601, %v3601
      %v3610 = vmul.f32 %v3602, %v3602
      %v3611 = vmul.f32 %v3603, %v3603
      %v3612 = vmul.f32 %v3604, %v3604
      %v3613 = vmul.f32 %v3605, %v3605
      %3614 = vadd.xlane.f32.xlu0 %v3606
      %v3615 = vpop.xlane.xlu0 %3614
      %3616 = vadd.xlane.f32.xlu0 %v3607
      %v3617 = vpop.xlane.xlu0 %3616
      %3618 = vadd.xlane.f32.xlu0 %v3608
      %v3619 = vpop.xlane.xlu0 %3618
      %3620 = vadd.xlane.f32.xlu0 %v3609
      %v3621 = vpop.xlane.xlu0 %3620
      %3622 = vadd.xlane.f32.xlu0 %v3610
      %v3623 = vpop.xlane.xlu0 %3622
      %3624 = vadd.xlane.f32.xlu0 %v3611
      %v3625 = vpop.xlane.xlu0 %3624
      %3626 = vadd.xlane.f32.xlu0 %v3612
      %v3627 = vpop.xlane.xlu0 %3626
      %3628 = vadd.xlane.f32.xlu0 %v3613
      %v3629 = vpop.xlane.xlu0 %3628
      %v3630 = vmul.f32 %v3615, %v3589
      %v3631 = vmul.f32 %v3617, %v3589
      %v3632 = vmul.f32 %v3619, %v3589
      %v3633 = vmul.f32 %v3621, %v3589
      %v3634 = vmul.f32 %v3623, %v3589
      %v3635 = vmul.f32 %v3625, %v3589
      %v3636 = vmul.f32 %v3627, %v3589
      %v3637 = vmul.f32 %v3629, %v3589
      %v3638 = vadd.f32 %v3630, 1e-05
      %v3639 = vadd.f32 %v3631, 1e-05
      %v3640 = vadd.f32 %v3632, 1e-05
      %v3641 = vadd.f32 %v3633, 1e-05
      %v3642 = vadd.f32 %v3634, 1e-05
      %v3643 = vadd.f32 %v3635, 1e-05
      %v3644 = vadd.f32 %v3636, 1e-05
      %v3645 = vadd.f32 %v3637, 1e-05
      %v3646 = vrsqrt.pop %v3638
      %v3647 = vrsqrt.pop %v3639
      %v3648 = vrsqrt.pop %v3640
      %v3649 = vrsqrt.pop %v3641
      %v3650 = vrsqrt.pop %v3642
      %v3651 = vrsqrt.pop %v3643
      %v3652 = vrsqrt.pop %v3644
      %v3653 = vrsqrt.pop %v3645
      %v3654 = vmul.f32 %v3598, %v3646
      %v3655 = vmul.f32 %v3599, %v3647
      %v3656 = vmul.f32 %v3600, %v3648
      %v3657 = vmul.f32 %v3601, %v3649
      %v3658 = vmul.f32 %v3602, %v3650
      %v3659 = vmul.f32 %v3603, %v3651
      %v3660 = vmul.f32 %v3604, %v3652
      %v3661 = vmul.f32 %v3605, %v3653
      %v3662 = vlaneseq
      %v3663 = vshrl.u32 %v3662, 7
      %v3664 = vsub.s32 1, %v3663
      %v3665 = vrot.slane %v368, %v3664
      %v3666 = vmul.f32 %v3654, %v3665
      %v3667 = vmul.f32 %v3655, %v3665
      %v3668 = vmul.f32 %v3656, %v3665
      %v3669 = vmul.f32 %v3657, %v3665
      %v3670 = vmul.f32 %v3658, %v3665
      %v3671 = vmul.f32 %v3659, %v3665
      %v3672 = vmul.f32 %v3660, %v3665
      %v3673 = vmul.f32 %v3661, %v3665
      %v3674 = vlaneseq
      %v3675 = vshrl.u32 %v3674, 7
      %v3676 = vsub.s32 2, %v3675
      %v3677 = vrot.slane %v368, %v3676
      %v3678 = vadd.f32 %v3666, %v3677
      %v3679 = vadd.f32 %v3667, %v3677
      %v3680 = vadd.f32 %v3668, %v3677
      %v3681 = vadd.f32 %v3669, %v3677
      %v3682 = vadd.f32 %v3670, %v3677
      %v3683 = vadd.f32 %v3671, %v3677
      %v3684 = vadd.f32 %v3672, %v3677
      %v3685 = vadd.f32 %v3673, %v3677
      %v3686 = vld [vmem:[%s5] sm:$0xff]
      %v3687 = vld [vmem:[%s5 + $0x8] sm:$0xff]
      %v3688 = vld [vmem:[%s5 + $0x10] sm:$0xff]
      %v3689 = vld [vmem:[%s5 + $0x18] sm:$0xff]
      %v3690 = vld [vmem:[%s5 + $0x20] sm:$0xff]
      %v3691 = vld [vmem:[%s5 + $0x28] sm:$0xff]
      %v3692 = vld [vmem:[%s5 + $0x30] sm:$0xff]
      %v3693 = vld [vmem:[%s5 + $0x38] sm:$0xff]
      %v3694 = vld [vmem:[%s5 + $0x40] sm:$0xff]
      %v3695 = vld [vmem:[%s5 + $0x48] sm:$0xff]
      %v3696 = vld [vmem:[%s5 + $0x50] sm:$0xff]
      %v3697 = vld [vmem:[%s5 + $0x58] sm:$0xff]
      %v3698 = vld [vmem:[%s5 + $0x60] sm:$0xff]
      %v3699 = vld [vmem:[%s5 + $0x68] sm:$0xff]
      %v3700 = vld [vmem:[%s5 + $0x70] sm:$0xff]
      %v3701 = vld [vmem:[%s5 + $0x78] sm:$0xff]
      %v3702 = vld [vmem:[%s5 + $0x80] sm:$0xff]
      %v3703 = vld [vmem:[%s5 + $0x88] sm:$0xff]
      %v3704 = vld [vmem:[%s5 + $0x90] sm:$0xff]
      %v3705 = vld [vmem:[%s5 + $0x98] sm:$0xff]
      %v3706 = vld [vmem:[%s5 + $0xa0] sm:$0xff]
      %v3707 = vld [vmem:[%s5 + $0xa8] sm:$0xff]
      %v3708 = vld [vmem:[%s5 + $0xb0] sm:$0xff]
      %v3709 = vld [vmem:[%s5 + $0xb8] sm:$0xff]
      %v3710 = vld [vmem:[%s5 + $0xc0] sm:$0xff]
      %v3711 = vld [vmem:[%s5 + $0xc8] sm:$0xff]
      %v3712 = vld [vmem:[%s5 + $0xd0] sm:$0xff]
      %v3713 = vld [vmem:[%s5 + $0xd8] sm:$0xff]
      %v3714 = vld [vmem:[%s5 + $0xe0] sm:$0xff]
      %v3715 = vld [vmem:[%s5 + $0xe8] sm:$0xff]
      %v3716 = vld [vmem:[%s5 + $0xf0] sm:$0xff]
      %v3717 = vld [vmem:[%s5 + $0xf8] sm:$0xff]
      %v3718 = vld [vmem:[%s6] sm:$0x3]
      %v3720 = vlaneseq
      %v3721 = vshrl.u32 %v3720, 7
      %v3722 = vsub.s32 0, %v3721
      %v3723 = vrot.slane %v3718, %v3722
      %v3724 = vlaneseq
      %v3725 = vshrl.u32 %v3724, 7
      %v3726 = vsub.s32 1, %v3725
      %v3727 = vrot.slane %v3718, %v3726
      %3730 = vmatprep.subr.mxu0 %v3687
      %3731 = vmatpush1.msra.mxu0 %v3686
      %3732 = vmatprep.subr.mxu0 %v3689
      %3733 = vmatpush1.msra.mxu0 %v3688
      %3734 = vmatprep.subr.mxu0 %v3691
      %3735 = vmatpush1.msra.mxu0 %v3690
      %3736 = vmatprep.subr.mxu0 %v3693
      %3737 = vmatpush1.msra.mxu0 %v3692
      %3738 = vmatprep.subr.mxu0 %v3695
      %3739 = vmatpush1.msra.mxu0 %v3694
      %3740 = vmatprep.subr.mxu0 %v3697
      %3741 = vmatpush1.msra.mxu0 %v3696
      %3742 = vmatprep.subr.mxu0 %v3699
      %3743 = vmatpush1.msra.mxu0 %v3698
      %3744 = vmatprep.subr.mxu0 %v3701
      %3745 = vmatpush1.msra.mxu0 %v3700
      %3746 = vmatprep.subr.mxu0 %v3703
      %3747 = vmatpush1.msra.mxu0 %v3702
      %3748 = vmatprep.subr.mxu0 %v3705
      %3749 = vmatpush1.msra.mxu0 %v3704
      %3750 = vmatprep.subr.mxu0 %v3707
      %3751 = vmatpush1.msra.mxu0 %v3706
      %3752 = vmatprep.subr.mxu0 %v3709
      %3753 = vmatpush1.msra.mxu0 %v3708
      %3754 = vmatprep.subr.mxu0 %v3711
      %3755 = vmatpush1.msra.mxu0 %v3710
      %3756 = vmatprep.subr.mxu0 %v3713
      %3757 = vmatpush1.msra.mxu0 %v3712
      %3758 = vmatprep.subr.mxu0 %v3715
      %3759 = vmatpush1.msra.mxu0 %v3714
      %3760 = vmatprep.subr.mxu0 %v3717
      %3761 = vmatpush1.msra.mxu0 %v3716
      %3762 = vmatprep.subr.mxu0 0.0
      %3763 = vmatpush1.msra.mxu0 0.0
      %3764 = vmatprep.subr.mxu0 0.0
      %3765 = vmatpush1.msra.mxu0 0.0
      %3766 = vmatprep.subr.mxu0 0.0
      %3767 = vmatpush1.msra.mxu0 0.0
      %3768 = vmatprep.subr.mxu0 0.0
      %3769 = vmatpush1.msra.mxu0 0.0
      %3770 = vmatprep.subr.mxu0 0.0
      %3771 = vmatpush1.msra.mxu0 0.0
      %3772 = vmatprep.subr.mxu0 0.0
      %3773 = vmatpush1.msra.mxu0 0.0
      %3774 = vmatprep.subr.mxu0 0.0
      %3775 = vmatpush1.msra.mxu0 0.0
      %3776 = vmatprep.subr.mxu0 0.0
      %3777 = vmatpush1.msra.mxu0 0.0
      %3778 = vmatprep.subr.mxu0 0.0
      %3779 = vmatpush1.msra.mxu0 0.0
      %3780 = vmatprep.subr.mxu0 0.0
      %3781 = vmatpush1.msra.mxu0 0.0
      %3782 = vmatprep.subr.mxu0 0.0
      %3783 = vmatpush1.msra.mxu0 0.0
      %3784 = vmatprep.subr.mxu0 0.0
      %3785 = vmatpush1.msra.mxu0 0.0
      %3786 = vmatprep.subr.mxu0 0.0
      %3787 = vmatpush1.msra.mxu0 0.0
      %3788 = vmatprep.subr.mxu0 0.0
      %3789 = vmatpush1.msra.mxu0 0.0
      %3790 = vmatprep.subr.mxu0 0.0
      %3791 = vmatpush1.msra.mxu0 0.0
      %3792 = vmatprep.subr.mxu0 0.0
      %3793 = vmatpush1.msra.mxu0 0.0
      %3794 = vmatprep.mubr.f32.mxu0 0.0
      %3795 = vmatmul.mubr.f32.gmra.mrb[0].mxu0 %v3678
      %v3796 = vpop.f32.mrb[0].mxu0
      %v3797 = vadd.f32 %v3723, %v3796
      %v3798 = vpop.f32.mrb[0].mxu0
      %v3799 = vadd.f32 %v3727, %v3798
      %3800 = vmatprep.mubr.f32.mxu0 0.0
      %3801 = vmatmul.mubr.f32.gmra.mrb[0].mxu0 %v3679
      %v3802 = vpop.f32.mrb[0].mxu0
      %v3803 = vadd.f32 %v3723, %v3802
      %v3804 = vpop.f32.mrb[0].mxu0
      %v3805 = vadd.f32 %v3727, %v3804
      %3806 = vmatprep.mubr.f32.mxu0 0.0
      %3807 = vmatmul.mubr.f32.gmra.mrb[0].mxu0 %v3680
      %v3808 = vpop.f32.mrb[0].mxu0
      %v3809 = vadd.f32 %v3723, %v3808
      %v3810 = vpop.f32.mrb[0].mxu0
      %v3811 = vadd.f32 %v3727, %v3810
      %3812 = vmatprep.mubr.f32.mxu0 0.0
      %3813 = vmatmul.mubr.f32.gmra.mrb[0].mxu0 %v3681
      %v3814 = vpop.f32.mrb[0].mxu0
      %v3815 = vadd.f32 %v3723, %v3814
      %v3816 = vpop.f32.mrb[0].mxu0
      %v3817 = vadd.f32 %v3727, %v3816
      %3818 = vmatprep.mubr.f32.mxu0 0.0
      %3819 = vmatmul.mubr.f32.gmra.mrb[0].mxu0 %v3682
      %v3820 = vpop.f32.mrb[0].mxu0
      %v3821 = vadd.f32 %v3723, %v3820
      %v3822 = vpop.f32.mrb[0].mxu0
      %v3823 = vadd.f32 %v3727, %v3822
      %3824 = vmatprep.mubr.f32.mxu0 0.0
      %3825 = vmatmul.mubr.f32.gmra.mrb[0].mxu0 %v3683
      %v3826 = vpop.f32.mrb[0].mxu0
      %v3827 = vadd.f32 %v3723, %v3826
      %v3828 = vpop.f32.mrb[0].mxu0
      %v3829 = vadd.f32 %v3727, %v3828
      %3830 = vmatprep.mubr.f32.mxu0 0.0
      %3831 = vmatmul.mubr.f32.gmra.mrb[0].mxu0 %v3684
      %v3832 = vpop.f32.mrb[0].mxu0
      %v3833 = vadd.f32 %v3723, %v3832
      %v3834 = vpop.f32.mrb[0].mxu0
      %v3835 = vadd.f32 %v3727, %v3834
      %3836 = vmatprep.mubr.f32.mxu0 0.0
      %3837 = vmatmul.mubr.f32.gmra.mrb[0].mxu0 %v3685
      %v3838 = vpop.f32.mrb[0].mxu0
      %v3839 = vadd.f32 %v3723, %v3838
      %v3840 = vpop.f32.mrb[0].mxu0
      %v3841 = vadd.f32 %v3727, %v3840
      %3842 = vdwg.mxu0
      %v3843 = vmax.f32 %v3797, 0.0
      %v3844 = vmax.f32 %v3799, 0.0
      %v3845 = vmax.f32 %v3803, 0.0
      %v3846 = vmax.f32 %v3805, 0.0
      %v3847 = vmax.f32 %v3809, 0.0
      %v3848 = vmax.f32 %v3811, 0.0
      %v3849 = vmax.f32 %v3815, 0.0
      %v3850 = vmax.f32 %v3817, 0.0
      %v3851 = vmax.f32 %v3821, 0.0
      %v3852 = vmax.f32 %v3823, 0.0
      %v3853 = vmax.f32 %v3827, 0.0
      %v3854 = vmax.f32 %v3829, 0.0
      %v3855 = vmax.f32 %v3833, 0.0
      %v3856 = vmax.f32 %v3835, 0.0
      %v3857 = vmax.f32 %v3839, 0.0
      %v3858 = vmax.f32 %v3841, 0.0
      %v3859 = vld [vmem:[%s7] sm:$0xff]
      %v3860 = vld [vmem:[%s7 + $0x8] sm:$0xff]
      %v3861 = vld [vmem:[%s7 + $0x10] sm:$0xff]
      %v3862 = vld [vmem:[%s7 + $0x18] sm:$0xff]
      %v3863 = vld [vmem:[%s7 + $0x20] sm:$0xff]
      %v3864 = vld [vmem:[%s7 + $0x28] sm:$0xff]
      %v3865 = vld [vmem:[%s7 + $0x30] sm:$0xff]
      %v3866 = vld [vmem:[%s7 + $0x38] sm:$0xff]
      %v3867 = vld [vmem:[%s7 + $0x40] sm:$0xff]
      %v3868 = vld [vmem:[%s7 + $0x48] sm:$0xff]
      %v3869 = vld [vmem:[%s7 + $0x50] sm:$0xff]
      %v3870 = vld [vmem:[%s7 + $0x58] sm:$0xff]
      %v3871 = vld [vmem:[%s7 + $0x60] sm:$0xff]
      %v3872 = vld [vmem:[%s7 + $0x68] sm:$0xff]
      %v3873 = vld [vmem:[%s7 + $0x70] sm:$0xff]
      %v3874 = vld [vmem:[%s7 + $0x78] sm:$0xff]
      %v3875 = vld [vmem:[%s7 + $0x80] sm:$0xff]
      %v3876 = vld [vmem:[%s7 + $0x88] sm:$0xff]
      %v3877 = vld [vmem:[%s7 + $0x90] sm:$0xff]
      %v3878 = vld [vmem:[%s7 + $0x98] sm:$0xff]
      %v3879 = vld [vmem:[%s7 + $0xa0] sm:$0xff]
      %v3880 = vld [vmem:[%s7 + $0xa8] sm:$0xff]
      %v3881 = vld [vmem:[%s7 + $0xb0] sm:$0xff]
      %v3882 = vld [vmem:[%s7 + $0xb8] sm:$0xff]
      %v3883 = vld [vmem:[%s7 + $0xc0] sm:$0xff]
      %v3884 = vld [vmem:[%s7 + $0xc8] sm:$0xff]
      %v3885 = vld [vmem:[%s7 + $0xd0] sm:$0xff]
      %v3886 = vld [vmem:[%s7 + $0xd8] sm:$0xff]
      %v3887 = vld [vmem:[%s7 + $0xe0] sm:$0xff]
      %v3888 = vld [vmem:[%s7 + $0xe8] sm:$0xff]
      %v3889 = vld [vmem:[%s7 + $0xf0] sm:$0xff]
      %v3890 = vld [vmem:[%s7 + $0xf8] sm:$0xff]
      %v3891 = vlaneseq
      %v3892 = vshrl.u32 %v3891, 7
      %v3893 = vsub.s32 3, %v3892
      %v3894 = vrot.slane %v368, %v3893
      %3895 = vmatprep.subr.mxu0 0.0
      %3896 = vmatpush1.msra.mxu0 %v3859
      %3897 = vmatprep.subr.mxu0 0.0
      %3898 = vmatpush1.msra.mxu0 %v3860
      %3899 = vmatprep.subr.mxu0 0.0
      %3900 = vmatpush1.msra.mxu0 %v3861
      %3901 = vmatprep.subr.mxu0 0.0
      %3902 = vmatpush1.msra.mxu0 %v3862
      %3903 = vmatprep.subr.mxu0 0.0
      %3904 = vmatpush1.msra.mxu0 %v3863
      %3905 = vmatprep.subr.mxu0 0.0
      %3906 = vmatpush1.msra.mxu0 %v3864
      %3907 = vmatprep.subr.mxu0 0.0
      %3908 = vmatpush1.msra.mxu0 %v3865
      %3909 = vmatprep.subr.mxu0 0.0
      %3910 = vmatpush1.msra.mxu0 %v3866
      %3911 = vmatprep.subr.mxu0 0.0
      %3912 = vmatpush1.msra.mxu0 %v3867
      %3913 = vmatprep.subr.mxu0 0.0
      %3914 = vmatpush1.msra.mxu0 %v3868
      %3915 = vmatprep.subr.mxu0 0.0
      %3916 = vmatpush1.msra.mxu0 %v3869
      %3917 = vmatprep.subr.mxu0 0.0
      %3918 = vmatpush1.msra.mxu0 %v3870
      %3919 = vmatprep.subr.mxu0 0.0
      %3920 = vmatpush1.msra.mxu0 %v3871
      %3921 = vmatprep.subr.mxu0 0.0
      %3922 = vmatpush1.msra.mxu0 %v3872
      %3923 = vmatprep.subr.mxu0 0.0
      %3924 = vmatpush1.msra.mxu0 %v3873
      %3925 = vmatprep.subr.mxu0 0.0
      %3926 = vmatpush1.msra.mxu0 %v3874
      %3927 = vmatprep.subr.mxu0 0.0
      %3928 = vmatpush1.msra.mxu0 %v3875
      %3929 = vmatprep.subr.mxu0 0.0
      %3930 = vmatpush1.msra.mxu0 %v3876
      %3931 = vmatprep.subr.mxu0 0.0
      %3932 = vmatpush1.msra.mxu0 %v3877
      %3933 = vmatprep.subr.mxu0 0.0
      %3934 = vmatpush1.msra.mxu0 %v3878
      %3935 = vmatprep.subr.mxu0 0.0
      %3936 = vmatpush1.msra.mxu0 %v3879
      %3937 = vmatprep.subr.mxu0 0.0
      %3938 = vmatpush1.msra.mxu0 %v3880
      %3939 = vmatprep.subr.mxu0 0.0
      %3940 = vmatpush1.msra.mxu0 %v3881
      %3941 = vmatprep.subr.mxu0 0.0
      %3942 = vmatpush1.msra.mxu0 %v3882
      %3943 = vmatprep.subr.mxu0 0.0
      %3944 = vmatpush1.msra.mxu0 %v3883
      %3945 = vmatprep.subr.mxu0 0.0
      %3946 = vmatpush1.msra.mxu0 %v3884
      %3947 = vmatprep.subr.mxu0 0.0
      %3948 = vmatpush1.msra.mxu0 %v3885
      %3949 = vmatprep.subr.mxu0 0.0
      %3950 = vmatpush1.msra.mxu0 %v3886
      %3951 = vmatprep.subr.mxu0 0.0
      %3952 = vmatpush1.msra.mxu0 %v3887
      %3953 = vmatprep.subr.mxu0 0.0
      %3954 = vmatpush1.msra.mxu0 %v3888
      %3955 = vmatprep.subr.mxu0 0.0
      %3956 = vmatpush1.msra.mxu0 %v3889
      %3957 = vmatprep.subr.mxu0 0.0
      %3958 = vmatpush1.msra.mxu0 %v3890
      %3959 = vmatprep.mubr.f32.mxu0 %v3844
      %3960 = vmatmul.mubr.f32.gmra.mrb[0].mxu0 %v3843
      %v3961 = vpop.f32.mrb[0].mxu0
      %v3962 = vadd.f32 %v3894, %v3961
      %v3963 = vpop.f32.mrb[0].mxu0
      %3964 = vmatprep.mubr.f32.mxu0 %v3846
      %3965 = vmatmul.mubr.f32.gmra.mrb[0].mxu0 %v3845
      %v3966 = vpop.f32.mrb[0].mxu0
      %v3967 = vadd.f32 %v3894, %v3966
      %v3968 = vpop.f32.mrb[0].mxu0
      %3969 = vmatprep.mubr.f32.mxu0 %v3848
      %3970 = vmatmul.mubr.f32.gmra.mrb[0].mxu0 %v3847
      %v3971 = vpop.f32.mrb[0].mxu0
      %v3972 = vadd.f32 %v3894, %v3971
      %v3973 = vpop.f32.mrb[0].mxu0
      %3974 = vmatprep.mubr.f32.mxu0 %v3850
      %3975 = vmatmul.mubr.f32.gmra.mrb[0].mxu0 %v3849
      %v3976 = vpop.f32.mrb[0].mxu0
      %v3977 = vadd.f32 %v3894, %v3976
      %v3978 = vpop.f32.mrb[0].mxu0
      %3979 = vmatprep.mubr.f32.mxu0 %v3852
      %3980 = vmatmul.mubr.f32.gmra.mrb[0].mxu0 %v3851
      %v3981 = vpop.f32.mrb[0].mxu0
      %v3982 = vadd.f32 %v3894, %v3981
      %v3983 = vpop.f32.mrb[0].mxu0
      %3984 = vmatprep.mubr.f32.mxu0 %v3854
      %3985 = vmatmul.mubr.f32.gmra.mrb[0].mxu0 %v3853
      %v3986 = vpop.f32.mrb[0].mxu0
      %v3987 = vadd.f32 %v3894, %v3986
      %v3988 = vpop.f32.mrb[0].mxu0
      %3989 = vmatprep.mubr.f32.mxu0 %v3856
      %3990 = vmatmul.mubr.f32.gmra.mrb[0].mxu0 %v3855
      %v3991 = vpop.f32.mrb[0].mxu0
      %v3992 = vadd.f32 %v3894, %v3991
      %v3993 = vpop.f32.mrb[0].mxu0
      %3994 = vmatprep.mubr.f32.mxu0 %v3858
      %3995 = vmatmul.mubr.f32.gmra.mrb[0].mxu0 %v3857
      %v3996 = vpop.f32.mrb[0].mxu0
      %v3997 = vadd.f32 %v3894, %v3996
      %v3998 = vpop.f32.mrb[0].mxu0
      %3999 = vdwg.mxu0
      %v4000 = vadd.f32 %v3678, %v3962
      %v4001 = vadd.f32 %v3679, %v3967
      %v4002 = vadd.f32 %v3680, %v3972
      %v4003 = vadd.f32 %v3681, %v3977
      %v4004 = vadd.f32 %v3682, %v3982
      %v4005 = vadd.f32 %v3683, %v3987
      %v4006 = vadd.f32 %v3684, %v3992
      %v4007 = vadd.f32 %v3685, %v3997
      %4008 = vadd.xlane.f32.xlu0 %v4000
      %v4009 = vpop.xlane.xlu0 %4008
      %4010 = vadd.xlane.f32.xlu0 %v4001
      %v4011 = vpop.xlane.xlu0 %4010
      %4012 = vadd.xlane.f32.xlu0 %v4002
      %v4013 = vpop.xlane.xlu0 %4012
      %4014 = vadd.xlane.f32.xlu0 %v4003
      %v4015 = vpop.xlane.xlu0 %4014
      %4016 = vadd.xlane.f32.xlu0 %v4004
      %v4017 = vpop.xlane.xlu0 %4016
      %4018 = vadd.xlane.f32.xlu0 %v4005
      %v4019 = vpop.xlane.xlu0 %4018
      %4020 = vadd.xlane.f32.xlu0 %v4006
      %v4021 = vpop.xlane.xlu0 %4020
      %4022 = vadd.xlane.f32.xlu0 %v4007
      %v4023 = vpop.xlane.xlu0 %4022
      %v4024 = vmul.f32 %v4009, %v3589
      %v4025 = vmul.f32 %v4011, %v3589
      %v4026 = vmul.f32 %v4013, %v3589
      %v4027 = vmul.f32 %v4015, %v3589
      %v4028 = vmul.f32 %v4017, %v3589
      %v4029 = vmul.f32 %v4019, %v3589
      %v4030 = vmul.f32 %v4021, %v3589
      %v4031 = vmul.f32 %v4023, %v3589
      %v4032 = vsub.f32 %v4000, %v4024
      %v4033 = vsub.f32 %v4001, %v4025
      %v4034 = vsub.f32 %v4002, %v4026
      %v4035 = vsub.f32 %v4003, %v4027
      %v4036 = vsub.f32 %v4004, %v4028
      %v4037 = vsub.f32 %v4005, %v4029
      %v4038 = vsub.f32 %v4006, %v4030
      %v4039 = vsub.f32 %v4007, %v4031
      %v4040 = vmul.f32 %v4032, %v4032
      %v4041 = vmul.f32 %v4033, %v4033
      %v4042 = vmul.f32 %v4034, %v4034
      %v4043 = vmul.f32 %v4035, %v4035
      %v4044 = vmul.f32 %v4036, %v4036
      %v4045 = vmul.f32 %v4037, %v4037
      %v4046 = vmul.f32 %v4038, %v4038
      %v4047 = vmul.f32 %v4039, %v4039
      %4048 = vadd.xlane.f32.xlu0 %v4040
      %v4049 = vpop.xlane.xlu0 %4048
      %4050 = vadd.xlane.f32.xlu0 %v4041
      %v4051 = vpop.xlane.xlu0 %4050
      %4052 = vadd.xlane.f32.xlu0 %v4042
      %v4053 = vpop.xlane.xlu0 %4052
      %4054 = vadd.xlane.f32.xlu0 %v4043
      %v4055 = vpop.xlane.xlu0 %4054
      %4056 = vadd.xlane.f32.xlu0 %v4044
      %v4057 = vpop.xlane.xlu0 %4056
      %4058 = vadd.xlane.f32.xlu0 %v4045
      %v4059 = vpop.xlane.xlu0 %4058
      %4060 = vadd.xlane.f32.xlu0 %v4046
      %v4061 = vpop.xlane.xlu0 %4060
      %4062 = vadd.xlane.f32.xlu0 %v4047
      %v4063 = vpop.xlane.xlu0 %4062
      %v4064 = vmul.f32 %v4049, %v3589
      %v4065 = vmul.f32 %v4051, %v3589
      %v4066 = vmul.f32 %v4053, %v3589
      %v4067 = vmul.f32 %v4055, %v3589
      %v4068 = vmul.f32 %v4057, %v3589
      %v4069 = vmul.f32 %v4059, %v3589
      %v4070 = vmul.f32 %v4061, %v3589
      %v4071 = vmul.f32 %v4063, %v3589
      %v4072 = vadd.f32 %v4064, 1e-05
      %v4073 = vadd.f32 %v4065, 1e-05
      %v4074 = vadd.f32 %v4066, 1e-05
      %v4075 = vadd.f32 %v4067, 1e-05
      %v4076 = vadd.f32 %v4068, 1e-05
      %v4077 = vadd.f32 %v4069, 1e-05
      %v4078 = vadd.f32 %v4070, 1e-05
      %v4079 = vadd.f32 %v4071, 1e-05
      %v4080 = vrsqrt.pop %v4072
      %v4081 = vrsqrt.pop %v4073
      %v4082 = vrsqrt.pop %v4074
      %v4083 = vrsqrt.pop %v4075
      %v4084 = vrsqrt.pop %v4076
      %v4085 = vrsqrt.pop %v4077
      %v4086 = vrsqrt.pop %v4078
      %v4087 = vrsqrt.pop %v4079
      %v4088 = vmul.f32 %v4032, %v4080
      %v4089 = vmul.f32 %v4033, %v4081
      %v4090 = vmul.f32 %v4034, %v4082
      %v4091 = vmul.f32 %v4035, %v4083
      %v4092 = vmul.f32 %v4036, %v4084
      %v4093 = vmul.f32 %v4037, %v4085
      %v4094 = vmul.f32 %v4038, %v4086
      %v4095 = vmul.f32 %v4039, %v4087
      %v4096 = vlaneseq
      %v4097 = vshrl.u32 %v4096, 7
      %v4098 = vsub.s32 4, %v4097
      %v4099 = vrot.slane %v368, %v4098
      %v4100 = vmul.f32 %v4088, %v4099
      %v4101 = vmul.f32 %v4089, %v4099
      %v4102 = vmul.f32 %v4090, %v4099
      %v4103 = vmul.f32 %v4091, %v4099
      %v4104 = vmul.f32 %v4092, %v4099
      %v4105 = vmul.f32 %v4093, %v4099
      %v4106 = vmul.f32 %v4094, %v4099
      %v4107 = vmul.f32 %v4095, %v4099
      %v4108 = vlaneseq
      %v4109 = vshrl.u32 %v4108, 7
      %v4110 = vsub.s32 5, %v4109
      %v4111 = vrot.slane %v368, %v4110
      %v4112 = vadd.f32 %v4100, %v4111
      %v4113 = vadd.f32 %v4101, %v4111
      %v4114 = vadd.f32 %v4102, %v4111
      %v4115 = vadd.f32 %v4103, %v4111
      %v4116 = vadd.f32 %v4104, %v4111
      %v4117 = vadd.f32 %v4105, %v4111
      %v4118 = vadd.f32 %v4106, %v4111
      %v4119 = vadd.f32 %v4107, %v4111
      %v4120 = vrot.slane %v4112, 4
      %v4121 = vadd.f32 %v4112, %v4120
      %v4122 = vrot.slane %v4121, 2
      %v4123 = vadd.f32 %v4121, %v4122
      %v4124 = vrot.slane %v4123, 1
      %v4125 = vadd.f32 %v4123, %v4124
      %v4126 = vrot.slane %v4113, 4
      %v4127 = vadd.f32 %v4113, %v4126
      %v4128 = vrot.slane %v4127, 2
      %v4129 = vadd.f32 %v4127, %v4128
      %v4130 = vrot.slane %v4129, 1
      %v4131 = vadd.f32 %v4129, %v4130
      %v4132 = vrot.slane %v4114, 4
      %v4133 = vadd.f32 %v4114, %v4132
      %v4134 = vrot.slane %v4133, 2
      %v4135 = vadd.f32 %v4133, %v4134
      %v4136 = vrot.slane %v4135, 1
      %v4137 = vadd.f32 %v4135, %v4136
      %v4138 = vrot.slane %v4115, 4
      %v4139 = vadd.f32 %v4115, %v4138
      %v4140 = vrot.slane %v4139, 2
      %v4141 = vadd.f32 %v4139, %v4140
      %v4142 = vrot.slane %v4141, 1
      %v4143 = vadd.f32 %v4141, %v4142
      %v4144 = vrot.slane %v4116, 4
      %v4145 = vadd.f32 %v4116, %v4144
      %v4146 = vrot.slane %v4145, 2
      %v4147 = vadd.f32 %v4145, %v4146
      %v4148 = vrot.slane %v4147, 1
      %v4149 = vadd.f32 %v4147, %v4148
      %v4150 = vrot.slane %v4117, 4
      %v4151 = vadd.f32 %v4117, %v4150
      %v4152 = vrot.slane %v4151, 2
      %v4153 = vadd.f32 %v4151, %v4152
      %v4154 = vrot.slane %v4153, 1
      %v4155 = vadd.f32 %v4153, %v4154
      %v4156 = vrot.slane %v4118, 4
      %v4157 = vadd.f32 %v4118, %v4156
      %v4158 = vrot.slane %v4157, 2
      %v4159 = vadd.f32 %v4157, %v4158
      %v4160 = vrot.slane %v4159, 1
      %v4161 = vadd.f32 %v4159, %v4160
      %v4162 = vrot.slane %v4119, 4
      %v4163 = vadd.f32 %v4119, %v4162
      %v4164 = vrot.slane %v4163, 2
      %v4165 = vadd.f32 %v4163, %v4164
      %v4166 = vrot.slane %v4165, 1
      %v4167 = vadd.f32 %v4165, %v4166
      %v4168 = vrcp.pop 8.0
      %v4169 = vmul.f32 %v4125, %v4168
      %v4170 = vmul.f32 %v4131, %v4168
      %v4171 = vmul.f32 %v4137, %v4168
      %v4172 = vmul.f32 %v4143, %v4168
      %v4173 = vmul.f32 %v4149, %v4168
      %v4174 = vmul.f32 %v4155, %v4168
      %v4175 = vmul.f32 %v4161, %v4168
      %v4176 = vmul.f32 %v4167, %v4168
      %v4177 = vld [vmem:[%s8] sm:$0xff]
      %v4178 = vld [vmem:[%s8 + $0x8] sm:$0xff]
      %v4179 = vld [vmem:[%s8 + $0x10] sm:$0xff]
      %v4180 = vld [vmem:[%s8 + $0x18] sm:$0xff]
      %v4181 = vld [vmem:[%s8 + $0x20] sm:$0xff]
      %v4182 = vld [vmem:[%s8 + $0x28] sm:$0xff]
      %v4183 = vld [vmem:[%s8 + $0x30] sm:$0xff]
      %v4184 = vld [vmem:[%s8 + $0x38] sm:$0xff]
      %v4185 = vld [vmem:[%s8 + $0x40] sm:$0xff]
      %v4186 = vld [vmem:[%s8 + $0x48] sm:$0xff]
      %v4187 = vld [vmem:[%s8 + $0x50] sm:$0xff]
      %v4188 = vld [vmem:[%s8 + $0x58] sm:$0xff]
      %v4189 = vld [vmem:[%s8 + $0x60] sm:$0xff]
      %v4190 = vld [vmem:[%s8 + $0x68] sm:$0xff]
      %v4191 = vld [vmem:[%s8 + $0x70] sm:$0xff]
      %v4192 = vld [vmem:[%s8 + $0x78] sm:$0xff]
      %v4193 = vld [vmem:[%s9] sm:$0x1]
      %v4195 = vlaneseq
      %v4196 = vshrl.u32 %v4195, 7
      %v4197 = vsub.s32 0, %v4196
      %v4198 = vrot.slane %v4193, %v4197
      %vm4208 = vcmask 1041409
      %v4209 = vsel %vm4208, %v4170, %v4169
      %vm4210 = vcmask 1042434
      %v4211 = vsel %vm4210, %v4171, %v4209
      %vm4212 = vcmask 1043459
      %v4213 = vsel %vm4212, %v4172, %v4211
      %vm4214 = vcmask 1044484
      %v4215 = vsel %vm4214, %v4173, %v4213
      %vm4216 = vcmask 1045509
      %v4217 = vsel %vm4216, %v4174, %v4215
      %vm4218 = vcmask 1046534
      %v4219 = vsel %vm4218, %v4175, %v4217
      %vm4220 = vcmask 1047559
      %v4221 = vsel %vm4220, %v4176, %v4219
      %4223 = vmatprep.subr.mxu0 0.0
      %4224 = vmatpush1.msra.mxu0 %v4177
      %4225 = vmatprep.subr.mxu0 0.0
      %4226 = vmatpush1.msra.mxu0 %v4178
      %4227 = vmatprep.subr.mxu0 0.0
      %4228 = vmatpush1.msra.mxu0 %v4179
      %4229 = vmatprep.subr.mxu0 0.0
      %4230 = vmatpush1.msra.mxu0 %v4180
      %4231 = vmatprep.subr.mxu0 0.0
      %4232 = vmatpush1.msra.mxu0 %v4181
      %4233 = vmatprep.subr.mxu0 0.0
      %4234 = vmatpush1.msra.mxu0 %v4182
      %4235 = vmatprep.subr.mxu0 0.0
      %4236 = vmatpush1.msra.mxu0 %v4183
      %4237 = vmatprep.subr.mxu0 0.0
      %4238 = vmatpush1.msra.mxu0 %v4184
      %4239 = vmatprep.subr.mxu0 0.0
      %4240 = vmatpush1.msra.mxu0 %v4185
      %4241 = vmatprep.subr.mxu0 0.0
      %4242 = vmatpush1.msra.mxu0 %v4186
      %4243 = vmatprep.subr.mxu0 0.0
      %4244 = vmatpush1.msra.mxu0 %v4187
      %4245 = vmatprep.subr.mxu0 0.0
      %4246 = vmatpush1.msra.mxu0 %v4188
      %4247 = vmatprep.subr.mxu0 0.0
      %4248 = vmatpush1.msra.mxu0 %v4189
      %4249 = vmatprep.subr.mxu0 0.0
      %4250 = vmatpush1.msra.mxu0 %v4190
      %4251 = vmatprep.subr.mxu0 0.0
      %4252 = vmatpush1.msra.mxu0 %v4191
      %4253 = vmatprep.subr.mxu0 0.0
      %4254 = vmatpush1.msra.mxu0 %v4192
      %4255 = vmatprep.subr.mxu0 0.0
      %4256 = vmatpush1.msra.mxu0 0.0
      %4257 = vmatprep.subr.mxu0 0.0
      %4258 = vmatpush1.msra.mxu0 0.0
      %4259 = vmatprep.subr.mxu0 0.0
      %4260 = vmatpush1.msra.mxu0 0.0
      %4261 = vmatprep.subr.mxu0 0.0
      %4262 = vmatpush1.msra.mxu0 0.0
      %4263 = vmatprep.subr.mxu0 0.0
      %4264 = vmatpush1.msra.mxu0 0.0
      %4265 = vmatprep.subr.mxu0 0.0
      %4266 = vmatpush1.msra.mxu0 0.0
      %4267 = vmatprep.subr.mxu0 0.0
      %4268 = vmatpush1.msra.mxu0 0.0
      %4269 = vmatprep.subr.mxu0 0.0
      %4270 = vmatpush1.msra.mxu0 0.0
      %4271 = vmatprep.subr.mxu0 0.0
      %4272 = vmatpush1.msra.mxu0 0.0
      %4273 = vmatprep.subr.mxu0 0.0
      %4274 = vmatpush1.msra.mxu0 0.0
      %4275 = vmatprep.subr.mxu0 0.0
      %4276 = vmatpush1.msra.mxu0 0.0
      %4277 = vmatprep.subr.mxu0 0.0
      %4278 = vmatpush1.msra.mxu0 0.0
      %4279 = vmatprep.subr.mxu0 0.0
      %4280 = vmatpush1.msra.mxu0 0.0
      %4281 = vmatprep.subr.mxu0 0.0
      %4282 = vmatpush1.msra.mxu0 0.0
      %4283 = vmatprep.subr.mxu0 0.0
      %4284 = vmatpush1.msra.mxu0 0.0
      %4285 = vmatprep.subr.mxu0 0.0
      %4286 = vmatpush1.msra.mxu0 0.0
      %4287 = vmatprep.mubr.f32.mxu0 0.0
      %4288 = vmatmul.mubr.f32.gmra.mrb[0].mxu0 %v4221
      %v4289 = vpop.f32.mrb[0].mxu0
      %v4290 = vadd.f32 %v4198, %v4289
      %v4291 = vpop.f32.mrb[0].mxu0
      %4292 = vdwg.mxu0
      %4293 = vst [vmem:[%s359] sm:$0xff] %v4290
      %p4294 = scmp.lt.s32.totalorder %s21, 1
      %s4295 = scalar_select %p4294, %s21, 1
      %s4296 = smul.addr %s4295, 8
      %s4297 = scalar_lea.vmem %s10, %s4296
      // Predicated region
      $region61: #{simple_transformer_forward.3} parent=59 // pred_check
        %p4298 = pneg %p254
      $region62: #{simple_transformer_forward.3} parent=59 // pred_check_branch
        %4300 = sbr.rel (%p4298) target = $region64
      $region63: #{simple_transformer_forward.3} parent=59 // pred_region
        _
      $region64: #{simple_transformer_forward.3} parent=59 // pred_fallthru
        _
    $region60: #{simple_transformer_forward.3} parent=5 // pred_fallthru
      _
    %p4301 = scmp.le.s32.totalorder 2, %s16
    // Predicated region
    $region65: #{simple_transformer_forward.3} parent=5 // pred_check
      %p4302 = pneg %p4301
    $region66: #{simple_transformer_forward.3} parent=5 // pred_check_branch
      %4304 = sbr.rel (%p4302) target = $region68
    $region67: #{simple_transformer_forward.3} parent=5 // pred_region
      %s4305 = ssub.s32 %s16, 2
      // Predicated region
      $region69: #{simple_transformer_forward.3} parent=67 // pred_check
        %p4306 = pneg %p260
      $region70: #{simple_transformer_forward.3} parent=67 // pred_check_branch
        %4308 = sbr.rel (%p4306) target = $region72
      $region71: #{simple_transformer_forward.3} parent=67 // pred_region
        %p4309 = scmp.lt.s32.totalorder %s22, 1
        %s4310 = scalar_select %p4309, %s22, 1
        %s4311 = smul.addr %s4310, 8
        %s4312 = scalar_lea.vmem %s10, %s4311
      $region72: #{simple_transformer_forward.3} parent=67 // pred_fallthru
        _
    $region68: #{simple_transformer_forward.3} parent=5 // pred_fallthru
      _
  $region6: #{simple_transformer_forward.3} parent=0 // loop_footer
    %s20 = sadd.s32 1, %s16
  $region7: #{simple_transformer_forward.3} parent=0 // loop_footer_branch
    %15 = sbr.rel target = $region3
  $region8: #{simple_transformer_forward.3} parent=0 // loop_exit
    _

</llo_original>
